<compile_context>
chip_gen: v7x
topology: tpu7x:2x2x1
jax: 0.10.0
libtpu: 0.0.40
codegen_flags: <defaults>
</compile_context>

<pallas_src>
import functools
import math

import jax
import jax.numpy as jnp
from jax import lax
from jax.experimental import pallas as pl
from jax.experimental.pallas import tpu as pltpu

LANE = 128


def _round_up(n, m=LANE):
    return ((n + m - 1) // m) * m


def _pad_to(a, shape):
    return jnp.pad(a, [(0, t - s) for s, t in zip(a.shape, shape)])


# ----------------------------------------------------------------------------
# Encoder kernel: one (row-block, layer) grid step.  Activation is carried in a
# VMEM scratch across the (sequential, innermost) layer axis; on the last layer
# the final encoder LayerNorm output is written back.
# ----------------------------------------------------------------------------
def _encoder_kernel(x_ref, wqkv_ref, wout_ref, w1_ref, w2_ref, vec_ref, encln_ref,
                    out_ref, x_scr,
                    *, seq, batches, d_model, d_pad, ff_pad, nhead, head_dim):
    l = pl.program_id(1)
    n_layers = pl.num_programs(1)
    S, nb, D, Dp, FFp = seq, batches, d_model, d_pad, ff_pad
    H, dh = nhead, head_dim
    rows = nb * S
    inv_d = 1.0 / D
    scale = 1.0 / math.sqrt(dh)
    f32, bf16 = jnp.float32, jnp.bfloat16

    lane_ok = lax.broadcasted_iota(jnp.int32, (1, Dp), 1) < D   # real-feature lanes

    def layer_norm(v, g, b):
        # Padded lanes of v are exactly zero, so full-lane sums == sums over the
        # real D features.  Two-pass (mean-subtracted) variance for parity with
        # PyTorch; the lane mask keeps padded lanes out of the centered sum and
        # zero in the output (gamma/beta are zero-padded).
        mu = jnp.sum(v, axis=-1, keepdims=True) * inv_d
        xc = jnp.where(lane_ok, v - mu, 0.0)
        var = jnp.sum(xc * xc, axis=-1, keepdims=True) * inv_d
        return xc * lax.rsqrt(var + 1e-5) * g + b

    # --- ONE packed DMA of all small per-layer vectors; static 128-aligned slices
    o = 0
    bqkv = vec_ref[:, o:o + 3 * Dp]; o += 3 * Dp
    bout = vec_ref[:, o:o + Dp]; o += Dp
    ln1w = vec_ref[:, o:o + Dp]; o += Dp
    ln1b = vec_ref[:, o:o + Dp]; o += Dp
    b1 = vec_ref[:, o:o + FFp]; o += FFp
    b2 = vec_ref[:, o:o + Dp]; o += Dp
    ln2w = vec_ref[:, o:o + Dp]; o += Dp
    ln2b = vec_ref[:, o:o + Dp]

    @pl.when(l == 0)
    def _():
        x_scr[...] = x_ref[...]

    x = x_scr[...]                                            # (rows, Dp) f32

    # ---- fused QKV projection over the whole row slab (batch folded into M) ----
    qkv = jnp.dot(x.astype(bf16), wqkv_ref[...],
                  preferred_element_type=f32) + bqkv
    q = qkv[:, 0:D].reshape(rows, H, dh)
    k = qkv[:, Dp:Dp + D].reshape(rows, H, dh)
    v = qkv[:, 2 * Dp:2 * Dp + D].reshape(rows, H, dh)

    # ---- attention over all rows at once; per-batch isolation via an in-kernel
    #      block-diagonal + causal mask (division-free, built from iotas) ----
    scores = jnp.einsum('qhd,khd->hqk', q, k, preferred_element_type=f32) * scale
    qi = lax.broadcasted_iota(jnp.int32, (rows, rows), 0)
    ki = lax.broadcasted_iota(jnp.int32, (rows, rows), 1)
    causal = ki <= qi
    same_b = None
    for b in range(nb):                                       # static tiny loop
        in_q = (qi >= b * S) & (qi < (b + 1) * S)
        in_k = (ki >= b * S) & (ki < (b + 1) * S)
        term = in_q & in_k
        same_b = term if same_b is None else (same_b | term)
    mask = (causal & same_b)[None, :, :]
    scores = jnp.where(mask, scores, -1e30)                   # finite: NaN-safe
    scores = scores - jnp.max(scores, axis=-1, keepdims=True)
    p = jnp.exp(scores)
    p = p / jnp.sum(p, axis=-1, keepdims=True)                # exact softmax denom

    ctx = jnp.einsum('hqk,khd->qhd', p, v, preferred_element_type=f32)
    ctx = ctx.reshape(rows, D)

    # ---- out-projection + post-norm residual block (PyTorch norm_first=False) ----
    attn = jnp.dot(ctx.astype(bf16), wout_ref[...], preferred_element_type=f32) + bout
    x = layer_norm(x + attn, ln1w, ln1b)

    # ---- FFN ----
    h = jnp.dot(x.astype(bf16), w1_ref[...], preferred_element_type=f32) + b1
    h = jnp.maximum(h, 0.0)                                   # ReLU
    h2 = jnp.dot(h.astype(bf16), w2_ref[...], preferred_element_type=f32) + b2
    x = layer_norm(x + h2, ln2w, ln2b)

    x_scr[...] = x                                            # carry to next layer

    # Final encoder LayerNorm (added by nn.Transformer) on the last layer only.
    @pl.when(l == n_layers - 1)
    def _():
        out_ref[...] = layer_norm(x, encln_ref[:, 0:Dp], encln_ref[:, Dp:2 * Dp])


# ----------------------------------------------------------------------------
# Vocab-tiled LM head: logits = LN_enc(x) @ fc_w.T + fc_b  (LN already applied).
# ----------------------------------------------------------------------------
def _head_kernel(x_ref, fcw_ref, fcb_ref, out_ref):
    out_ref[...] = (jnp.dot(x_ref[...].astype(jnp.bfloat16), fcw_ref[...],
                            preferred_element_type=jnp.float32) + fcb_ref[...])


# ----------------------------------------------------------------------------
# One-time weight re-layout (hoisted OUT of the forward pass, per review):
# transpose to (in, out), zero-pad to 128 lanes, cast matmul weights to bf16,
# pack small per-layer vectors into a single array.
# ----------------------------------------------------------------------------
def prepare_params(params, *, nhead, num_layers):
    f32, bf16 = jnp.float32, jnp.bfloat16
    L = num_layers
    V, D = params['embedding'].shape
    FF = params['lin1_w'].shape[1]
    Dp, FFp, Vp = _round_up(D), _round_up(FF), _round_up(V)

    prep = {}
    prep['emb_p'] = _pad_to(params['embedding'].astype(f32), (V, Dp))
    prep['pe_p'] = _pad_to(params['pe'].astype(f32), (params['pe'].shape[0], 1, Dp))

    in_w, in_b = params['in_w'], params['in_b']
    wqkv = jnp.zeros((L, Dp, 3 * Dp), f32)
    bqkv = jnp.zeros((L, 1, 3 * Dp), f32)
    for i in range(3):                                        # q, k, v blocks, 128-aligned
        wi = jnp.transpose(in_w[:, i * D:(i + 1) * D, :], (0, 2, 1))
        wqkv = wqkv.at[:, 0:D, i * Dp:i * Dp + D].set(wi)
        bqkv = bqkv.at[:, :, i * Dp:i * Dp + D].set(in_b[:, None, i * D:(i + 1) * D])
    prep['wqkv'] = wqkv.astype(bf16)
    prep['wout'] = _pad_to(jnp.transpose(params['out_w'], (0, 2, 1)), (L, D, Dp)).astype(bf16)
    prep['w1'] = _pad_to(jnp.transpose(params['lin1_w'], (0, 2, 1)), (L, Dp, FFp)).astype(bf16)
    prep['w2'] = _pad_to(jnp.transpose(params['lin2_w'], (0, 2, 1)), (L, FFp, Dp)).astype(bf16)

    # all small per-layer vectors -> ONE (L, 1, 9*Dp + FFp) array (single DMA per layer)
    pad_vec = lambda a, w: _pad_to(a[:, None, :], (L, 1, w))
    prep['vecs'] = jnp.concatenate([
        bqkv,                                   # 3*Dp   (qkv bias)
        pad_vec(params['out_b'], Dp),           # Dp
        pad_vec(params['ln1_w'], Dp),           # Dp
        pad_vec(params['ln1_b'], Dp),           # Dp
        pad_vec(params['lin1_b'], FFp),         # FFp
        pad_vec(params['lin2_b'], Dp),          # Dp
        pad_vec(params['ln2_w'], Dp),           # Dp
        pad_vec(params['ln2_b'], Dp),           # Dp
    ], axis=-1).astype(f32)

    prep['encln'] = jnp.concatenate([_pad_to(params['enc_ln_w'], (1, Dp)),
                                     _pad_to(params['enc_ln_b'], (1, Dp))], axis=-1)
    prep['fcw'] = _pad_to(params['fc_w'].T, (Dp, Vp)).astype(bf16)
    prep['fcb'] = _pad_to(params['fc_b'], (1, Vp)).astype(f32)
    return prep


# ----------------------------------------------------------------------------
# Forward: embedding gather + positional encoding, encoder pallas_call with
# grid=(row_blocks, layers), then a vocab-tiled head pallas_call.
# ----------------------------------------------------------------------------
def cybersecurity_transformer_forward(src, prep, *, nhead, num_layers, d_model,
                                      vocab_size, num_row_blocks=1, vocab_tile=512):
    B, S = src.shape
    D, L, H = d_model, num_layers, nhead
    dh = D // H
    Dp = prep['emb_p'].shape[1]
    FFp = prep['w1'].shape[2]
    Vp = prep['fcw'].shape[1]
    K = prep['vecs'].shape[2]
    R = num_row_blocks                      # set 2 on v7x to shard rows over both TCs
    assert B % R == 0, "num_row_blocks must divide batch"
    nb = B // R
    rows = nb * S

    # Embedding + positional encoding.  NOTE: the PyTorch module adds
    # pe[:x.size(0)] with batch_first inputs, i.e. a *batch*-indexed PE broadcast
    # over the sequence axis -- reproduced on purpose.
    x = (prep['emb_p'][src] + prep['pe_p'][:B]).astype(jnp.float32)   # (B, S, Dp)
    x = x.reshape(R, rows, Dp)

    enc_kernel = functools.partial(_encoder_kernel, seq=S, batches=nb, d_model=D,
                                   d_pad=Dp, ff_pad=FFp, nhead=H, head_dim=dh)

    per_layer = lambda r, l: (l, 0, 0)     # stream one layer's weights per step
    per_rowblk = lambda r, l: (r, 0, 0)    # row slab resident across the layer axis
    shared2d = lambda r, l: (0, 0)         # loaded once (index never changes)

    grid_spec = pltpu.PrefetchScalarGridSpec(
        num_scalar_prefetch=0,
        # Layer axis LAST and "arbitrary": the scratch-carried activation relies
        # on it being the innermost, sequential axis.
        grid=(R, L),
        in_specs=[
            pl.BlockSpec((None, rows, Dp), per_rowblk),       # activations
            pl.BlockSpec((None, Dp, 3 * Dp), per_layer),      # fused QKV weight (bf16)
            pl.BlockSpec((None, D, Dp), per_layer),           # out-proj weight  (bf16)
            pl.BlockSpec((None, Dp, FFp), per_layer),         # FFN lin1 weight  (bf16)
            pl.BlockSpec((None, FFp, Dp), per_layer),         # FFN lin2 weight  (bf16)
            pl.BlockSpec((None, 1, K), per_layer),            # packed biases / LN vecs
            pl.BlockSpec((1, 2 * Dp), shared2d),              # final encoder LN gamma|beta
        ],
        out_specs=pl.BlockSpec((None, rows, Dp), per_rowblk),
        scratch_shapes=[pltpu.VMEM((rows, Dp), jnp.float32)],  # carried activation
    )

    enc = pl.pallas_call(
        enc_kernel,
        out_shape=jax.ShapeDtypeStruct((R, rows, Dp), jnp.float32),
        grid_spec=grid_spec,
        compiler_params=pltpu.CompilerParams(
            dimension_semantics=("parallel", "arbitrary"),
            vmem_limit_bytes=48 * 1024 * 1024),     # stays under v7x's 64 MiB physical
    )(x, prep['wqkv'], prep['wout'], prep['w1'], prep['w2'], prep['vecs'],
      prep['encln'])

    enc = enc.reshape(B * S, Dp)

    # ---- vocab-tiled LM head (separate call: fcw never resident across layers) ----
    Vt = Vp
    if Vp > vocab_tile:
        Vt = LANE
        for cand in range(_round_up(vocab_tile), 0, -LANE):
            if Vp % cand == 0:
                Vt = cand
                break
    logits = pl.pallas_call(
        _head_kernel,
        out_shape=jax.ShapeDtypeStruct((B * S, Vp), jnp.float32),
        grid_spec=pltpu.PrefetchScalarGridSpec(
            num_scalar_prefetch=0,
            grid=(Vp // Vt,),
            in_specs=[
                pl.BlockSpec((B * S, Dp), lambda v: (0, 0)),  # encoder output, resident
                pl.BlockSpec((Dp, Vt), lambda v: (0, v)),     # fc_out weight tile (bf16)
                pl.BlockSpec((1, Vt), lambda v: (0, v)),      # fc_out bias tile
            ],
            out_specs=pl.BlockSpec((B * S, Vt), lambda v: (0, v)),
        ),
        compiler_params=pltpu.CompilerParams(
            dimension_semantics=("parallel",),
            vmem_limit_bytes=48 * 1024 * 1024),
    )(enc, prep['fcw'], prep['fcb'])

    return logits.reshape(B, S, Vp)[:, :, :vocab_size]


# ----------------------------------------------------------------------------
# Deterministic parameter initialization (PyTorch-style layouts / shapes)
# ----------------------------------------------------------------------------
def init_params(key, vocab_size, d_model, nhead, num_layers, dim_ff, max_len=64):
    ks = jax.random.split(key, 12)

    def nrm(k, shape, s=0.02):
        return jax.random.normal(k, shape, jnp.float32) * s

    L = num_layers
    p = {}
    p['embedding'] = nrm(ks[0], (vocab_size, d_model), 1.0)

    # PositionalEncoding buffer pe: (max_len, 1, d_model)
    position = jnp.arange(max_len, dtype=jnp.float32)[:, None]
    div_term = jnp.exp(jnp.arange(0, d_model, 2, dtype=jnp.float32) *
                       (-math.log(10000.0) / d_model))
    ang = position * div_term
    pe = jnp.stack([jnp.sin(ang), jnp.cos(ang)], axis=-1).reshape(max_len, d_model)
    p['pe'] = pe[:, None, :]

    # per-encoder-layer parameters (PyTorch layouts), stacked on a layer axis
    p['in_w'] = nrm(ks[1], (L, 3 * d_model, d_model))          # in_proj_weight
    p['in_b'] = nrm(ks[2], (L, 3 * d_model))                   # in_proj_bias
    p['out_w'] = nrm(ks[3], (L, d_model, d_model))             # out_proj.weight
    p['out_b'] = nrm(ks[4], (L, d_model))                      # out_proj.bias
    p['ln1_w'] = jnp.ones((L, d_model), jnp.float32)
    p['ln1_b'] = jnp.zeros((L, d_model), jnp.float32)
    p['lin1_w'] = nrm(ks[5], (L, dim_ff, d_model))             # linear1.weight
    p['lin1_b'] = nrm(ks[6], (L, dim_ff))
    p['lin2_w'] = nrm(ks[7], (L, d_model, dim_ff))             # linear2.weight
    p['lin2_b'] = nrm(ks[8], (L, d_model))
    p['ln2_w'] = jnp.ones((L, d_model), jnp.float32)
    p['ln2_b'] = jnp.zeros((L, d_model), jnp.float32)

    # final encoder norm (created by nn.Transformer) and output head
    p['enc_ln_w'] = jnp.ones((1, d_model), jnp.float32)
    p['enc_ln_b'] = jnp.zeros((1, d_model), jnp.float32)
    p['fc_w'] = nrm(ks[9], (vocab_size, d_model))              # fc_out.weight
    p['fc_b'] = nrm(ks[10], (1, vocab_size))                   # fc_out.bias

    # TODO(synk): nn.Transformer also builds a decoder stack that forward()
    # never calls; it is intentionally not instantiated here.
    return p


# ----------------------------------------------------------------------------
# Pure-JAX reference (mirrors the kernel's bf16-weight / f32-accumulate matmuls)
# ----------------------------------------------------------------------------
def _reference_forward(src, params, *, nhead, num_layers):
    f32, bf16 = jnp.float32, jnp.bfloat16
    B, S = src.shape
    D = params['embedding'].shape[1]
    H, dh = nhead, D // nhead

    def mm(a, w_torch):            # a @ w.T with bf16 inputs, f32 accumulation
        return jnp.dot(a.astype(bf16), w_torch.T.astype(bf16),
                       preferred_element_type=f32)

    def ln(v, g, b):
        mu = jnp.mean(v, -1, keepdims=True)
        var = jnp.mean((v - mu) ** 2, -1, keepdims=True)
        return (v - mu) * lax.rsqrt(var + 1e-5) * g + b

    x = (params['embedding'][src] + params['pe'][:B]).astype(f32)
    causal = jnp.tril(jnp.ones((S, S), bool))
    for l in range(num_layers):
        qkv = mm(x, params['in_w'][l]) + params['in_b'][l]
        q = qkv[..., :D].reshape(B, S, H, dh)
        k = qkv[..., D:2 * D].reshape(B, S, H, dh)
        v = qkv[..., 2 * D:].reshape(B, S, H, dh)
        s = jnp.einsum('bqhd,bkhd->bhqk', q, k) / math.sqrt(dh)
        s = jnp.where(causal, s, -1e30)
        p = jax.nn.softmax(s, axis=-1)
        ctx = jnp.einsum('bhqk,bkhd->bqhd', p, v).reshape(B, S, D)
        attn = mm(ctx, params['out_w'][l]) + params['out_b'][l]
        x = ln(x + attn, params['ln1_w'][l], params['ln1_b'][l])
        h = jax.nn.relu(mm(x, params['lin1_w'][l]) + params['lin1_b'][l])
        x = ln(x + mm(h, params['lin2_w'][l]) + params['lin2_b'][l],
               params['ln2_w'][l], params['ln2_b'][l])
    x = ln(x, params['enc_ln_w'][0], params['enc_ln_b'][0])
    return mm(x, params['fc_w']) + params['fc_b']


if __name__ == "__main__":
    VOCAB, D_MODEL, NHEAD, N_LAYERS, DIM_FF = 32, 32, 4, 2, 64
    B, S = 2, 8

    key = jax.random.PRNGKey(0)
    pkey, skey = jax.random.split(key)
    params = init_params(pkey, VOCAB, D_MODEL, NHEAD, N_LAYERS, DIM_FF)
    src = jax.random.randint(skey, (B, S), 0, VOCAB, dtype=jnp.int32)

    # one-time weight re-layout (NOT part of the per-call forward path)
    prep = prepare_params(params, nhead=NHEAD, num_layers=N_LAYERS)

    fwd = jax.jit(functools.partial(cybersecurity_transformer_forward,
                                    nhead=NHEAD, num_layers=N_LAYERS,
                                    d_model=D_MODEL, vocab_size=VOCAB,
                                    num_row_blocks=1))
    out = jax.block_until_ready(fwd(src, prep))

    assert out.shape == (B, S, VOCAB), out.shape
    assert bool(jnp.all(jnp.isfinite(out)))

    # cross-check against a pure-JAX reference with matched matmul precision
    ref = _reference_forward(src, params, nhead=NHEAD, num_layers=N_LAYERS)
    err = float(jnp.max(jnp.abs(out - ref)))
    assert err < 1e-2, f"max abs err vs reference: {err}"

    # also exercise the v7x-oriented 2-way row-block split (parallel leading axis)
    out2 = jax.block_until_ready(
        cybersecurity_transformer_forward(src, prep, nhead=NHEAD, num_layers=N_LAYERS,
                                          d_model=D_MODEL, vocab_size=VOCAB,
                                          num_row_blocks=2))
    assert float(jnp.max(jnp.abs(out2 - out))) < 1e-3

    print("KERNEL_OK")
</pallas_src>

<mosaic_0001>
module attributes {stable_mosaic.version = 11 : i64} {
  func.func @_encoder_kernel(%arg0: i32, %arg1: i32, %arg2: memref<1x16x128xf32, #tpu.memory_space<vmem>>, %arg3: memref<1x128x384xbf16, #tpu.memory_space<vmem>>, %arg4: memref<1x32x128xbf16, #tpu.memory_space<vmem>>, %arg5: memref<1x128x128xbf16, #tpu.memory_space<vmem>>, %arg6: memref<1x128x128xbf16, #tpu.memory_space<vmem>>, %arg7: memref<1x1x1280xf32, #tpu.memory_space<vmem>>, %arg8: memref<1x256xf32, #tpu.memory_space<vmem>>, %arg9: memref<1x16x128xf32, #tpu.memory_space<vmem>>, %arg10: memref<16x128xf32, #tpu.memory_space<vmem>>) attributes {dimension_semantics = [#tpu.dimension_semantics<parallel>, #tpu.dimension_semantics<arbitrary>], iteration_bounds = array<i64: 1, 2>, scalar_prefetch = 0 : i64, scratch_operands = 1 : i64, tpu.core_type = #tpu.core_type<tc>, window_params = [{transform_indices = @transform_0, window_bounds = array<i64: 1, 16, 128>}, {transform_indices = @transform_1, window_bounds = array<i64: 1, 128, 384>}, {transform_indices = @transform_2, window_bounds = array<i64: 1, 32, 128>}, {transform_indices = @transform_3, window_bounds = array<i64: 1, 128, 128>}, {transform_indices = @transform_4, window_bounds = array<i64: 1, 128, 128>}, {transform_indices = @transform_5, window_bounds = array<i64: 1, 1, 1280>}, {pipeline_mode = #tpu.pipeline_mode<synchronous>, transform_indices = @transform_6, window_bounds = array<i64: 1, 256>}, {transform_indices = @transform_7, window_bounds = array<i64: 1, 16, 128>}]} {
    %0 = tpu.iota {dimensions = array<i32: 1>} : vector<1x128xi32>
    %c32_i32 = arith.constant 32 : i32
    %1 = vector.broadcast %c32_i32 : i32 to vector<1x128xi32>
    %2 = arith.cmpi slt, %0, %1 : vector<1x128xi32>
    %c0 = arith.constant 0 : index
    %c0_0 = arith.constant 0 : index
    %c0_1 = arith.constant 0 : index
    %3 = vector.load %arg7[%c0, %c0_0, %c0_1] : memref<1x1x1280xf32, #tpu.memory_space<vmem>>, vector<1x1x384xf32>
    %4 = vector.shape_cast %3 : vector<1x1x384xf32> to vector<1x384xf32>
    %c0_2 = arith.constant 0 : index
    %c0_3 = arith.constant 0 : index
    %c384 = arith.constant 384 : index
    %5 = vector.load %arg7[%c0_2, %c0_3, %c384] : memref<1x1x1280xf32, #tpu.memory_space<vmem>>, vector<1x1x128xf32>
    %6 = vector.shape_cast %5 : vector<1x1x128xf32> to vector<1x128xf32>
    %c0_4 = arith.constant 0 : index
    %c0_5 = arith.constant 0 : index
    %c512 = arith.constant 512 : index
    %7 = vector.load %arg7[%c0_4, %c0_5, %c512] : memref<1x1x1280xf32, #tpu.memory_space<vmem>>, vector<1x1x128xf32>
    %8 = vector.shape_cast %7 : vector<1x1x128xf32> to vector<1x128xf32>
    %c0_6 = arith.constant 0 : index
    %c0_7 = arith.constant 0 : index
    %c640 = arith.constant 640 : index
    %9 = vector.load %arg7[%c0_6, %c0_7, %c640] : memref<1x1x1280xf32, #tpu.memory_space<vmem>>, vector<1x1x128xf32>
    %10 = vector.shape_cast %9 : vector<1x1x128xf32> to vector<1x128xf32>
    %c0_8 = arith.constant 0 : index
    %c0_9 = arith.constant 0 : index
    %c768 = arith.constant 768 : index
    %11 = vector.load %arg7[%c0_8, %c0_9, %c768] : memref<1x1x1280xf32, #tpu.memory_space<vmem>>, vector<1x1x128xf32>
    %12 = vector.shape_cast %11 : vector<1x1x128xf32> to vector<1x128xf32>
    %c0_10 = arith.constant 0 : index
    %c0_11 = arith.constant 0 : index
    %c896 = arith.constant 896 : index
    %13 = vector.load %arg7[%c0_10, %c0_11, %c896] : memref<1x1x1280xf32, #tpu.memory_space<vmem>>, vector<1x1x128xf32>
    %14 = vector.shape_cast %13 : vector<1x1x128xf32> to vector<1x128xf32>
    %c0_12 = arith.constant 0 : index
    %c0_13 = arith.constant 0 : index
    %c1024 = arith.constant 1024 : index
    %15 = vector.load %arg7[%c0_12, %c0_13, %c1024] : memref<1x1x1280xf32, #tpu.memory_space<vmem>>, vector<1x1x128xf32>
    %16 = vector.shape_cast %15 : vector<1x1x128xf32> to vector<1x128xf32>
    %c0_14 = arith.constant 0 : index
    %c0_15 = arith.constant 0 : index
    %c1152 = arith.constant 1152 : index
    %17 = vector.load %arg7[%c0_14, %c0_15, %c1152] : memref<1x1x1280xf32, #tpu.memory_space<vmem>>, vector<1x1x128xf32>
    %18 = vector.shape_cast %17 : vector<1x1x128xf32> to vector<1x128xf32>
    %c0_i32 = arith.constant 0 : i32
    %19 = arith.cmpi eq, %arg1, %c0_i32 : i32
    %20 = arith.extui %19 : i1 to i32
    %c0_i32_16 = arith.constant 0 : i32
    %21 = arith.cmpi ne, %20, %c0_i32_16 : i32
    scf.if %21 {
      %c0_62 = arith.constant 0 : index
      %c0_63 = arith.constant 0 : index
      %c0_64 = arith.constant 0 : index
      %156 = vector.load %arg2[%c0_62, %c0_63, %c0_64] : memref<1x16x128xf32, #tpu.memory_space<vmem>>, vector<1x16x128xf32>
      %157 = vector.shape_cast %156 : vector<1x16x128xf32> to vector<16x128xf32>
      %c0_65 = arith.constant 0 : index
      %c0_66 = arith.constant 0 : index
      %158 = vector.load %arg10[%c0_65, %c0_66] : memref<16x128xf32, #tpu.memory_space<vmem>>, vector<16x128xf32>
      tpu.vector_store %arg10[%c0_65, %c0_66], %157 {strides = array<i32>} : memref<16x128xf32, #tpu.memory_space<vmem>>, vector<16x128xf32>,
    } else {
    }
    %c0_17 = arith.constant 0 : index
    %c0_18 = arith.constant 0 : index
    %22 = vector.load %arg10[%c0_17, %c0_18] : memref<16x128xf32, #tpu.memory_space<vmem>>, vector<16x128xf32>
    %23 = arith.truncf %22 : vector<16x128xf32> to vector<16x128xbf16>
    %c0_19 = arith.constant 0 : index
    %c0_20 = arith.constant 0 : index
    %c0_21 = arith.constant 0 : index
    %24 = vector.load %arg3[%c0_19, %c0_20, %c0_21] : memref<1x128x384xbf16, #tpu.memory_space<vmem>>, vector<1x128x384xbf16>
    %25 = vector.shape_cast %24 : vector<1x128x384xbf16> to vector<128x384xbf16>
    %cst = arith.constant dense<0.000000e+00> : vector<16x384xf32>
    %26 = tpu.matmul %23, %25, %cst {dimension_numbers = #tpu.dot_dimension_numbers<[1], [0], [0], [1], [0, 0, 1, 1], [], []>} : vector<16x128xbf16>, vector<128x384xbf16>, vector<16x384xf32> -> vector<16x384xf32>
    %27 = vector.broadcast %4 : vector<1x384xf32> to vector<16x384xf32>
    %28 = arith.addf %26, %27 : vector<16x384xf32>
    %29 = vector.extract_strided_slice %28 {offsets = [0, 0], sizes = [16, 32], strides = [1, 1]} : vector<16x384xf32> to vector<16x32xf32>
    %30 = vector.shape_cast %29 : vector<16x32xf32> to vector<16x4x8xf32>
    %31 = vector.extract_strided_slice %28 {offsets = [0, 128], sizes = [16, 32], strides = [1, 1]} : vector<16x384xf32> to vector<16x32xf32>
    %32 = vector.shape_cast %31 : vector<16x32xf32> to vector<16x4x8xf32>
    %33 = vector.extract_strided_slice %28 {offsets = [0, 256], sizes = [16, 32], strides = [1, 1]} : vector<16x384xf32> to vector<16x32xf32>
    %34 = vector.shape_cast %33 : vector<16x32xf32> to vector<16x4x8xf32>
    "tpu.trace_start"() <{level = 10 : i32, message = "qhd,khd->hqk"}> : () -> ()
    %cst_22 = arith.constant dense<0.000000e+00> : vector<4x16x16xf32>
    %35 = tpu.matmul %30, %32, %cst_22 {dimension_numbers = #tpu.dot_dimension_numbers<[2], [2], [0], [0], [0, 1, 0, 0, 1, 0], [1], [1]>} : vector<16x4x8xf32>, vector<16x4x8xf32>, vector<4x16x16xf32> -> vector<4x16x16xf32>
    "tpu.trace_stop"() : () -> ()
    %cst_23 = arith.constant 0.353553385 : f32
    %36 = vector.broadcast %cst_23 : f32 to vector<4x16x16xf32>
    %37 = arith.mulf %35, %36 : vector<4x16x16xf32>
    %38 = tpu.iota {dimensions = array<i32: 0>} : vector<16x16xi32>
    %39 = tpu.iota {dimensions = array<i32: 1>} : vector<16x16xi32>
    %40 = arith.cmpi sle, %39, %38 : vector<16x16xi32>
    %c0_i32_24 = arith.constant 0 : i32
    %41 = vector.broadcast %c0_i32_24 : i32 to vector<16x16xi32>
    %42 = arith.cmpi sge, %38, %41 : vector<16x16xi32>
    %c8_i32 = arith.constant 8 : i32
    %43 = vector.broadcast %c8_i32 : i32 to vector<16x16xi32>
    %44 = arith.cmpi slt, %38, %43 : vector<16x16xi32>
    %45 = arith.andi %42, %44 : vector<16x16xi1>
    %c0_i32_25 = arith.constant 0 : i32
    %46 = vector.broadcast %c0_i32_25 : i32 to vector<16x16xi32>
    %47 = arith.cmpi sge, %39, %46 : vector<16x16xi32>
    %c8_i32_26 = arith.constant 8 : i32
    %48 = vector.broadcast %c8_i32_26 : i32 to vector<16x16xi32>
    %49 = arith.cmpi slt, %39, %48 : vector<16x16xi32>
    %50 = arith.andi %47, %49 : vector<16x16xi1>
    %51 = arith.andi %45, %50 : vector<16x16xi1>
    %c8_i32_27 = arith.constant 8 : i32
    %52 = vector.broadcast %c8_i32_27 : i32 to vector<16x16xi32>
    %53 = arith.cmpi sge, %38, %52 : vector<16x16xi32>
    %c16_i32 = arith.constant 16 : i32
    %54 = vector.broadcast %c16_i32 : i32 to vector<16x16xi32>
    %55 = arith.cmpi slt, %38, %54 : vector<16x16xi32>
    %56 = arith.andi %53, %55 : vector<16x16xi1>
    %c8_i32_28 = arith.constant 8 : i32
    %57 = vector.broadcast %c8_i32_28 : i32 to vector<16x16xi32>
    %58 = arith.cmpi sge, %39, %57 : vector<16x16xi32>
    %c16_i32_29 = arith.constant 16 : i32
    %59 = vector.broadcast %c16_i32_29 : i32 to vector<16x16xi32>
    %60 = arith.cmpi slt, %39, %59 : vector<16x16xi32>
    %61 = arith.andi %58, %60 : vector<16x16xi1>
    %62 = arith.andi %56, %61 : vector<16x16xi1>
    %63 = arith.ori %51, %62 : vector<16x16xi1>
    %64 = arith.andi %40, %63 : vector<16x16xi1>
    %65 = vector.shape_cast %64 : vector<16x16xi1> to vector<1x16x16xi1>
    %cst_30 = arith.constant -1.000000e+30 : f32
    %66 = vector.shape_cast %65 : vector<1x16x16xi1> to vector<1x16x16xi1>
    %67 = vector.broadcast %66 : vector<1x16x16xi1> to vector<4x16x16xi1>
    %68 = vector.broadcast %cst_30 : f32 to vector<4x16x16xf32>
    %69 = arith.select %67, %37, %68 : vector<4x16x16xi1>, vector<4x16x16xf32>
    %cst_31 = arith.constant dense<0xFF800000> : vector<4x16xf32>
    %70 = vector.multi_reduction <maximumf>, %69, %cst_31 [2] : vector<4x16x16xf32> to vector<4x16xf32>
    %71 = vector.shape_cast %70 : vector<4x16xf32> to vector<4x16x1xf32>
    %72 = vector.broadcast %71 : vector<4x16x1xf32> to vector<4x16x16xf32>
    %73 = arith.subf %69, %72 : vector<4x16x16xf32>
    %74 = math.exp %73 : vector<4x16x16xf32>
    %cst_32 = arith.constant dense<0.000000e+00> : vector<4x16xf32>
    %75 = vector.multi_reduction <add>, %74, %cst_32 [2] : vector<4x16x16xf32> to vector<4x16xf32>
    %76 = vector.shape_cast %75 : vector<4x16xf32> to vector<4x16x1xf32>
    %77 = vector.broadcast %76 : vector<4x16x1xf32> to vector<4x16x16xf32>
    %78 = arith.divf %74, %77 : vector<4x16x16xf32>
    "tpu.trace_start"() <{level = 10 : i32, message = "hqk,khd->qhd"}> : () -> ()
    %cst_33 = arith.constant dense<0.000000e+00> : vector<4x8x16xf32>
    %79 = tpu.matmul %34, %78, %cst_33 {dimension_numbers = #tpu.dot_dimension_numbers<[0], [2], [2], [1], [0, 1, 0, 2, 1, 1], [1], [0]>} : vector<16x4x8xf32>, vector<4x16x16xf32>, vector<4x8x16xf32> -> vector<4x8x16xf32>
    %80 = tpu.transpose %79, [2, 0, 1] : vector<4x8x16xf32> -> vector<16x4x8xf32>
    "tpu.trace_stop"() : () -> ()
    %81 = vector.shape_cast %80 : vector<16x4x8xf32> to vector<16x32xf32>
    %82 = arith.truncf %81 : vector<16x32xf32> to vector<16x32xbf16>
    %c0_34 = arith.constant 0 : index
    %c0_35 = arith.constant 0 : index
    %c0_36 = arith.constant 0 : index
    %83 = vector.load %arg4[%c0_34, %c0_35, %c0_36] : memref<1x32x128xbf16, #tpu.memory_space<vmem>>, vector<1x32x128xbf16>
    %84 = vector.shape_cast %83 : vector<1x32x128xbf16> to vector<32x128xbf16>
    %cst_37 = arith.constant dense<0.000000e+00> : vector<16x128xf32>
    %85 = tpu.matmul %82, %84, %cst_37 {dimension_numbers = #tpu.dot_dimension_numbers<[1], [0], [0], [1], [0, 0, 1, 1], [], []>} : vector<16x32xbf16>, vector<32x128xbf16>, vector<16x128xf32> -> vector<16x128xf32>
    %86 = vector.broadcast %6 : vector<1x128xf32> to vector<16x128xf32>
    %87 = arith.addf %85, %86 : vector<16x128xf32>
    %88 = arith.addf %22, %87 : vector<16x128xf32>
    %cst_38 = arith.constant dense<0.000000e+00> : vector<16xf32>
    %89 = vector.multi_reduction <add>, %88, %cst_38 [1] : vector<16x128xf32> to vector<16xf32>
    %90 = vector.shape_cast %89 : vector<16xf32> to vector<16x1xf32>
    %cst_39 = arith.constant 3.125000e-02 : f32
    %91 = vector.broadcast %cst_39 : f32 to vector<16x1xf32>
    %92 = arith.mulf %90, %91 : vector<16x1xf32>
    %93 = vector.broadcast %92 : vector<16x1xf32> to vector<16x128xf32>
    %94 = arith.subf %88, %93 : vector<16x128xf32>
    %cst_40 = arith.constant 0.000000e+00 : f32
    %95 = vector.shape_cast %2 : vector<1x128xi1> to vector<1x128xi1>
    %96 = vector.broadcast %95 : vector<1x128xi1> to vector<16x128xi1>
    %97 = vector.broadcast %cst_40 : f32 to vector<16x128xf32>
    %98 = arith.select %96, %94, %97 : vector<16x128xi1>, vector<16x128xf32>
    %99 = arith.mulf %98, %98 : vector<16x128xf32>
    %cst_41 = arith.constant dense<0.000000e+00> : vector<16xf32>
    %100 = vector.multi_reduction <add>, %99, %cst_41 [1] : vector<16x128xf32> to vector<16xf32>
    %101 = vector.shape_cast %100 : vector<16xf32> to vector<16x1xf32>
    %cst_42 = arith.constant 3.125000e-02 : f32
    %102 = vector.broadcast %cst_42 : f32 to vector<16x1xf32>
    %103 = arith.mulf %101, %102 : vector<16x1xf32>
    %cst_43 = arith.constant 9.99999974E-6 : f32
    %104 = vector.broadcast %cst_43 : f32 to vector<16x1xf32>
    %105 = arith.addf %103, %104 : vector<16x1xf32>
    %106 = math.rsqrt %105 : vector<16x1xf32>
    %107 = vector.broadcast %106 : vector<16x1xf32> to vector<16x128xf32>
    %108 = arith.mulf %98, %107 : vector<16x128xf32>
    %109 = vector.broadcast %8 : vector<1x128xf32> to vector<16x128xf32>
    %110 = arith.mulf %108, %109 : vector<16x128xf32>
    %111 = vector.broadcast %10 : vector<1x128xf32> to vector<16x128xf32>
    %112 = arith.addf %110, %111 : vector<16x128xf32>
    %113 = arith.truncf %112 : vector<16x128xf32> to vector<16x128xbf16>
    %c0_44 = arith.constant 0 : index
    %c0_45 = arith.constant 0 : index
    %c0_46 = arith.constant 0 : index
    %114 = vector.load %arg5[%c0_44, %c0_45, %c0_46] : memref<1x128x128xbf16, #tpu.memory_space<vmem>>, vector<1x128x128xbf16>
    %115 = vector.shape_cast %114 : vector<1x128x128xbf16> to vector<128x128xbf16>
    %cst_47 = arith.constant dense<0.000000e+00> : vector<16x128xf32>
    %116 = tpu.matmul %113, %115, %cst_47 {dimension_numbers = #tpu.dot_dimension_numbers<[1], [0], [0], [1], [0, 0, 1, 1], [], []>} : vector<16x128xbf16>, vector<128x128xbf16>, vector<16x128xf32> -> vector<16x128xf32>
    %117 = vector.broadcast %12 : vector<1x128xf32> to vector<16x128xf32>
    %118 = arith.addf %116, %117 : vector<16x128xf32>
    %cst_48 = arith.constant 0.000000e+00 : f32
    %119 = vector.broadcast %cst_48 : f32 to vector<16x128xf32>
    %120 = arith.maximumf %118, %119 : vector<16x128xf32>
    %121 = arith.truncf %120 : vector<16x128xf32> to vector<16x128xbf16>
    %c0_49 = arith.constant 0 : index
    %c0_50 = arith.constant 0 : index
    %c0_51 = arith.constant 0 : index
    %122 = vector.load %arg6[%c0_49, %c0_50, %c0_51] : memref<1x128x128xbf16, #tpu.memory_space<vmem>>, vector<1x128x128xbf16>
    %123 = vector.shape_cast %122 : vector<1x128x128xbf16> to vector<128x128xbf16>
    %cst_52 = arith.constant dense<0.000000e+00> : vector<16x128xf32>
    %124 = tpu.matmul %121, %123, %cst_52 {dimension_numbers = #tpu.dot_dimension_numbers<[1], [0], [0], [1], [0, 0, 1, 1], [], []>} : vector<16x128xbf16>, vector<128x128xbf16>, vector<16x128xf32> -> vector<16x128xf32>
    %125 = vector.broadcast %14 : vector<1x128xf32> to vector<16x128xf32>
    %126 = arith.addf %124, %125 : vector<16x128xf32>
    %127 = arith.addf %112, %126 : vector<16x128xf32>
    %cst_53 = arith.constant dense<0.000000e+00> : vector<16xf32>
    %128 = vector.multi_reduction <add>, %127, %cst_53 [1] : vector<16x128xf32> to vector<16xf32>
    %129 = vector.shape_cast %128 : vector<16xf32> to vector<16x1xf32>
    %cst_54 = arith.constant 3.125000e-02 : f32
    %130 = vector.broadcast %cst_54 : f32 to vector<16x1xf32>
    %131 = arith.mulf %129, %130 : vector<16x1xf32>
    %132 = vector.broadcast %131 : vector<16x1xf32> to vector<16x128xf32>
    %133 = arith.subf %127, %132 : vector<16x128xf32>
    %cst_55 = arith.constant 0.000000e+00 : f32
    %134 = vector.shape_cast %2 : vector<1x128xi1> to vector<1x128xi1>
    %135 = vector.broadcast %134 : vector<1x128xi1> to vector<16x128xi1>
    %136 = vector.broadcast %cst_55 : f32 to vector<16x128xf32>
    %137 = arith.select %135, %133, %136 : vector<16x128xi1>, vector<16x128xf32>
    %138 = arith.mulf %137, %137 : vector<16x128xf32>
    %cst_56 = arith.constant dense<0.000000e+00> : vector<16xf32>
    %139 = vector.multi_reduction <add>, %138, %cst_56 [1] : vector<16x128xf32> to vector<16xf32>
    %140 = vector.shape_cast %139 : vector<16xf32> to vector<16x1xf32>
    %cst_57 = arith.constant 3.125000e-02 : f32
    %141 = vector.broadcast %cst_57 : f32 to vector<16x1xf32>
    %142 = arith.mulf %140, %141 : vector<16x1xf32>
    %cst_58 = arith.constant 9.99999974E-6 : f32
    %143 = vector.broadcast %cst_58 : f32 to vector<16x1xf32>
    %144 = arith.addf %142, %143 : vector<16x1xf32>
    %145 = math.rsqrt %144 : vector<16x1xf32>
    %146 = vector.broadcast %145 : vector<16x1xf32> to vector<16x128xf32>
    %147 = arith.mulf %137, %146 : vector<16x128xf32>
    %148 = vector.broadcast %16 : vector<1x128xf32> to vector<16x128xf32>
    %149 = arith.mulf %147, %148 : vector<16x128xf32>
    %150 = vector.broadcast %18 : vector<1x128xf32> to vector<16x128xf32>
    %151 = arith.addf %149, %150 : vector<16x128xf32>
    %c0_59 = arith.constant 0 : index
    %c0_60 = arith.constant 0 : index
    %152 = vector.load %arg10[%c0_59, %c0_60] : memref<16x128xf32, #tpu.memory_space<vmem>>, vector<16x128xf32>
    tpu.vector_store %arg10[%c0_59, %c0_60], %151 {strides = array<i32>} : memref<16x128xf32, #tpu.memory_space<vmem>>, vector<16x128xf32>,
    %c1_i32 = arith.constant 1 : i32
    %153 = arith.cmpi eq, %arg1, %c1_i32 : i32
    %154 = arith.extui %153 : i1 to i32
    %c0_i32_61 = arith.constant 0 : i32
    %155 = arith.cmpi ne, %154, %c0_i32_61 : i32
    scf.if %155 {
      %c0_62 = arith.constant 0 : index
      %c0_63 = arith.constant 0 : index
      %156 = vector.load %arg8[%c0_62, %c0_63] : memref<1x256xf32, #tpu.memory_space<vmem>>, vector<1x128xf32>
      %c0_64 = arith.constant 0 : index
      %c128 = arith.constant 128 : index
      %157 = vector.load %arg8[%c0_64, %c128] : memref<1x256xf32, #tpu.memory_space<vmem>>, vector<1x128xf32>
      %cst_65 = arith.constant dense<0.000000e+00> : vector<16xf32>
      %158 = vector.multi_reduction <add>, %151, %cst_65 [1] : vector<16x128xf32> to vector<16xf32>
      %159 = vector.shape_cast %158 : vector<16xf32> to vector<16x1xf32>
      %cst_66 = arith.constant 3.125000e-02 : f32
      %160 = vector.broadcast %cst_66 : f32 to vector<16x1xf32>
      %161 = arith.mulf %159, %160 : vector<16x1xf32>
      %162 = vector.broadcast %161 : vector<16x1xf32> to vector<16x128xf32>
      %163 = arith.subf %151, %162 : vector<16x128xf32>
      %cst_67 = arith.constant 0.000000e+00 : f32
      %164 = vector.shape_cast %2 : vector<1x128xi1> to vector<1x128xi1>
      %165 = vector.broadcast %164 : vector<1x128xi1> to vector<16x128xi1>
      %166 = vector.broadcast %cst_67 : f32 to vector<16x128xf32>
      %167 = arith.select %165, %163, %166 : vector<16x128xi1>, vector<16x128xf32>
      %168 = arith.mulf %167, %167 : vector<16x128xf32>
      %cst_68 = arith.constant dense<0.000000e+00> : vector<16xf32>
      %169 = vector.multi_reduction <add>, %168, %cst_68 [1] : vector<16x128xf32> to vector<16xf32>
      %170 = vector.shape_cast %169 : vector<16xf32> to vector<16x1xf32>
      %cst_69 = arith.constant 3.125000e-02 : f32
      %171 = vector.broadcast %cst_69 : f32 to vector<16x1xf32>
      %172 = arith.mulf %170, %171 : vector<16x1xf32>
      %cst_70 = arith.constant 9.99999974E-6 : f32
      %173 = vector.broadcast %cst_70 : f32 to vector<16x1xf32>
      %174 = arith.addf %172, %173 : vector<16x1xf32>
      %175 = math.rsqrt %174 : vector<16x1xf32>
      %176 = vector.broadcast %175 : vector<16x1xf32> to vector<16x128xf32>
      %177 = arith.mulf %167, %176 : vector<16x128xf32>
      %178 = vector.broadcast %156 : vector<1x128xf32> to vector<16x128xf32>
      %179 = arith.mulf %177, %178 : vector<16x128xf32>
      %180 = vector.broadcast %157 : vector<1x128xf32> to vector<16x128xf32>
      %181 = arith.addf %179, %180 : vector<16x128xf32>
      %c0_71 = arith.constant 0 : index
      %c0_72 = arith.constant 0 : index
      %c0_73 = arith.constant 0 : index
      %182 = vector.load %arg9[%c0_71, %c0_72, %c0_73] : memref<1x16x128xf32, #tpu.memory_space<vmem>>, vector<1x16x128xf32>
      %183 = vector.shape_cast %182 : vector<1x16x128xf32> to vector<16x128xf32>
      %184 = vector.shape_cast %181 : vector<16x128xf32> to vector<1x16x128xf32>
      tpu.vector_store %arg9[%c0_71, %c0_72, %c0_73], %184 {strides = array<i32>} : memref<1x16x128xf32, #tpu.memory_space<vmem>>, vector<1x16x128xf32>,
    } else {
    }
    return
  }
  func.func @transform_0(%arg0: i32, %arg1: i32) -> (i32, i32, i32) {
    %c0_i32 = arith.constant 0 : i32
    %c0_i32_0 = arith.constant 0 : i32
    %c0_i32_1 = arith.constant 0 : i32
    return %arg0, %c0_i32, %c0_i32_0 : i32, i32, i32
  }
  func.func @transform_1(%arg0: i32, %arg1: i32) -> (i32, i32, i32) {
    %c0_i32 = arith.constant 0 : i32
    %c0_i32_0 = arith.constant 0 : i32
    %c0_i32_1 = arith.constant 0 : i32
    return %arg1, %c0_i32, %c0_i32_0 : i32, i32, i32
  }
  func.func @transform_2(%arg0: i32, %arg1: i32) -> (i32, i32, i32) {
    %c0_i32 = arith.constant 0 : i32
    %c0_i32_0 = arith.constant 0 : i32
    %c0_i32_1 = arith.constant 0 : i32
    return %arg1, %c0_i32, %c0_i32_0 : i32, i32, i32
  }
  func.func @transform_3(%arg0: i32, %arg1: i32) -> (i32, i32, i32) {
    %c0_i32 = arith.constant 0 : i32
    %c0_i32_0 = arith.constant 0 : i32
    %c0_i32_1 = arith.constant 0 : i32
    return %arg1, %c0_i32, %c0_i32_0 : i32, i32, i32
  }
  func.func @transform_4(%arg0: i32, %arg1: i32) -> (i32, i32, i32) {
    %c0_i32 = arith.constant 0 : i32
    %c0_i32_0 = arith.constant 0 : i32
    %c0_i32_1 = arith.constant 0 : i32
    return %arg1, %c0_i32, %c0_i32_0 : i32, i32, i32
  }
  func.func @transform_5(%arg0: i32, %arg1: i32) -> (i32, i32, i32) {
    %c0_i32 = arith.constant 0 : i32
    %c0_i32_0 = arith.constant 0 : i32
    %c0_i32_1 = arith.constant 0 : i32
    return %arg1, %c0_i32, %c0_i32_0 : i32, i32, i32
  }
  func.func @transform_6(%arg0: i32, %arg1: i32) -> (i32, i32) {
    %c0_i32 = arith.constant 0 : i32
    %c0_i32_0 = arith.constant 0 : i32
    %c0_i32_1 = arith.constant 0 : i32
    return %c0_i32, %c0_i32_0 : i32, i32
  }
  func.func @transform_7(%arg0: i32, %arg1: i32) -> (i32, i32, i32) {
    %c0_i32 = arith.constant 0 : i32
    %c0_i32_0 = arith.constant 0 : i32
    %c0_i32_1 = arith.constant 0 : i32
    return %arg0, %c0_i32, %c0_i32_0 : i32, i32, i32
  }
}

module attributes {stable_mosaic.version = 11 : i64} {
  func.func @_head_kernel(%arg0: i32, %arg1: memref<16x128xf32, #tpu.memory_space<vmem>>, %arg2: memref<128x128xbf16, #tpu.memory_space<vmem>>, %arg3: memref<1x128xf32, #tpu.memory_space<vmem>>, %arg4: memref<16x128xf32, #tpu.memory_space<vmem>>) attributes {dimension_semantics = [#tpu.dimension_semantics<parallel>], iteration_bounds = array<i64: 1>, scalar_prefetch = 0 : i64, scratch_operands = 0 : i64, tpu.core_type = #tpu.core_type<tc>, window_params = [{pipeline_mode = #tpu.pipeline_mode<synchronous>, transform_indices = @transform_0, window_bounds = array<i64: 16, 128>}, {transform_indices = @transform_1, window_bounds = array<i64: 128, 128>}, {transform_indices = @transform_2, window_bounds = array<i64: 1, 128>}, {transform_indices = @transform_3, window_bounds = array<i64: 16, 128>}]} {
    %c0 = arith.constant 0 : index
    %c0_0 = arith.constant 0 : index
    %0 = vector.load %arg1[%c0, %c0_0] : memref<16x128xf32, #tpu.memory_space<vmem>>, vector<16x128xf32>
    %1 = arith.truncf %0 : vector<16x128xf32> to vector<16x128xbf16>
    %c0_1 = arith.constant 0 : index
    %c0_2 = arith.constant 0 : index
    %2 = vector.load %arg2[%c0_1, %c0_2] : memref<128x128xbf16, #tpu.memory_space<vmem>>, vector<128x128xbf16>
    %cst = arith.constant dense<0.000000e+00> : vector<16x128xf32>
    %3 = tpu.matmul %1, %2, %cst {dimension_numbers = #tpu.dot_dimension_numbers<[1], [0], [0], [1], [0, 0, 1, 1], [], []>} : vector<16x128xbf16>, vector<128x128xbf16>, vector<16x128xf32> -> vector<16x128xf32>
    %c0_3 = arith.constant 0 : index
    %c0_4 = arith.constant 0 : index
    %4 = vector.load %arg3[%c0_3, %c0_4] : memref<1x128xf32, #tpu.memory_space<vmem>>, vector<1x128xf32>
    %5 = vector.broadcast %4 : vector<1x128xf32> to vector<16x128xf32>
    %6 = arith.addf %3, %5 : vector<16x128xf32>
    %c0_5 = arith.constant 0 : index
    %c0_6 = arith.constant 0 : index
    %7 = vector.load %arg4[%c0_5, %c0_6] : memref<16x128xf32, #tpu.memory_space<vmem>>, vector<16x128xf32>
    tpu.vector_store %arg4[%c0_5, %c0_6], %6 {strides = array<i32>} : memref<16x128xf32, #tpu.memory_space<vmem>>, vector<16x128xf32>,
    return
  }
  func.func @transform_0(%arg0: i32) -> (i32, i32) {
    %c0_i32 = arith.constant 0 : i32
    %c0_i32_0 = arith.constant 0 : i32
    %c0_i32_1 = arith.constant 0 : i32
    return %c0_i32, %c0_i32_0 : i32, i32
  }
  func.func @transform_1(%arg0: i32) -> (i32, i32) {
    %c0_i32 = arith.constant 0 : i32
    %c0_i32_0 = arith.constant 0 : i32
    return %c0_i32, %arg0 : i32, i32
  }
  func.func @transform_2(%arg0: i32) -> (i32, i32) {
    %c0_i32 = arith.constant 0 : i32
    %c0_i32_0 = arith.constant 0 : i32
    return %c0_i32, %arg0 : i32, i32
  }
  func.func @transform_3(%arg0: i32) -> (i32, i32) {
    %c0_i32 = arith.constant 0 : i32
    %c0_i32_0 = arith.constant 0 : i32
    return %c0_i32, %arg0 : i32, i32
  }
}

</mosaic_0001>

<llo_original>
// kernel: cybersecurity_transformer_forward.3
$region0: #{cybersecurity_transformer_forward.3}
  #allocation0 [shape = 'u32[]', space=smem, size = 0x4, offset = 0x4, fixed_abs, tag = 'smem constant byte address 0x4 - core index']
  #allocation1 [shape = 'u32[144,128]{1,0:T(1,128)}', space=vmem, size = 0x12000, scoped, tag = 'internal scratch']
  %s0 = inlined_call_operand.vmem [shape: f32[16,128], index: 0, kind: input, shape index: {}]
  %s1 = inlined_call_operand.vmem [shape: bf16[128,128], index: 1, kind: input, shape index: {}]
  %s2 = inlined_call_operand.vmem [shape: f32[1,128], index: 2, kind: input, shape index: {}]
  %s3 = inlined_call_operand.hbm [shape: f32[16,128], index: 3, kind: output, shape index: {}]
  %s4 = sld [smem:[#allocation0]]
  $region22: #{cybersecurity_transformer_forward.3} parent=0
    _
  %s6 = ssub.s32 1, %s4
  %s7 = scalar_select 0, %s6, %s4
  $region1: #{cybersecurity_transformer_forward.3} parent=0
    #allocation2 [shape = 'u8[8192]{0}', space=vmem, size = 0x2000, scoped, tag = 'output window, operand 0, single buffered']
    #allocation3 [shape = 's32[1]{0}', space=sflag, size = 0x4, scoped, tag = 'scoped memory for cybersecurity_transformer_forward.3']
    %8 = vsyncpa [#allocation3], 0
    // Predicated region
    $region2: #{cybersecurity_transformer_forward.3} parent=1 // pred_check
      _
    $region3: #{cybersecurity_transformer_forward.3} parent=1 // pred_check_branch
      %10 = sbr.rel (0) target = $region5
    $region4: #{cybersecurity_transformer_forward.3} parent=1 // pred_region
      _
    $region5: #{cybersecurity_transformer_forward.3} parent=1 // pred_fallthru
      _
    // Predicated region
    $region6: #{cybersecurity_transformer_forward.3} parent=1 // pred_check
      _
    $region7: #{cybersecurity_transformer_forward.3} parent=1 // pred_check_branch
      %12 = sbr.rel (0) target = $region9
    $region8: #{cybersecurity_transformer_forward.3} parent=1 // pred_region
      _
    $region9: #{cybersecurity_transformer_forward.3} parent=1 // pred_fallthru
      _
    // Predicated region
    $region10: #{cybersecurity_transformer_forward.3} parent=1 // pred_check
      _
    $region11: #{cybersecurity_transformer_forward.3} parent=1 // pred_check_branch
      %14 = sbr.rel (0) target = $region13
    $region12: #{cybersecurity_transformer_forward.3} parent=1 // pred_region
      _
    $region13: #{cybersecurity_transformer_forward.3} parent=1 // pred_fallthru
      _
    %v16 = vld [vmem:[%s0] sm:$0xff]
    %v17 = vld [vmem:[%s0 + $0x8] sm:$0xff]
    %v18 = vpack.c.bf16 %v17, %v16
    %v19 = vld [vmem:[%s1] sm:$0xf]
    %v20 = vld [vmem:[%s1 + $0x4] sm:$0xf]
    %v21 = vld [vmem:[%s1 + $0x8] sm:$0xf]
    %v22 = vld [vmem:[%s1 + $0xc] sm:$0xf]
    %v23 = vld [vmem:[%s1 + $0x10] sm:$0xf]
    %v24 = vld [vmem:[%s1 + $0x14] sm:$0xf]
    %v25 = vld [vmem:[%s1 + $0x18] sm:$0xf]
    %v26 = vld [vmem:[%s1 + $0x1c] sm:$0xf]
    %v27 = vld [vmem:[%s1 + $0x20] sm:$0xf]
    %v28 = vld [vmem:[%s1 + $0x24] sm:$0xf]
    %v29 = vld [vmem:[%s1 + $0x28] sm:$0xf]
    %v30 = vld [vmem:[%s1 + $0x2c] sm:$0xf]
    %v31 = vld [vmem:[%s1 + $0x30] sm:$0xf]
    %v32 = vld [vmem:[%s1 + $0x34] sm:$0xf]
    %v33 = vld [vmem:[%s1 + $0x38] sm:$0xf]
    %v34 = vld [vmem:[%s1 + $0x3c] sm:$0xf]
    %v35 = vld [vmem:[%s2] sm:$0x1]
    %v37 = vlaneseq
    %v38 = vshrl.u32 %v37, 7
    %v39 = vsub.s32 0, %v38
    %v40 = vrot.slane %v35, %v39
    %v58 = vunpack.c.l.b16 %v19
    %v59 = vunpack.c.l.b16 %v20
    %v60 = vunpack.c.l.b16 %v21
    %v61 = vunpack.c.l.b16 %v22
    %v62 = vunpack.c.l.b16 %v23
    %v63 = vunpack.c.l.b16 %v24
    %v64 = vunpack.c.l.b16 %v25
    %v65 = vunpack.c.l.b16 %v26
    %v66 = vunpack.c.l.b16 %v27
    %v67 = vunpack.c.l.b16 %v28
    %v68 = vunpack.c.l.b16 %v29
    %v69 = vunpack.c.l.b16 %v30
    %v70 = vunpack.c.l.b16 %v31
    %v71 = vunpack.c.l.b16 %v32
    %v72 = vunpack.c.l.b16 %v33
    %v73 = vunpack.c.l.b16 %v34
    %v74 = vpack.c.b16 %v59, %v58
    %v75 = vpack.c.b16 %v61, %v60
    %v76 = vpack.c.b16 %v63, %v62
    %v77 = vpack.c.b16 %v65, %v64
    %v78 = vpack.c.b16 %v67, %v66
    %v79 = vpack.c.b16 %v69, %v68
    %v80 = vpack.c.b16 %v71, %v70
    %v81 = vpack.c.b16 %v73, %v72
    %90 = vmatprep.subr.bf16.mxu0 0
    %91 = vmatpush1.bf16.msra.mxu0 %v74
    %92 = vmatprep.subr.bf16.mxu0 0
    %93 = vmatpush1.bf16.msra.mxu0 %v75
    %94 = vmatprep.subr.bf16.mxu0 0
    %95 = vmatpush1.bf16.msra.mxu0 %v76
    %96 = vmatprep.subr.bf16.mxu0 0
    %97 = vmatpush1.bf16.msra.mxu0 %v77
    %98 = vmatprep.subr.bf16.mxu0 0
    %99 = vmatpush1.bf16.msra.mxu0 %v78
    %100 = vmatprep.subr.bf16.mxu0 0
    %101 = vmatpush1.bf16.msra.mxu0 %v79
    %102 = vmatprep.subr.bf16.mxu0 0
    %103 = vmatpush1.bf16.msra.mxu0 %v80
    %104 = vmatprep.subr.bf16.mxu0 0
    %105 = vmatpush1.bf16.msra.mxu0 %v81
    %106 = vmatprep.subr.bf16.mxu0 0
    %107 = vmatpush1.bf16.msra.mxu0 0
    %108 = vmatprep.subr.bf16.mxu0 0
    %109 = vmatpush1.bf16.msra.mxu0 0
    %110 = vmatprep.subr.bf16.mxu0 0
    %111 = vmatpush1.bf16.msra.mxu0 0
    %112 = vmatprep.subr.bf16.mxu0 0
    %113 = vmatpush1.bf16.msra.mxu0 0
    %114 = vmatprep.subr.bf16.mxu0 0
    %115 = vmatpush1.bf16.msra.mxu0 0
    %116 = vmatprep.subr.bf16.mxu0 0
    %117 = vmatpush1.bf16.msra.mxu0 0
    %118 = vmatprep.subr.bf16.mxu0 0
    %119 = vmatpush1.bf16.msra.mxu0 0
    %120 = vmatprep.subr.bf16.mxu0 0
    %121 = vmatpush1.bf16.msra.mxu0 0
    %122 = vmatprep.mubr.bf16.mxu0 0
    %123 = vmatmul.mubr.bf16.gmra.mrb[0].mxu0 %v18
    %v124 = vpop.f32.mrb[0].mxu0
    %v125 = vadd.f32 %v40, %v124
    %v126 = vpop.f32.mrb[0].mxu0
    %v127 = vpop.f32.mrb[0].mxu0
    %v128 = vadd.f32 %v40, %v127
    %v129 = vpop.f32.mrb[0].mxu0
    %130 = vdwg.mxu0
    %131 = vst [vmem:[#allocation2] sm:$0xff] %v125
    %132 = vst [vmem:[#allocation2 + $0x8] sm:$0xff] %v128
    // Predicated region
    $region14: #{cybersecurity_transformer_forward.3} parent=1 // pred_check
      _
    $region15: #{cybersecurity_transformer_forward.3} parent=1 // pred_check_branch
      %134 = sbr.rel (0) target = $region17
    $region16: #{cybersecurity_transformer_forward.3} parent=1 // pred_region
      %s136 = ssub.s32 256, 256
      %137 = vsyncadd [#allocation3], %s136
      %s138 = sshll.u32 [#allocation2], 4
      %s139 = int_to_ptr.vmem [resolvable:$true] %s138
      %144 = dma.vmem_to_hbm [thread:$0]  %s139, 256, %s3, [#allocation3], 128, 128, 8
    $region17: #{cybersecurity_transformer_forward.3} parent=1 // pred_fallthru
      _
    // Predicated region
    $region18: #{cybersecurity_transformer_forward.3} parent=1 // pred_check
      _
    $region19: #{cybersecurity_transformer_forward.3} parent=1 // pred_check_branch
      %146 = sbr.rel (0) target = $region21
    $region20: #{cybersecurity_transformer_forward.3} parent=1 // pred_region
      %147 = dma.done [#allocation3], 256
    $region21: #{cybersecurity_transformer_forward.3} parent=1 // pred_fallthru
      _
    %148 = vsyncpa [#allocation3], 1

// kernel: cybersecurity_transformer_forward.2
$region0: #{cybersecurity_transformer_forward.2}
  #allocation0 [shape = 'u32[]', space=smem, size = 0x4, offset = 0x4, fixed_abs, tag = 'smem constant byte address 0x4 - core index']
  #allocation1 [shape = 'u32[144,128]{1,0:T(1,128)}', space=vmem, size = 0x12000, scoped, tag = 'internal scratch']
  #allocation2 [shape = 'f32[16,128]{1,0:T(8,128)}', space=vmem, size = 0x2000, scoped, tag = 'scratch operand']
  %s0 = inlined_call_operand.vmem [shape: f32[1,16,128], index: 0, kind: input, shape index: {}]
  %s1 = inlined_call_operand.hbm [shape: bf16[2,128,384], index: 1, kind: input, shape index: {}]
  %s2 = inlined_call_operand.vmem [shape: bf16[2,32,128], index: 2, kind: input, shape index: {}]
  %s3 = inlined_call_operand.vmem [shape: bf16[2,128,128], index: 3, kind: input, shape index: {}]
  %s4 = inlined_call_operand.hbm [shape: bf16[2,128,128], index: 4, kind: input, shape index: {}]
  %s5 = inlined_call_operand.vmem [shape: f32[2,1,1280], index: 5, kind: input, shape index: {}]
  %s6 = inlined_call_operand.vmem [shape: f32[1,256], index: 6, kind: input, shape index: {}]
  %s7 = inlined_call_operand.vmem [shape: f32[1,16,128], index: 7, kind: output, shape index: {}]
  %s8 = sld [smem:[#allocation0]]
  $region77: #{cybersecurity_transformer_forward.2} parent=0
    _
  %s10 = ssub.s32 1, %s8
  %s11 = scalar_select 0, %s10, %s8
  $region1: #{cybersecurity_transformer_forward.2} parent=0
    #allocation3 [shape = 'u8[196608]{0}', space=vmem, size = 0x30000, scoped, tag = 'input window, operand 1']
    #allocation4 [shape = 's32[2]{0}', space=sflag, size = 0x8, scoped, tag = 'scoped memory for cybersecurity_transformer_forward.2']
    #allocation5 [shape = 'u8[65536]{0}', space=vmem, size = 0x10000, scoped, tag = 'input window, operand 4']
    #allocation6 [shape = 's32[2]{0}', space=sflag, size = 0x8, scoped, tag = 'scoped memory for cybersecurity_transformer_forward.2']
    %12 = vsyncpa [#allocation4], 0
    %s13 = scalar_lea.sflag [#allocation4], 1
    %14 = vsyncpa %s13, 0
    %15 = vsyncpa [#allocation6], 0
    %s16 = scalar_lea.sflag [#allocation6], 1
    %17 = vsyncpa %s16, 0
    loop: start=0, step=1, limit=4
    $region2: #{cybersecurity_transformer_forward.2} parent=1 // loop_pre_header
      _
    $region3: #{cybersecurity_transformer_forward.2} parent=1 // loop_header
      %s19 = sphi 0, %s23
      %p20 = scmp.ge.s32.totalorder %s19, 4
      %s26 = sphi 0, %s38
      %s27 = sphi 0, %s34
      %s28 = sphi 0, %s26
      %s29 = sphi 0, %s27
      %s30 = sphi 0, %s28
      %s31 = sphi 0, %s29
      %s41 = sphi 0, %s43
      %s44 = sphi 0, %s41
      %s45 = sphi 0, %s44
      %s61 = sphi 0, %s45
      %s67 = sphi 0, %s69
      %s70 = sphi 0, %s67
      %s71 = sphi 0, %s70
      %s87 = sphi 0, %s71
      %s93 = sphi 0, %s95
      %s96 = sphi 0, %s93
      %s97 = sphi 0, %s96
      %s113 = sphi 0, %s97
      %s119 = sphi 0, %s121
      %s122 = sphi 0, %s119
      %s123 = sphi 0, %s122
      %s139 = sphi 0, %s123
      %s145 = sphi 0, %s147
      %s148 = sphi 0, %s145
      %s149 = sphi 0, %s148
      %s165 = sphi 0, %s149
      %s171 = sphi 0, %s173
      %s174 = sphi 0, %s171
      %s175 = sphi 0, %s174
      %s191 = sphi 0, %s175
      %s195 = sphi 0, %s195
      %s197 = sphi 0, %s195
      %s198 = sphi 0, %s197
      %s212 = sphi 0, %s198
      %s218 = sphi 0, %s220
      %s221 = sphi 0, %s218
      %s222 = sphi 0, %s221
      %s238 = sphi 0, %s222
    $region4: #{cybersecurity_transformer_forward.2} parent=1 // loop_header_branch
      %22 = sbr.rel (%p20) target = $region8
    $region5: #{cybersecurity_transformer_forward.2} parent=1 // loop_body
      %s24 = ssub.s32 %s19, 1
      %s25 = ssub.s32 %s19, 2
      %s32 = sadd.s32 1, %s27
      %p33 = scmp.ge.s32.totalorder %s32, 2
      %s34 = scalar_select %p33, 0, %s32
      %s35 = sadd.s32 1, %s26
      %s36 = scalar_select %p33, %s35, %s26
      %p37 = scmp.ge.s32.totalorder %s36, 1
      %s38 = scalar_select %p37, 0, %s36
      %s39 = ssub.s32 %s26, %s38
      %p40 = scmp.eq.s32.totalorder %s39, 0
      %s42 = sadd.s32 %s41, 1
      %s43 = scalar_select %p40, %s41, %s42
      %p46 = pneg %p40
      %p47 = scmp.eq.s32.totalorder %s19, 1
      %p48 = por %p46, %p47
      %p49 = scmp.ne.s32.totalorder %s41, %s44
      %p50 = scmp.eq.s32.totalorder %s19, 0
      %p51 = por %p49, %p50
      %p52 = scmp.ne.s32.totalorder %s41, %s44
      %p53 = scmp.eq.s32.totalorder %s24, 1
      %p54 = por %p52, %p53
      %p55 = scmp.ne.s32.totalorder %s44, %s45
      %p56 = scmp.eq.s32.totalorder %s24, 0
      %p57 = por %p55, %p56
      %p58 = scmp.ne.s32.totalorder %s44, %s45
      %p59 = scmp.eq.s32.totalorder %s25, 1
      %p60 = por %p58, %p59
      %p62 = scmp.ne.s32.totalorder %s45, %s61
      %p63 = scmp.eq.s32.totalorder %s25, 0
      %p64 = por %p62, %p63
      %s65 = ssub.s32 %s27, %s34
      %p66 = scmp.eq.s32.totalorder %s65, 0
      %s68 = sadd.s32 %s67, 1
      %s69 = scalar_select %p66, %s67, %s68
      %p72 = pneg %p66
      %p73 = scmp.eq.s32.totalorder %s19, 1
      %p74 = por %p72, %p73
      %p75 = scmp.ne.s32.totalorder %s67, %s70
      %p76 = scmp.eq.s32.totalorder %s19, 0
      %p77 = por %p75, %p76
      %p78 = scmp.ne.s32.totalorder %s67, %s70
      %p79 = scmp.eq.s32.totalorder %s24, 1
      %p80 = por %p78, %p79
      %p81 = scmp.ne.s32.totalorder %s70, %s71
      %p82 = scmp.eq.s32.totalorder %s24, 0
      %p83 = por %p81, %p82
      %p84 = scmp.ne.s32.totalorder %s70, %s71
      %p85 = scmp.eq.s32.totalorder %s25, 1
      %p86 = por %p84, %p85
      %p88 = scmp.ne.s32.totalorder %s71, %s87
      %p89 = scmp.eq.s32.totalorder %s25, 0
      %p90 = por %p88, %p89
      %s91 = ssub.s32 %s27, %s34
      %p92 = scmp.eq.s32.totalorder %s91, 0
      %s94 = sadd.s32 %s93, 1
      %s95 = scalar_select %p92, %s93, %s94
      %p98 = pneg %p92
      %p99 = scmp.eq.s32.totalorder %s19, 1
      %p100 = por %p98, %p99
      %p101 = scmp.ne.s32.totalorder %s93, %s96
      %p102 = scmp.eq.s32.totalorder %s19, 0
      %p103 = por %p101, %p102
      %p104 = scmp.ne.s32.totalorder %s93, %s96
      %p105 = scmp.eq.s32.totalorder %s24, 1
      %p106 = por %p104, %p105
      %p107 = scmp.ne.s32.totalorder %s96, %s97
      %p108 = scmp.eq.s32.totalorder %s24, 0
      %p109 = por %p107, %p108
      %p110 = scmp.ne.s32.totalorder %s96, %s97
      %p111 = scmp.eq.s32.totalorder %s25, 1
      %p112 = por %p110, %p111
      %p114 = scmp.ne.s32.totalorder %s97, %s113
      %p115 = scmp.eq.s32.totalorder %s25, 0
      %p116 = por %p114, %p115
      %s117 = ssub.s32 %s27, %s34
      %p118 = scmp.eq.s32.totalorder %s117, 0
      %s120 = sadd.s32 %s119, 1
      %s121 = scalar_select %p118, %s119, %s120
      %p124 = pneg %p118
      %p125 = scmp.eq.s32.totalorder %s19, 1
      %p126 = por %p124, %p125
      %p127 = scmp.ne.s32.totalorder %s119, %s122
      %p128 = scmp.eq.s32.totalorder %s19, 0
      %p129 = por %p127, %p128
      %p130 = scmp.ne.s32.totalorder %s119, %s122
      %p131 = scmp.eq.s32.totalorder %s24, 1
      %p132 = por %p130, %p131
      %p133 = scmp.ne.s32.totalorder %s122, %s123
      %p134 = scmp.eq.s32.totalorder %s24, 0
      %p135 = por %p133, %p134
      %p136 = scmp.ne.s32.totalorder %s122, %s123
      %p137 = scmp.eq.s32.totalorder %s25, 1
      %p138 = por %p136, %p137
      %p140 = scmp.ne.s32.totalorder %s123, %s139
      %p141 = scmp.eq.s32.totalorder %s25, 0
      %p142 = por %p140, %p141
      %s143 = ssub.s32 %s27, %s34
      %p144 = scmp.eq.s32.totalorder %s143, 0
      %s146 = sadd.s32 %s145, 1
      %s147 = scalar_select %p144, %s145, %s146
      %p150 = pneg %p144
      %p151 = scmp.eq.s32.totalorder %s19, 1
      %p152 = por %p150, %p151
      %p153 = scmp.ne.s32.totalorder %s145, %s148
      %p154 = scmp.eq.s32.totalorder %s19, 0
      %p155 = por %p153, %p154
      %p156 = scmp.ne.s32.totalorder %s145, %s148
      %p157 = scmp.eq.s32.totalorder %s24, 1
      %p158 = por %p156, %p157
      %p159 = scmp.ne.s32.totalorder %s148, %s149
      %p160 = scmp.eq.s32.totalorder %s24, 0
      %p161 = por %p159, %p160
      %p162 = scmp.ne.s32.totalorder %s148, %s149
      %p163 = scmp.eq.s32.totalorder %s25, 1
      %p164 = por %p162, %p163
      %p166 = scmp.ne.s32.totalorder %s149, %s165
      %p167 = scmp.eq.s32.totalorder %s25, 0
      %p168 = por %p166, %p167
      %s169 = ssub.s32 %s27, %s34
      %p170 = scmp.eq.s32.totalorder %s169, 0
      %s172 = sadd.s32 %s171, 1
      %s173 = scalar_select %p170, %s171, %s172
      %p176 = pneg %p170
      %p177 = scmp.eq.s32.totalorder %s19, 1
      %p178 = por %p176, %p177
      %p179 = scmp.ne.s32.totalorder %s171, %s174
      %p180 = scmp.eq.s32.totalorder %s19, 0
      %p181 = por %p179, %p180
      %p182 = scmp.ne.s32.totalorder %s171, %s174
      %p183 = scmp.eq.s32.totalorder %s24, 1
      %p184 = por %p182, %p183
      %p185 = scmp.ne.s32.totalorder %s174, %s175
      %p186 = scmp.eq.s32.totalorder %s24, 0
      %p187 = por %p185, %p186
      %p188 = scmp.ne.s32.totalorder %s174, %s175
      %p189 = scmp.eq.s32.totalorder %s25, 1
      %p190 = por %p188, %p189
      %p192 = scmp.ne.s32.totalorder %s175, %s191
      %p193 = scmp.eq.s32.totalorder %s25, 0
      %p194 = por %p192, %p193
      %s196 = sadd.s32 %s195, 1
      %p199 = scmp.eq.s32.totalorder %s19, 1
      %p200 = scmp.ne.s32.totalorder %s195, %s197
      %p201 = scmp.eq.s32.totalorder %s19, 0
      %p202 = por %p200, %p201
      %p203 = scmp.ne.s32.totalorder %s195, %s197
      %p204 = scmp.eq.s32.totalorder %s24, 1
      %p205 = por %p203, %p204
      %p206 = scmp.ne.s32.totalorder %s197, %s198
      %p207 = scmp.eq.s32.totalorder %s24, 0
      %p208 = por %p206, %p207
      %p209 = scmp.ne.s32.totalorder %s197, %s198
      %p210 = scmp.eq.s32.totalorder %s25, 1
      %p211 = por %p209, %p210
      %p213 = scmp.ne.s32.totalorder %s198, %s212
      %p214 = scmp.eq.s32.totalorder %s25, 0
      %p215 = por %p213, %p214
      %s216 = ssub.s32 %s26, %s38
      %p217 = scmp.eq.s32.totalorder %s216, 0
      %s219 = sadd.s32 %s218, 1
      %s220 = scalar_select %p217, %s218, %s219
      %p223 = pneg %p217
      %p224 = scmp.eq.s32.totalorder %s19, 1
      %p225 = por %p223, %p224
      %p226 = scmp.ne.s32.totalorder %s218, %s221
      %p227 = scmp.eq.s32.totalorder %s19, 0
      %p228 = por %p226, %p227
      %p229 = scmp.ne.s32.totalorder %s218, %s221
      %p230 = scmp.eq.s32.totalorder %s24, 1
      %p231 = por %p229, %p230
      %p232 = scmp.ne.s32.totalorder %s221, %s222
      %p233 = scmp.eq.s32.totalorder %s24, 0
      %p234 = por %p232, %p233
      %p235 = scmp.ne.s32.totalorder %s221, %s222
      %p236 = scmp.eq.s32.totalorder %s25, 1
      %p237 = por %p235, %p236
      %p239 = scmp.ne.s32.totalorder %s222, %s238
      %p240 = scmp.eq.s32.totalorder %s25, 0
      %p241 = por %p239, %p240
      %p242 = scmp.le.s32.totalorder 1, %s19
      %p243 = scmp.lt.s32.totalorder %s19, 3
      %p244 = pnand %p242, %p243
      %p245 = pneg %p244
      // Predicated region
      $region9: #{cybersecurity_transformer_forward.2} parent=5 // pred_check
        _
      $region10: #{cybersecurity_transformer_forward.2} parent=5 // pred_check_branch
        %247 = sbr.rel (%p244) target = $region12
      $region11: #{cybersecurity_transformer_forward.2} parent=5 // pred_region
        %s248 = ssub.s32 %s19, 1
        // Predicated region
        $region13: #{cybersecurity_transformer_forward.2} parent=11 // pred_check
          %p249 = pneg %p57
        $region14: #{cybersecurity_transformer_forward.2} parent=11 // pred_check_branch
          %251 = sbr.rel (%p249) target = $region16
        $region15: #{cybersecurity_transformer_forward.2} parent=11 // pred_region
          %p252 = scmp.lt.s32.totalorder %s28, 0
          %s253 = scalar_select %p252, %s28, 0
          %s254 = smul.addr %s253, 2
          %s255 = smul.addr %s254, 8
          %s256 = scalar_lea.vmem %s0, %s255
        $region16: #{cybersecurity_transformer_forward.2} parent=11 // pred_fallthru
          _
        // Predicated region
        $region17: #{cybersecurity_transformer_forward.2} parent=11 // pred_check
          %p257 = pneg %p208
        $region18: #{cybersecurity_transformer_forward.2} parent=11 // pred_check_branch
          %259 = sbr.rel (%p257) target = $region20
        $region19: #{cybersecurity_transformer_forward.2} parent=11 // pred_region
          _
        $region20: #{cybersecurity_transformer_forward.2} parent=11 // pred_fallthru
          _
      $region12: #{cybersecurity_transformer_forward.2} parent=5 // pred_fallthru
        _
      %p260 = scmp.lt.s32.totalorder %s19, 2
      // Predicated region
      $region21: #{cybersecurity_transformer_forward.2} parent=5 // pred_check
        %p261 = pneg %p260
      $region22: #{cybersecurity_transformer_forward.2} parent=5 // pred_check_branch
        %263 = sbr.rel (%p261) target = $region24
      $region23: #{cybersecurity_transformer_forward.2} parent=5 // pred_region
        // Predicated region
        $region25: #{cybersecurity_transformer_forward.2} parent=23 // pred_check
          %p264 = pneg %p77
        $region26: #{cybersecurity_transformer_forward.2} parent=23 // pred_check_branch
          %266 = sbr.rel (%p264) target = $region28
        $region27: #{cybersecurity_transformer_forward.2} parent=23 // pred_region
          %s267 = sand.u32 %s67, 1
          %s268 = scalar_lea.sflag [#allocation4], %s267
          %s269 = sand.u32 %s67, 1
          %s270 = smul.addr %s269, 192
          %s271 = scalar_lea.vmem [#allocation3], %s270
          %s273 = ssub.s32 3072, 3072
          %274 = vsyncadd %s268, %s273
          %s275 = smul.addr %s27, 48
          %s276 = smul.addr %s275, 64
          %s277 = scalar_lea.hbm %s1, %s276
          %s278 = sshll.u32 %s271, 4
          %s279 = int_to_ptr.vmem [resolvable:$true] %s278
          %284 = dma.hbm_to_vmem [thread:$0]  %s277, 3072, %s279, %s268, 192, 192, 12
        $region28: #{cybersecurity_transformer_forward.2} parent=23 // pred_fallthru
          _
        // Predicated region
        $region29: #{cybersecurity_transformer_forward.2} parent=23 // pred_check
          %p285 = pneg %p103
        $region30: #{cybersecurity_transformer_forward.2} parent=23 // pred_check_branch
          %287 = sbr.rel (%p285) target = $region32
        $region31: #{cybersecurity_transformer_forward.2} parent=23 // pred_region
          %p288 = scmp.lt.s32.totalorder %s27, 1
          %s289 = scalar_select %p288, %s27, 1
          %s290 = smul.addr %s289, 4
          %s291 = smul.addr %s290, 4
          %s292 = scalar_lea.vmem %s2, %s291
        $region32: #{cybersecurity_transformer_forward.2} parent=23 // pred_fallthru
          _
        // Predicated region
        $region33: #{cybersecurity_transformer_forward.2} parent=23 // pred_check
          %p293 = pneg %p129
        $region34: #{cybersecurity_transformer_forward.2} parent=23 // pred_check_branch
          %295 = sbr.rel (%p293) target = $region36
        $region35: #{cybersecurity_transformer_forward.2} parent=23 // pred_region
          %p296 = scmp.lt.s32.totalorder %s27, 1
          %s297 = scalar_select %p296, %s27, 1
          %s298 = smul.addr %s297, 16
          %s299 = smul.addr %s298, 4
          %s300 = scalar_lea.vmem %s3, %s299
        $region36: #{cybersecurity_transformer_forward.2} parent=23 // pred_fallthru
          _
        // Predicated region
        $region37: #{cybersecurity_transformer_forward.2} parent=23 // pred_check
          %p301 = pneg %p155
        $region38: #{cybersecurity_transformer_forward.2} parent=23 // pred_check_branch
          %303 = sbr.rel (%p301) target = $region40
        $region39: #{cybersecurity_transformer_forward.2} parent=23 // pred_region
          %s304 = sand.u32 %s145, 1
          %s305 = scalar_lea.sflag [#allocation6], %s304
          %s306 = sand.u32 %s145, 1
          %s307 = smul.addr %s306, 64
          %s308 = scalar_lea.vmem [#allocation5], %s307
          %s310 = ssub.s32 1024, 1024
          %311 = vsyncadd %s305, %s310
          %s312 = smul.addr %s27, 16
          %s313 = smul.addr %s312, 64
          %s314 = scalar_lea.hbm %s4, %s313
          %s315 = sshll.u32 %s308, 4
          %s316 = int_to_ptr.vmem [resolvable:$true] %s315
          %321 = dma.hbm_to_vmem [thread:$0]  %s314, 1024, %s316, %s305, 64, 64, 4
        $region40: #{cybersecurity_transformer_forward.2} parent=23 // pred_fallthru
          _
        // Predicated region
        $region41: #{cybersecurity_transformer_forward.2} parent=23 // pred_check
          %p322 = pneg %p181
        $region42: #{cybersecurity_transformer_forward.2} parent=23 // pred_check_branch
          %324 = sbr.rel (%p322) target = $region44
        $region43: #{cybersecurity_transformer_forward.2} parent=23 // pred_region
          %p325 = scmp.lt.s32.totalorder %s27, 1
          %s326 = scalar_select %p325, %s27, 1
          %s327 = smul.addr %s326, 10
          %s328 = scalar_lea.vmem %s5, %s327
        $region44: #{cybersecurity_transformer_forward.2} parent=23 // pred_fallthru
          _
      $region24: #{cybersecurity_transformer_forward.2} parent=5 // pred_fallthru
        _
      %p329 = scmp.le.s32.totalorder 1, %s19
      %p330 = scmp.lt.s32.totalorder %s19, 3
      %p331 = pnand %p329, %p330
      %p332 = pneg %p331
      // Predicated region
      $region45: #{cybersecurity_transformer_forward.2} parent=5 // pred_check
        _
      $region46: #{cybersecurity_transformer_forward.2} parent=5 // pred_check_branch
        %334 = sbr.rel (%p331) target = $region48
      $region47: #{cybersecurity_transformer_forward.2} parent=5 // pred_region
        %s335 = ssub.s32 %s19, 1
        %s336 = sand.u32 %s70, 1
        %s337 = scalar_lea.sflag [#allocation4], %s336
        %s338 = sand.u32 %s70, 1
        %s339 = smul.addr %s338, 192
        %s340 = scalar_lea.vmem [#allocation3], %s339
        // Predicated region
        $region49: #{cybersecurity_transformer_forward.2} parent=47 // pred_check
          %p341 = pneg %p83
        $region50: #{cybersecurity_transformer_forward.2} parent=47 // pred_check_branch
          %343 = sbr.rel (%p341) target = $region52
        $region51: #{cybersecurity_transformer_forward.2} parent=47 // pred_region
          %344 = dma.done %s337, 3072
        $region52: #{cybersecurity_transformer_forward.2} parent=47 // pred_fallthru
          _
        %s345 = sand.u32 %s148, 1
        %s346 = scalar_lea.sflag [#allocation6], %s345
        %s347 = sand.u32 %s148, 1
        %s348 = smul.addr %s347, 64
        %s349 = scalar_lea.vmem [#allocation5], %s348
        // Predicated region
        $region53: #{cybersecurity_transformer_forward.2} parent=47 // pred_check
          %p350 = pneg %p161
        $region54: #{cybersecurity_transformer_forward.2} parent=47 // pred_check_branch
          %352 = sbr.rel (%p350) target = $region56
        $region55: #{cybersecurity_transformer_forward.2} parent=47 // pred_region
          %353 = dma.done %s346, 1024
        $region56: #{cybersecurity_transformer_forward.2} parent=47 // pred_fallthru
          _
        %p354 = scmp.lt.s32.totalorder %s28, 0
        %s355 = scalar_select %p354, %s28, 0
        %s356 = smul.addr %s355, 2
        %s357 = smul.addr %s356, 8
        %s358 = scalar_lea.vmem %s0, %s357
        %p359 = pneg %p57
        %p360 = pneg %p54
        %s361 = sand.u32 %s70, 1
        %s362 = scalar_lea.sflag [#allocation4], %s361
        %s363 = sand.u32 %s70, 1
        %s364 = smul.addr %s363, 192
        %s365 = scalar_lea.vmem [#allocation3], %s364
        %p366 = pneg %p83
        %p367 = pneg %p80
        %p368 = scmp.lt.s32.totalorder %s29, 1
        %s369 = scalar_select %p368, %s29, 1
        %s370 = smul.addr %s369, 4
        %s371 = smul.addr %s370, 4
        %s372 = scalar_lea.vmem %s2, %s371
        %p373 = pneg %p109
        %p374 = pneg %p106
        %p375 = scmp.lt.s32.totalorder %s29, 1
        %s376 = scalar_select %p375, %s29, 1
        %s377 = smul.addr %s376, 16
        %s378 = smul.addr %s377, 4
        %s379 = scalar_lea.vmem %s3, %s378
        %p380 = pneg %p135
        %p381 = pneg %p132
        %s382 = sand.u32 %s148, 1
        %s383 = scalar_lea.sflag [#allocation6], %s382
        %s384 = sand.u32 %s148, 1
        %s385 = smul.addr %s384, 64
        %s386 = scalar_lea.vmem [#allocation5], %s385
        %p387 = pneg %p161
        %p388 = pneg %p158
        %p389 = scmp.lt.s32.totalorder %s29, 1
        %s390 = scalar_select %p389, %s29, 1
        %s391 = smul.addr %s390, 10
        %s392 = scalar_lea.vmem %s5, %s391
        %p393 = pneg %p187
        %p394 = pneg %p184
        %p395 = pneg %p208
        %p396 = pneg %p205
        %p397 = pneg %p234
        %p398 = pneg %p231
        %p399 = scmp.lt.s32.totalorder %s28, 0
        %s400 = scalar_select %p399, %s28, 0
        %s401 = smul.addr %s400, 2
        %s402 = smul.addr %s401, 8
        %s403 = scalar_lea.vmem %s7, %s402
        %p404 = scmp.lt.s32.totalorder %s28, 0
        %s405 = scalar_select %p404, %s28, 0
        %s406 = smul.addr %s405, 2
        %s407 = smul.addr %s406, 8
        %s408 = scalar_lea.vmem %s0, %s407
        %p409 = scmp.lt.s32.totalorder %s29, 1
        %s410 = scalar_select %p409, %s29, 1
        %s411 = smul.addr %s410, 4
        %s412 = smul.addr %s411, 4
        %s413 = scalar_lea.vmem %s2, %s412
        %p414 = scmp.lt.s32.totalorder %s29, 1
        %s415 = scalar_select %p414, %s29, 1
        %s416 = smul.addr %s415, 16
        %s417 = smul.addr %s416, 4
        %s418 = scalar_lea.vmem %s3, %s417
        %p419 = scmp.lt.s32.totalorder %s29, 1
        %s420 = scalar_select %p419, %s29, 1
        %s421 = smul.addr %s420, 10
        %s422 = scalar_lea.vmem %s5, %s421
        %p423 = scmp.lt.s32.totalorder %s28, 0
        %s424 = scalar_select %p423, %s28, 0
        %s425 = smul.addr %s424, 2
        %s426 = smul.addr %s425, 8
        %s427 = scalar_lea.vmem %s7, %s426
        %v429 = vlaneseq
        %v430 = vand.u32 %v429, 127
        %vm431 = vcmp.lt.s32.totalorder %v430, 32
        %v432 = vld [vmem:[%s422] sm:$0x7]
        %v433 = vld [vmem:[%s422 + $0x3] sm:$0x1]
        %v434 = vld [vmem:[%s422 + $0x4] sm:$0x1]
        %v435 = vld [vmem:[%s422 + $0x5] sm:$0x1]
        %v436 = vld [vmem:[%s422 + $0x6] sm:$0x1]
        %v437 = vld [vmem:[%s422 + $0x7] sm:$0x1]
        %v438 = vld [vmem:[%s422 + $0x8] sm:$0x1]
        %v439 = vld [vmem:[%s422 + $0x9] sm:$0x1]
        %p440 = scmp.eq.s32.totalorder %s29, 0
        // Predicated region
        $region57: #{cybersecurity_transformer_forward.2} parent=47 // pred_check
          %p441 = pneg %p440
        $region58: #{cybersecurity_transformer_forward.2} parent=47 // pred_check_branch
          %443 = sbr.rel (%p441) target = $region60
        $region59: #{cybersecurity_transformer_forward.2} parent=47 // pred_region
          %v444 = vld [vmem:[%s408] sm:$0xff]
          %v445 = vld [vmem:[%s408 + $0x8] sm:$0xff]
          %446 = vst [vmem:[#allocation2] sm:$0xff] %v444
          %447 = vst [vmem:[#allocation2 + $0x8] sm:$0xff] %v445
        $region60: #{cybersecurity_transformer_forward.2} parent=47 // pred_fallthru
          _
        %v448 = vld [vmem:[#allocation2] sm:$0xff]
        %v449 = vld [vmem:[#allocation2 + $0x8] sm:$0xff]
        %v450 = vpack.c.bf16 %v449, %v448
        %v451 = vld [vmem:[%s340] sm:$0xff]
        %v452 = vld [vmem:[%s340 + $0x8] sm:$0xf]
        %v453 = vld [vmem:[%s340 + $0xc] sm:$0xff]
        %v454 = vld [vmem:[%s340 + $0x14] sm:$0xf]
        %v455 = vld [vmem:[%s340 + $0x18] sm:$0xff]
        %v456 = vld [vmem:[%s340 + $0x20] sm:$0xf]
        %v457 = vld [vmem:[%s340 + $0x24] sm:$0xff]
        %v458 = vld [vmem:[%s340 + $0x2c] sm:$0xf]
        %v459 = vld [vmem:[%s340 + $0x30] sm:$0xff]
        %v460 = vld [vmem:[%s340 + $0x38] sm:$0xf]
        %v461 = vld [vmem:[%s340 + $0x3c] sm:$0xff]
        %v462 = vld [vmem:[%s340 + $0x44] sm:$0xf]
        %v463 = vld [vmem:[%s340 + $0x48] sm:$0xff]
        %v464 = vld [vmem:[%s340 + $0x50] sm:$0xf]
        %v465 = vld [vmem:[%s340 + $0x54] sm:$0xff]
        %v466 = vld [vmem:[%s340 + $0x5c] sm:$0xf]
        %v467 = vld [vmem:[%s340 + $0x60] sm:$0xff]
        %v468 = vld [vmem:[%s340 + $0x68] sm:$0xf]
        %v469 = vld [vmem:[%s340 + $0x6c] sm:$0xff]
        %v470 = vld [vmem:[%s340 + $0x74] sm:$0xf]
        %v471 = vld [vmem:[%s340 + $0x78] sm:$0xff]
        %v472 = vld [vmem:[%s340 + $0x80] sm:$0xf]
        %v473 = vld [vmem:[%s340 + $0x84] sm:$0xff]
        %v474 = vld [vmem:[%s340 + $0x8c] sm:$0xf]
        %v475 = vld [vmem:[%s340 + $0x90] sm:$0xff]
        %v476 = vld [vmem:[%s340 + $0x98] sm:$0xf]
        %v477 = vld [vmem:[%s340 + $0x9c] sm:$0xff]
        %v478 = vld [vmem:[%s340 + $0xa4] sm:$0xf]
        %v479 = vld [vmem:[%s340 + $0xa8] sm:$0xff]
        %v480 = vld [vmem:[%s340 + $0xb0] sm:$0xf]
        %v481 = vld [vmem:[%s340 + $0xb4] sm:$0xff]
        %v482 = vld [vmem:[%s340 + $0xbc] sm:$0xf]
        %v484 = vlaneseq
        %v485 = vshrl.u32 %v484, 7
        %v486 = vsub.s32 0, %v485
        %v487 = vrot.slane %v432, %v486
        %v488 = vlaneseq
        %v489 = vshrl.u32 %v488, 7
        %v490 = vsub.s32 1, %v489
        %v491 = vrot.slane %v432, %v490
        %v492 = vlaneseq
        %v493 = vshrl.u32 %v492, 7
        %v494 = vsub.s32 2, %v493
        %v495 = vrot.slane %v432, %v494
        %v531 = vunpack.c.l.b16 %v451
        %v532 = vunpack.c.h.b16 %v451
        %v533 = vunpack.c.l.b16 %v452
        %v534 = vunpack.c.l.b16 %v453
        %v535 = vunpack.c.h.b16 %v453
        %v536 = vunpack.c.l.b16 %v454
        %v537 = vunpack.c.l.b16 %v455
        %v538 = vunpack.c.h.b16 %v455
        %v539 = vunpack.c.l.b16 %v456
        %v540 = vunpack.c.l.b16 %v457
        %v541 = vunpack.c.h.b16 %v457
        %v542 = vunpack.c.l.b16 %v458
        %v543 = vunpack.c.l.b16 %v459
        %v544 = vunpack.c.h.b16 %v459
        %v545 = vunpack.c.l.b16 %v460
        %v546 = vunpack.c.l.b16 %v461
        %v547 = vunpack.c.h.b16 %v461
        %v548 = vunpack.c.l.b16 %v462
        %v549 = vunpack.c.l.b16 %v463
        %v550 = vunpack.c.h.b16 %v463
        %v551 = vunpack.c.l.b16 %v464
        %v552 = vunpack.c.l.b16 %v465
        %v553 = vunpack.c.h.b16 %v465
        %v554 = vunpack.c.l.b16 %v466
        %v555 = vunpack.c.l.b16 %v467
        %v556 = vunpack.c.h.b16 %v467
        %v557 = vunpack.c.l.b16 %v468
        %v558 = vunpack.c.l.b16 %v469
        %v559 = vunpack.c.h.b16 %v469
        %v560 = vunpack.c.l.b16 %v470
        %v561 = vunpack.c.l.b16 %v471
        %v562 = vunpack.c.h.b16 %v471
        %v563 = vunpack.c.l.b16 %v472
        %v564 = vunpack.c.l.b16 %v473
        %v565 = vunpack.c.h.b16 %v473
        %v566 = vunpack.c.l.b16 %v474
        %v567 = vunpack.c.l.b16 %v475
        %v568 = vunpack.c.h.b16 %v475
        %v569 = vunpack.c.l.b16 %v476
        %v570 = vunpack.c.l.b16 %v477
        %v571 = vunpack.c.h.b16 %v477
        %v572 = vunpack.c.l.b16 %v478
        %v573 = vunpack.c.l.b16 %v479
        %v574 = vunpack.c.h.b16 %v479
        %v575 = vunpack.c.l.b16 %v480
        %v576 = vunpack.c.l.b16 %v481
        %v577 = vunpack.c.h.b16 %v481
        %v578 = vunpack.c.l.b16 %v482
        %v579 = vpack.c.b16 %v534, %v531
        %v580 = vpack.c.b16 %v535, %v532
        %v581 = vpack.c.b16 %v536, %v533
        %v582 = vpack.c.b16 %v540, %v537
        %v583 = vpack.c.b16 %v541, %v538
        %v584 = vpack.c.b16 %v542, %v539
        %v585 = vpack.c.b16 %v546, %v543
        %v586 = vpack.c.b16 %v547, %v544
        %v587 = vpack.c.b16 %v548, %v545
        %v588 = vpack.c.b16 %v552, %v549
        %v589 = vpack.c.b16 %v553, %v550
        %v590 = vpack.c.b16 %v554, %v551
        %v591 = vpack.c.b16 %v558, %v555
        %v592 = vpack.c.b16 %v559, %v556
        %v593 = vpack.c.b16 %v560, %v557
        %v594 = vpack.c.b16 %v564, %v561
        %v595 = vpack.c.b16 %v565, %v562
        %v596 = vpack.c.b16 %v566, %v563
        %v597 = vpack.c.b16 %v570, %v567
        %v598 = vpack.c.b16 %v571, %v568
        %v599 = vpack.c.b16 %v572, %v569
        %v600 = vpack.c.b16 %v576, %v573
        %v601 = vpack.c.b16 %v577, %v574
        %v602 = vpack.c.b16 %v578, %v575
        %627 = vmatprep.subr.bf16.mxu0 %v580
        %628 = vmatpush1.bf16.msra.mxu0 %v579
        %629 = vmatprep.subr.bf16.mxu0 %v583
        %630 = vmatpush1.bf16.msra.mxu0 %v582
        %631 = vmatprep.subr.bf16.mxu0 %v586
        %632 = vmatpush1.bf16.msra.mxu0 %v585
        %633 = vmatprep.subr.bf16.mxu0 %v589
        %634 = vmatpush1.bf16.msra.mxu0 %v588
        %635 = vmatprep.subr.bf16.mxu0 %v592
        %636 = vmatpush1.bf16.msra.mxu0 %v591
        %637 = vmatprep.subr.bf16.mxu0 %v595
        %638 = vmatpush1.bf16.msra.mxu0 %v594
        %639 = vmatprep.subr.bf16.mxu0 %v598
        %640 = vmatpush1.bf16.msra.mxu0 %v597
        %641 = vmatprep.subr.bf16.mxu0 %v601
        %642 = vmatpush1.bf16.msra.mxu0 %v600
        %643 = vmatprep.subr.bf16.mxu0 0
        %644 = vmatpush1.bf16.msra.mxu0 0
        %645 = vmatprep.subr.bf16.mxu0 0
        %646 = vmatpush1.bf16.msra.mxu0 0
        %647 = vmatprep.subr.bf16.mxu0 0
        %648 = vmatpush1.bf16.msra.mxu0 0
        %649 = vmatprep.subr.bf16.mxu0 0
        %650 = vmatpush1.bf16.msra.mxu0 0
        %651 = vmatprep.subr.bf16.mxu0 0
        %652 = vmatpush1.bf16.msra.mxu0 0
        %653 = vmatprep.subr.bf16.mxu0 0
        %654 = vmatpush1.bf16.msra.mxu0 0
        %655 = vmatprep.subr.bf16.mxu0 0
        %656 = vmatpush1.bf16.msra.mxu0 0
        %657 = vmatprep.subr.bf16.mxu0 0
        %658 = vmatpush1.bf16.msra.mxu0 0
        %659 = vmatprep.mubr.bf16.mxu0 0
        %660 = vmatmul.mubr.bf16.gmra.mrb[0].mxu0 %v450
        %v661 = vpop.f32.mrb[0].mxu0
        %v662 = vadd.f32 %v487, %v661
        %v663 = vpop.f32.mrb[0].mxu0
        %v664 = vadd.f32 %v491, %v663
        %v665 = vpop.f32.mrb[0].mxu0
        %v666 = vadd.f32 %v487, %v665
        %v667 = vpop.f32.mrb[0].mxu0
        %v668 = vadd.f32 %v491, %v667
        %669 = vdwg.mxu0
        %670 = vmatprep.subr.bf16.mxu0 0
        %671 = vmatpush1.bf16.msra.mxu0 %v581
        %672 = vmatprep.subr.bf16.mxu0 0
        %673 = vmatpush1.bf16.msra.mxu0 %v584
        %674 = vmatprep.subr.bf16.mxu0 0
        %675 = vmatpush1.bf16.msra.mxu0 %v587
        %676 = vmatprep.subr.bf16.mxu0 0
        %677 = vmatpush1.bf16.msra.mxu0 %v590
        %678 = vmatprep.subr.bf16.mxu0 0
        %679 = vmatpush1.bf16.msra.mxu0 %v593
        %680 = vmatprep.subr.bf16.mxu0 0
        %681 = vmatpush1.bf16.msra.mxu0 %v596
        %682 = vmatprep.subr.bf16.mxu0 0
        %683 = vmatpush1.bf16.msra.mxu0 %v599
        %684 = vmatprep.subr.bf16.mxu0 0
        %685 = vmatpush1.bf16.msra.mxu0 %v602
        %686 = vmatprep.subr.bf16.mxu0 0
        %687 = vmatpush1.bf16.msra.mxu0 0
        %688 = vmatprep.subr.bf16.mxu0 0
        %689 = vmatpush1.bf16.msra.mxu0 0
        %690 = vmatprep.subr.bf16.mxu0 0
        %691 = vmatpush1.bf16.msra.mxu0 0
        %692 = vmatprep.subr.bf16.mxu0 0
        %693 = vmatpush1.bf16.msra.mxu0 0
        %694 = vmatprep.subr.bf16.mxu0 0
        %695 = vmatpush1.bf16.msra.mxu0 0
        %696 = vmatprep.subr.bf16.mxu0 0
        %697 = vmatpush1.bf16.msra.mxu0 0
        %698 = vmatprep.subr.bf16.mxu0 0
        %699 = vmatpush1.bf16.msra.mxu0 0
        %700 = vmatprep.subr.bf16.mxu0 0
        %701 = vmatpush1.bf16.msra.mxu0 0
        %702 = vmatprep.mubr.bf16.mxu0 0
        %703 = vmatmul.mubr.bf16.gmra.mrb[0].mxu0 %v450
        %v704 = vpop.f32.mrb[0].mxu0
        %v705 = vadd.f32 %v495, %v704
        %v706 = vpop.f32.mrb[0].mxu0
        %v707 = vpop.f32.mrb[0].mxu0
        %v708 = vadd.f32 %v495, %v707
        %v709 = vpop.f32.mrb[0].mxu0
        %710 = vdwg.mxu0
        %713 = vrot.lane.b32.xlu0 %v662, 120
        %v714 = vpop.permute.xlu0 %713
        %715 = vrot.lane.b32.xlu0 %v666, 120
        %v716 = vpop.permute.xlu0 %715
        %717 = vrot.lane.b32.xlu0 %v662, 112
        %v718 = vpop.permute.xlu0 %717
        %719 = vrot.lane.b32.xlu0 %v666, 112
        %v720 = vpop.permute.xlu0 %719
        %721 = vrot.lane.b32.xlu0 %v662, 104
        %v722 = vpop.permute.xlu0 %721
        %723 = vrot.lane.b32.xlu0 %v666, 104
        %v724 = vpop.permute.xlu0 %723
        %727 = vrot.lane.b32.xlu0 %v664, 120
        %v728 = vpop.permute.xlu0 %727
        %729 = vrot.lane.b32.xlu0 %v668, 120
        %v730 = vpop.permute.xlu0 %729
        %733 = vrot.lane.b32.xlu0 %v664, 112
        %v734 = vpop.permute.xlu0 %733
        %735 = vrot.lane.b32.xlu0 %v668, 112
        %v736 = vpop.permute.xlu0 %735
        %739 = vrot.lane.b32.xlu0 %v664, 104
        %v740 = vpop.permute.xlu0 %739
        %741 = vrot.lane.b32.xlu0 %v668, 104
        %v742 = vpop.permute.xlu0 %741
        %747 = vrot.lane.b32.xlu0 %v705, 120
        %v748 = vpop.permute.xlu0 %747
        %749 = vrot.lane.b32.xlu0 %v708, 120
        %v750 = vpop.permute.xlu0 %749
        %753 = vrot.lane.b32.xlu0 %v705, 112
        %v754 = vpop.permute.xlu0 %753
        %755 = vrot.lane.b32.xlu0 %v708, 112
        %v756 = vpop.permute.xlu0 %755
        %759 = vrot.lane.b32.xlu0 %v705, 104
        %v760 = vpop.permute.xlu0 %759
        %761 = vrot.lane.b32.xlu0 %v708, 104
        %v762 = vpop.permute.xlu0 %761
        %765 = vxpose.xlu0.b32.start [1/16] %v664, 128
        %766 = vxpose.xlu0.b32.cont [2/16] %v668, 128
        %767 = vxpose.xlu0.b32.cont [3/16] 0.0, 128
        %768 = vxpose.xlu0.b32.cont [4/16] 0.0, 128
        %769 = vxpose.xlu0.b32.cont [5/16] 0.0, 128
        %770 = vxpose.xlu0.b32.cont [6/16] 0.0, 128
        %771 = vxpose.xlu0.b32.cont [7/16] 0.0, 128
        %772 = vxpose.xlu0.b32.cont [8/16] 0.0, 128
        %773 = vxpose.xlu0.b32.cont [9/16] 0.0, 128
        %774 = vxpose.xlu0.b32.cont [10/16] 0.0, 128
        %775 = vxpose.xlu0.b32.cont [11/16] 0.0, 128
        %776 = vxpose.xlu0.b32.cont [12/16] 0.0, 128
        %777 = vxpose.xlu0.b32.cont [13/16] 0.0, 128
        %778 = vxpose.xlu0.b32.cont [14/16] 0.0, 128
        %779 = vxpose.xlu0.b32.cont [15/16] 0.0, 128
        %780 = vxpose.xlu0.b32.end [16/16] 0.0, 128
        %v781 = vpop.trf.xlu0
        %v782 = vpop.trf.xlu0
        %v783 = vpop.trf.xlu0
        %v784 = vpop.trf.xlu0
        %v785 = vpop.trf.xlu0
        %v786 = vpop.trf.xlu0
        %v787 = vpop.trf.xlu0
        %v788 = vpop.trf.xlu0
        %v789 = vpop.trf.xlu0
        %v790 = vpop.trf.xlu0
        %v791 = vpop.trf.xlu0
        %v792 = vpop.trf.xlu0
        %v793 = vpop.trf.xlu0
        %v794 = vpop.trf.xlu0
        %v795 = vpop.trf.xlu0
        %v796 = vpop.trf.xlu0
        %797 = vxpose.xlu0.b32.start [1/16] %v728, 128
        %798 = vxpose.xlu0.b32.cont [2/16] %v730, 128
        %799 = vxpose.xlu0.b32.cont [3/16] 0.0, 128
        %800 = vxpose.xlu0.b32.cont [4/16] 0.0, 128
        %801 = vxpose.xlu0.b32.cont [5/16] 0.0, 128
        %802 = vxpose.xlu0.b32.cont [6/16] 0.0, 128
        %803 = vxpose.xlu0.b32.cont [7/16] 0.0, 128
        %804 = vxpose.xlu0.b32.cont [8/16] 0.0, 128
        %805 = vxpose.xlu0.b32.cont [9/16] 0.0, 128
        %806 = vxpose.xlu0.b32.cont [10/16] 0.0, 128
        %807 = vxpose.xlu0.b32.cont [11/16] 0.0, 128
        %808 = vxpose.xlu0.b32.cont [12/16] 0.0, 128
        %809 = vxpose.xlu0.b32.cont [13/16] 0.0, 128
        %810 = vxpose.xlu0.b32.cont [14/16] 0.0, 128
        %811 = vxpose.xlu0.b32.cont [15/16] 0.0, 128
        %812 = vxpose.xlu0.b32.end [16/16] 0.0, 128
        %v813 = vpop.trf.xlu0
        %v814 = vpop.trf.xlu0
        %v815 = vpop.trf.xlu0
        %v816 = vpop.trf.xlu0
        %v817 = vpop.trf.xlu0
        %v818 = vpop.trf.xlu0
        %v819 = vpop.trf.xlu0
        %v820 = vpop.trf.xlu0
        %v821 = vpop.trf.xlu0
        %v822 = vpop.trf.xlu0
        %v823 = vpop.trf.xlu0
        %v824 = vpop.trf.xlu0
        %v825 = vpop.trf.xlu0
        %v826 = vpop.trf.xlu0
        %v827 = vpop.trf.xlu0
        %v828 = vpop.trf.xlu0
        %829 = vxpose.xlu0.b32.start [1/16] %v734, 128
        %830 = vxpose.xlu0.b32.cont [2/16] %v736, 128
        %831 = vxpose.xlu0.b32.cont [3/16] 0.0, 128
        %832 = vxpose.xlu0.b32.cont [4/16] 0.0, 128
        %833 = vxpose.xlu0.b32.cont [5/16] 0.0, 128
        %834 = vxpose.xlu0.b32.cont [6/16] 0.0, 128
        %835 = vxpose.xlu0.b32.cont [7/16] 0.0, 128
        %836 = vxpose.xlu0.b32.cont [8/16] 0.0, 128
        %837 = vxpose.xlu0.b32.cont [9/16] 0.0, 128
        %838 = vxpose.xlu0.b32.cont [10/16] 0.0, 128
        %839 = vxpose.xlu0.b32.cont [11/16] 0.0, 128
        %840 = vxpose.xlu0.b32.cont [12/16] 0.0, 128
        %841 = vxpose.xlu0.b32.cont [13/16] 0.0, 128
        %842 = vxpose.xlu0.b32.cont [14/16] 0.0, 128
        %843 = vxpose.xlu0.b32.cont [15/16] 0.0, 128
        %844 = vxpose.xlu0.b32.end [16/16] 0.0, 128
        %v845 = vpop.trf.xlu0
        %v846 = vpop.trf.xlu0
        %v847 = vpop.trf.xlu0
        %v848 = vpop.trf.xlu0
        %v849 = vpop.trf.xlu0
        %v850 = vpop.trf.xlu0
        %v851 = vpop.trf.xlu0
        %v852 = vpop.trf.xlu0
        %v853 = vpop.trf.xlu0
        %v854 = vpop.trf.xlu0
        %v855 = vpop.trf.xlu0
        %v856 = vpop.trf.xlu0
        %v857 = vpop.trf.xlu0
        %v858 = vpop.trf.xlu0
        %v859 = vpop.trf.xlu0
        %v860 = vpop.trf.xlu0
        %861 = vxpose.xlu0.b32.start [1/16] %v740, 128
        %862 = vxpose.xlu0.b32.cont [2/16] %v742, 128
        %863 = vxpose.xlu0.b32.cont [3/16] 0.0, 128
        %864 = vxpose.xlu0.b32.cont [4/16] 0.0, 128
        %865 = vxpose.xlu0.b32.cont [5/16] 0.0, 128
        %866 = vxpose.xlu0.b32.cont [6/16] 0.0, 128
        %867 = vxpose.xlu0.b32.cont [7/16] 0.0, 128
        %868 = vxpose.xlu0.b32.cont [8/16] 0.0, 128
        %869 = vxpose.xlu0.b32.cont [9/16] 0.0, 128
        %870 = vxpose.xlu0.b32.cont [10/16] 0.0, 128
        %871 = vxpose.xlu0.b32.cont [11/16] 0.0, 128
        %872 = vxpose.xlu0.b32.cont [12/16] 0.0, 128
        %873 = vxpose.xlu0.b32.cont [13/16] 0.0, 128
        %874 = vxpose.xlu0.b32.cont [14/16] 0.0, 128
        %875 = vxpose.xlu0.b32.cont [15/16] 0.0, 128
        %876 = vxpose.xlu0.b32.end [16/16] 0.0, 128
        %v877 = vpop.trf.xlu0
        %v878 = vpop.trf.xlu0
        %v879 = vpop.trf.xlu0
        %v880 = vpop.trf.xlu0
        %v881 = vpop.trf.xlu0
        %v882 = vpop.trf.xlu0
        %v883 = vpop.trf.xlu0
        %v884 = vpop.trf.xlu0
        %v885 = vpop.trf.xlu0
        %v886 = vpop.trf.xlu0
        %v887 = vpop.trf.xlu0
        %v888 = vpop.trf.xlu0
        %v889 = vpop.trf.xlu0
        %v890 = vpop.trf.xlu0
        %v891 = vpop.trf.xlu0
        %v892 = vpop.trf.xlu0
        %vm893 = vcmask 64512
        %v894 = vsel %vm893, %v662, 0
        %v896 = vsel %vm893, %v666, 0
        %898 = vmatprep.subr.mxu0 0.0
        %899 = vmatpush1.msra.mxu0 %v781
        %900 = vmatprep.subr.mxu0 0.0
        %901 = vmatpush1.msra.mxu0 0.0
        %902 = vmatprep.subr.mxu0 0.0
        %903 = vmatpush1.msra.mxu0 0.0
        %904 = vmatprep.subr.mxu0 0.0
        %905 = vmatpush1.msra.mxu0 0.0
        %906 = vmatprep.subr.mxu0 0.0
        %907 = vmatpush1.msra.mxu0 0.0
        %908 = vmatprep.subr.mxu0 0.0
        %909 = vmatpush1.msra.mxu0 0.0
        %910 = vmatprep.subr.mxu0 0.0
        %911 = vmatpush1.msra.mxu0 0.0
        %912 = vmatprep.subr.mxu0 0.0
        %913 = vmatpush1.msra.mxu0 0.0
        %914 = vmatprep.subr.mxu0 0.0
        %915 = vmatpush1.msra.mxu0 0.0
        %916 = vmatprep.subr.mxu0 0.0
        %917 = vmatpush1.msra.mxu0 0.0
        %918 = vmatprep.subr.mxu0 0.0
        %919 = vmatpush1.msra.mxu0 0.0
        %920 = vmatprep.subr.mxu0 0.0
        %921 = vmatpush1.msra.mxu0 0.0
        %922 = vmatprep.subr.mxu0 0.0
        %923 = vmatpush1.msra.mxu0 0.0
        %924 = vmatprep.subr.mxu0 0.0
        %925 = vmatpush1.msra.mxu0 0.0
        %926 = vmatprep.subr.mxu0 0.0
        %927 = vmatpush1.msra.mxu0 0.0
        %928 = vmatprep.subr.mxu0 0.0
        %929 = vmatpush1.msra.mxu0 0.0
        %930 = vmatprep.subr.mxu0 0.0
        %931 = vmatpush1.msra.mxu0 0.0
        %932 = vmatprep.subr.mxu0 0.0
        %933 = vmatpush1.msra.mxu0 0.0
        %934 = vmatprep.subr.mxu0 0.0
        %935 = vmatpush1.msra.mxu0 0.0
        %936 = vmatprep.subr.mxu0 0.0
        %937 = vmatpush1.msra.mxu0 0.0
        %938 = vmatprep.subr.mxu0 0.0
        %939 = vmatpush1.msra.mxu0 0.0
        %940 = vmatprep.subr.mxu0 0.0
        %941 = vmatpush1.msra.mxu0 0.0
        %942 = vmatprep.subr.mxu0 0.0
        %943 = vmatpush1.msra.mxu0 0.0
        %944 = vmatprep.subr.mxu0 0.0
        %945 = vmatpush1.msra.mxu0 0.0
        %946 = vmatprep.subr.mxu0 0.0
        %947 = vmatpush1.msra.mxu0 0.0
        %948 = vmatprep.subr.mxu0 0.0
        %949 = vmatpush1.msra.mxu0 0.0
        %950 = vmatprep.subr.mxu0 0.0
        %951 = vmatpush1.msra.mxu0 0.0
        %952 = vmatprep.subr.mxu0 0.0
        %953 = vmatpush1.msra.mxu0 0.0
        %954 = vmatprep.subr.mxu0 0.0
        %955 = vmatpush1.msra.mxu0 0.0
        %956 = vmatprep.subr.mxu0 0.0
        %957 = vmatpush1.msra.mxu0 0.0
        %958 = vmatprep.subr.mxu0 0.0
        %959 = vmatpush1.msra.mxu0 0.0
        %960 = vmatprep.subr.mxu0 0.0
        %961 = vmatpush1.msra.mxu0 0.0
        %962 = vmatprep.mubr.f32.mxu0 0.0
        %963 = vmatmul.mubr.f32.gmra.mrb[0].mxu0 %v894
        %v964 = vpop.f32.mrb[0].mxu0
        %v965 = vadd.f32 0.0, %v964
        %v966 = vpop.f32.mrb[0].mxu0
        %967 = vmatprep.mubr.f32.mxu0 0.0
        %968 = vmatmul.mubr.f32.gmra.mrb[0].mxu0 %v896
        %v969 = vpop.f32.mrb[0].mxu0
        %v970 = vadd.f32 0.0, %v969
        %v971 = vpop.f32.mrb[0].mxu0
        %972 = vdwg.mxu0
        %v973 = vsel %vm893, %v714, 0
        %v975 = vsel %vm893, %v716, 0
        %977 = vmatprep.subr.mxu0 0.0
        %978 = vmatpush1.msra.mxu0 %v813
        %979 = vmatprep.subr.mxu0 0.0
        %980 = vmatpush1.msra.mxu0 0.0
        %981 = vmatprep.subr.mxu0 0.0
        %982 = vmatpush1.msra.mxu0 0.0
        %983 = vmatprep.subr.mxu0 0.0
        %984 = vmatpush1.msra.mxu0 0.0
        %985 = vmatprep.subr.mxu0 0.0
        %986 = vmatpush1.msra.mxu0 0.0
        %987 = vmatprep.subr.mxu0 0.0
        %988 = vmatpush1.msra.mxu0 0.0
        %989 = vmatprep.subr.mxu0 0.0
        %990 = vmatpush1.msra.mxu0 0.0
        %991 = vmatprep.subr.mxu0 0.0
        %992 = vmatpush1.msra.mxu0 0.0
        %993 = vmatprep.subr.mxu0 0.0
        %994 = vmatpush1.msra.mxu0 0.0
        %995 = vmatprep.subr.mxu0 0.0
        %996 = vmatpush1.msra.mxu0 0.0
        %997 = vmatprep.subr.mxu0 0.0
        %998 = vmatpush1.msra.mxu0 0.0
        %999 = vmatprep.subr.mxu0 0.0
        %1000 = vmatpush1.msra.mxu0 0.0
        %1001 = vmatprep.subr.mxu0 0.0
        %1002 = vmatpush1.msra.mxu0 0.0
        %1003 = vmatprep.subr.mxu0 0.0
        %1004 = vmatpush1.msra.mxu0 0.0
        %1005 = vmatprep.subr.mxu0 0.0
        %1006 = vmatpush1.msra.mxu0 0.0
        %1007 = vmatprep.subr.mxu0 0.0
        %1008 = vmatpush1.msra.mxu0 0.0
        %1009 = vmatprep.subr.mxu0 0.0
        %1010 = vmatpush1.msra.mxu0 0.0
        %1011 = vmatprep.subr.mxu0 0.0
        %1012 = vmatpush1.msra.mxu0 0.0
        %1013 = vmatprep.subr.mxu0 0.0
        %1014 = vmatpush1.msra.mxu0 0.0
        %1015 = vmatprep.subr.mxu0 0.0
        %1016 = vmatpush1.msra.mxu0 0.0
        %1017 = vmatprep.subr.mxu0 0.0
        %1018 = vmatpush1.msra.mxu0 0.0
        %1019 = vmatprep.subr.mxu0 0.0
        %1020 = vmatpush1.msra.mxu0 0.0
        %1021 = vmatprep.subr.mxu0 0.0
        %1022 = vmatpush1.msra.mxu0 0.0
        %1023 = vmatprep.subr.mxu0 0.0
        %1024 = vmatpush1.msra.mxu0 0.0
        %1025 = vmatprep.subr.mxu0 0.0
        %1026 = vmatpush1.msra.mxu0 0.0
        %1027 = vmatprep.subr.mxu0 0.0
        %1028 = vmatpush1.msra.mxu0 0.0
        %1029 = vmatprep.subr.mxu0 0.0
        %1030 = vmatpush1.msra.mxu0 0.0
        %1031 = vmatprep.subr.mxu0 0.0
        %1032 = vmatpush1.msra.mxu0 0.0
        %1033 = vmatprep.subr.mxu0 0.0
        %1034 = vmatpush1.msra.mxu0 0.0
        %1035 = vmatprep.subr.mxu0 0.0
        %1036 = vmatpush1.msra.mxu0 0.0
        %1037 = vmatprep.subr.mxu0 0.0
        %1038 = vmatpush1.msra.mxu0 0.0
        %1039 = vmatprep.subr.mxu0 0.0
        %1040 = vmatpush1.msra.mxu0 0.0
        %1041 = vmatprep.mubr.f32.mxu0 0.0
        %1042 = vmatmul.mubr.f32.gmra.mrb[0].mxu0 %v973
        %v1043 = vpop.f32.mrb[0].mxu0
        %v1044 = vadd.f32 0.0, %v1043
        %v1045 = vpop.f32.mrb[0].mxu0
        %1046 = vmatprep.mubr.f32.mxu0 0.0
        %1047 = vmatmul.mubr.f32.gmra.mrb[0].mxu0 %v975
        %v1048 = vpop.f32.mrb[0].mxu0
        %v1049 = vadd.f32 0.0, %v1048
        %v1050 = vpop.f32.mrb[0].mxu0
        %1051 = vdwg.mxu0
        %v1052 = vsel %vm893, %v718, 0
        %v1054 = vsel %vm893, %v720, 0
        %1056 = vmatprep.subr.mxu0 0.0
        %1057 = vmatpush1.msra.mxu0 %v845
        %1058 = vmatprep.subr.mxu0 0.0
        %1059 = vmatpush1.msra.mxu0 0.0
        %1060 = vmatprep.subr.mxu0 0.0
        %1061 = vmatpush1.msra.mxu0 0.0
        %1062 = vmatprep.subr.mxu0 0.0
        %1063 = vmatpush1.msra.mxu0 0.0
        %1064 = vmatprep.subr.mxu0 0.0
        %1065 = vmatpush1.msra.mxu0 0.0
        %1066 = vmatprep.subr.mxu0 0.0
        %1067 = vmatpush1.msra.mxu0 0.0
        %1068 = vmatprep.subr.mxu0 0.0
        %1069 = vmatpush1.msra.mxu0 0.0
        %1070 = vmatprep.subr.mxu0 0.0
        %1071 = vmatpush1.msra.mxu0 0.0
        %1072 = vmatprep.subr.mxu0 0.0
        %1073 = vmatpush1.msra.mxu0 0.0
        %1074 = vmatprep.subr.mxu0 0.0
        %1075 = vmatpush1.msra.mxu0 0.0
        %1076 = vmatprep.subr.mxu0 0.0
        %1077 = vmatpush1.msra.mxu0 0.0
        %1078 = vmatprep.subr.mxu0 0.0
        %1079 = vmatpush1.msra.mxu0 0.0
        %1080 = vmatprep.subr.mxu0 0.0
        %1081 = vmatpush1.msra.mxu0 0.0
        %1082 = vmatprep.subr.mxu0 0.0
        %1083 = vmatpush1.msra.mxu0 0.0
        %1084 = vmatprep.subr.mxu0 0.0
        %1085 = vmatpush1.msra.mxu0 0.0
        %1086 = vmatprep.subr.mxu0 0.0
        %1087 = vmatpush1.msra.mxu0 0.0
        %1088 = vmatprep.subr.mxu0 0.0
        %1089 = vmatpush1.msra.mxu0 0.0
        %1090 = vmatprep.subr.mxu0 0.0
        %1091 = vmatpush1.msra.mxu0 0.0
        %1092 = vmatprep.subr.mxu0 0.0
        %1093 = vmatpush1.msra.mxu0 0.0
        %1094 = vmatprep.subr.mxu0 0.0
        %1095 = vmatpush1.msra.mxu0 0.0
        %1096 = vmatprep.subr.mxu0 0.0
        %1097 = vmatpush1.msra.mxu0 0.0
        %1098 = vmatprep.subr.mxu0 0.0
        %1099 = vmatpush1.msra.mxu0 0.0
        %1100 = vmatprep.subr.mxu0 0.0
        %1101 = vmatpush1.msra.mxu0 0.0
        %1102 = vmatprep.subr.mxu0 0.0
        %1103 = vmatpush1.msra.mxu0 0.0
        %1104 = vmatprep.subr.mxu0 0.0
        %1105 = vmatpush1.msra.mxu0 0.0
        %1106 = vmatprep.subr.mxu0 0.0
        %1107 = vmatpush1.msra.mxu0 0.0
        %1108 = vmatprep.subr.mxu0 0.0
        %1109 = vmatpush1.msra.mxu0 0.0
        %1110 = vmatprep.subr.mxu0 0.0
        %1111 = vmatpush1.msra.mxu0 0.0
        %1112 = vmatprep.subr.mxu0 0.0
        %1113 = vmatpush1.msra.mxu0 0.0
        %1114 = vmatprep.subr.mxu0 0.0
        %1115 = vmatpush1.msra.mxu0 0.0
        %1116 = vmatprep.subr.mxu0 0.0
        %1117 = vmatpush1.msra.mxu0 0.0
        %1118 = vmatprep.subr.mxu0 0.0
        %1119 = vmatpush1.msra.mxu0 0.0
        %1120 = vmatprep.mubr.f32.mxu0 0.0
        %1121 = vmatmul.mubr.f32.gmra.mrb[0].mxu0 %v1052
        %v1122 = vpop.f32.mrb[0].mxu0
        %v1123 = vadd.f32 0.0, %v1122
        %v1124 = vpop.f32.mrb[0].mxu0
        %1125 = vmatprep.mubr.f32.mxu0 0.0
        %1126 = vmatmul.mubr.f32.gmra.mrb[0].mxu0 %v1054
        %v1127 = vpop.f32.mrb[0].mxu0
        %v1128 = vadd.f32 0.0, %v1127
        %v1129 = vpop.f32.mrb[0].mxu0
        %1130 = vdwg.mxu0
        %v1131 = vsel %vm893, %v722, 0
        %v1133 = vsel %vm893, %v724, 0
        %1135 = vmatprep.subr.mxu0 0.0
        %1136 = vmatpush1.msra.mxu0 %v877
        %1137 = vmatprep.subr.mxu0 0.0
        %1138 = vmatpush1.msra.mxu0 0.0
        %1139 = vmatprep.subr.mxu0 0.0
        %1140 = vmatpush1.msra.mxu0 0.0
        %1141 = vmatprep.subr.mxu0 0.0
        %1142 = vmatpush1.msra.mxu0 0.0
        %1143 = vmatprep.subr.mxu0 0.0
        %1144 = vmatpush1.msra.mxu0 0.0
        %1145 = vmatprep.subr.mxu0 0.0
        %1146 = vmatpush1.msra.mxu0 0.0
        %1147 = vmatprep.subr.mxu0 0.0
        %1148 = vmatpush1.msra.mxu0 0.0
        %1149 = vmatprep.subr.mxu0 0.0
        %1150 = vmatpush1.msra.mxu0 0.0
        %1151 = vmatprep.subr.mxu0 0.0
        %1152 = vmatpush1.msra.mxu0 0.0
        %1153 = vmatprep.subr.mxu0 0.0
        %1154 = vmatpush1.msra.mxu0 0.0
        %1155 = vmatprep.subr.mxu0 0.0
        %1156 = vmatpush1.msra.mxu0 0.0
        %1157 = vmatprep.subr.mxu0 0.0
        %1158 = vmatpush1.msra.mxu0 0.0
        %1159 = vmatprep.subr.mxu0 0.0
        %1160 = vmatpush1.msra.mxu0 0.0
        %1161 = vmatprep.subr.mxu0 0.0
        %1162 = vmatpush1.msra.mxu0 0.0
        %1163 = vmatprep.subr.mxu0 0.0
        %1164 = vmatpush1.msra.mxu0 0.0
        %1165 = vmatprep.subr.mxu0 0.0
        %1166 = vmatpush1.msra.mxu0 0.0
        %1167 = vmatprep.subr.mxu0 0.0
        %1168 = vmatpush1.msra.mxu0 0.0
        %1169 = vmatprep.subr.mxu0 0.0
        %1170 = vmatpush1.msra.mxu0 0.0
        %1171 = vmatprep.subr.mxu0 0.0
        %1172 = vmatpush1.msra.mxu0 0.0
        %1173 = vmatprep.subr.mxu0 0.0
        %1174 = vmatpush1.msra.mxu0 0.0
        %1175 = vmatprep.subr.mxu0 0.0
        %1176 = vmatpush1.msra.mxu0 0.0
        %1177 = vmatprep.subr.mxu0 0.0
        %1178 = vmatpush1.msra.mxu0 0.0
        %1179 = vmatprep.subr.mxu0 0.0
        %1180 = vmatpush1.msra.mxu0 0.0
        %1181 = vmatprep.subr.mxu0 0.0
        %1182 = vmatpush1.msra.mxu0 0.0
        %1183 = vmatprep.subr.mxu0 0.0
        %1184 = vmatpush1.msra.mxu0 0.0
        %1185 = vmatprep.subr.mxu0 0.0
        %1186 = vmatpush1.msra.mxu0 0.0
        %1187 = vmatprep.subr.mxu0 0.0
        %1188 = vmatpush1.msra.mxu0 0.0
        %1189 = vmatprep.subr.mxu0 0.0
        %1190 = vmatpush1.msra.mxu0 0.0
        %1191 = vmatprep.subr.mxu0 0.0
        %1192 = vmatpush1.msra.mxu0 0.0
        %1193 = vmatprep.subr.mxu0 0.0
        %1194 = vmatpush1.msra.mxu0 0.0
        %1195 = vmatprep.subr.mxu0 0.0
        %1196 = vmatpush1.msra.mxu0 0.0
        %1197 = vmatprep.subr.mxu0 0.0
        %1198 = vmatpush1.msra.mxu0 0.0
        %1199 = vmatprep.mubr.f32.mxu0 0.0
        %1200 = vmatmul.mubr.f32.gmra.mrb[0].mxu0 %v1131
        %v1201 = vpop.f32.mrb[0].mxu0
        %v1202 = vadd.f32 0.0, %v1201
        %v1203 = vpop.f32.mrb[0].mxu0
        %1204 = vmatprep.mubr.f32.mxu0 0.0
        %1205 = vmatmul.mubr.f32.gmra.mrb[0].mxu0 %v1133
        %v1206 = vpop.f32.mrb[0].mxu0
        %v1207 = vadd.f32 0.0, %v1206
        %v1208 = vpop.f32.mrb[0].mxu0
        %1209 = vdwg.mxu0
        %v1210 = vmul.f32 %v965, 0.35355338
        %v1211 = vmul.f32 %v970, 0.35355338
        %v1212 = vmul.f32 %v1044, 0.35355338
        %v1213 = vmul.f32 %v1049, 0.35355338
        %v1214 = vmul.f32 %v1123, 0.35355338
        %v1215 = vmul.f32 %v1128, 0.35355338
        %v1216 = vmul.f32 %v1202, 0.35355338
        %v1217 = vmul.f32 %v1207, 0.35355338
        %v1218 = vlaneseq
        %v1219 = vshrl.u32 %v1218, 7
        %v1220 = vadd.s32 %v1219, 8
        %vm1221 = vcmp.le.s32.totalorder %v430, %v1219
        %vm1222 = vcmp.le.s32.totalorder %v430, %v1220
        %vm1223 = vcmp.ge.s32.totalorder %v1219, 0
        %vm1224 = vcmp.ge.s32.totalorder %v1220, 0
        %vm1225 = vcmp.lt.s32.totalorder %v1219, 8
        %vm1226 = vcmp.lt.s32.totalorder %v1220, 8
        %vm1227 = vmand %vm1223, %vm1225
        %vm1228 = vmand %vm1224, %vm1226
        %vm1229 = vcmp.ge.s32.totalorder %v430, 0
        %vm1230 = vcmp.lt.s32.totalorder %v430, 8
        %vm1231 = vmand %vm1229, %vm1230
        %vm1232 = vmand %vm1227, %vm1231
        %vm1233 = vmand %vm1228, %vm1231
        %vm1234 = vcmp.ge.s32.totalorder %v1219, 8
        %vm1235 = vcmp.ge.s32.totalorder %v1220, 8
        %vm1236 = vcmp.lt.s32.totalorder %v1219, 16
        %vm1237 = vcmp.lt.s32.totalorder %v1220, 16
        %vm1238 = vmand %vm1234, %vm1236
        %vm1239 = vmand %vm1235, %vm1237
        %vm1240 = vcmp.ge.s32.totalorder %v430, 8
        %vm1241 = vcmp.lt.s32.totalorder %v430, 16
        %vm1242 = vmand %vm1240, %vm1241
        %vm1243 = vmand %vm1238, %vm1242
        %vm1244 = vmand %vm1239, %vm1242
        %vm1245 = vmor %vm1232, %vm1243
        %vm1246 = vmor %vm1233, %vm1244
        %vm1247 = vmand %vm1221, %vm1245
        %vm1248 = vmand %vm1222, %vm1246
        %v1249 = vsel %vm1247, 1, 0
        %v1250 = vsel %vm1248, 1, 0
        %vm1251 = vcmp.eq.s32.totalorder %v1249, 1
        %vm1252 = vcmp.eq.s32.totalorder %v1250, 1
        %v1253 = vsel %vm1251, %v1210, -1e+30
        %v1254 = vsel %vm1252, %v1211, -1e+30
        %v1255 = vsel %vm1251, %v1212, -1e+30
        %v1256 = vsel %vm1252, %v1213, -1e+30
        %v1257 = vsel %vm1251, %v1214, -1e+30
        %v1258 = vsel %vm1252, %v1215, -1e+30
        %v1259 = vsel %vm1251, %v1216, -1e+30
        %v1260 = vsel %vm1252, %v1217, -1e+30
        %vm1261 = vcmask 130048
        %v1262 = vsel %vm1261, %v1253, -inf
        %1263 = vmax.xlane.f32.xlu0 %v1262
        %v1264 = vpop.xlane.xlu0 %1263
        %v1265 = vsel %vm1261, %v1254, -inf
        %1266 = vmax.xlane.f32.xlu0 %v1265
        %v1267 = vpop.xlane.xlu0 %1266
        %v1268 = vsel %vm1261, %v1255, -inf
        %1269 = vmax.xlane.f32.xlu0 %v1268
        %v1270 = vpop.xlane.xlu0 %1269
        %v1271 = vsel %vm1261, %v1256, -inf
        %1272 = vmax.xlane.f32.xlu0 %v1271
        %v1273 = vpop.xlane.xlu0 %1272
        %v1274 = vsel %vm1261, %v1257, -inf
        %1275 = vmax.xlane.f32.xlu0 %v1274
        %v1276 = vpop.xlane.xlu0 %1275
        %v1277 = vsel %vm1261, %v1258, -inf
        %1278 = vmax.xlane.f32.xlu0 %v1277
        %v1279 = vpop.xlane.xlu0 %1278
        %v1280 = vsel %vm1261, %v1259, -inf
        %1281 = vmax.xlane.f32.xlu0 %v1280
        %v1282 = vpop.xlane.xlu0 %1281
        %v1283 = vsel %vm1261, %v1260, -inf
        %1284 = vmax.xlane.f32.xlu0 %v1283
        %v1285 = vpop.xlane.xlu0 %1284
        %v1286 = vsub.f32 %v1253, %v1264
        %v1287 = vsub.f32 %v1254, %v1267
        %v1288 = vsub.f32 %v1255, %v1270
        %v1289 = vsub.f32 %v1256, %v1273
        %v1290 = vsub.f32 %v1257, %v1276
        %v1291 = vsub.f32 %v1258, %v1279
        %v1292 = vsub.f32 %v1259, %v1282
        %v1293 = vsub.f32 %v1260, %v1285
        %v1294 = vmul.f32 %v1286, 1.442695
        %v1295 = vpow.pop %v1294
        %v1296 = vmul.f32 %v1287, 1.442695
        %v1297 = vpow.pop %v1296
        %v1298 = vmul.f32 %v1288, 1.442695
        %v1299 = vpow.pop %v1298
        %v1300 = vmul.f32 %v1289, 1.442695
        %v1301 = vpow.pop %v1300
        %v1302 = vmul.f32 %v1290, 1.442695
        %v1303 = vpow.pop %v1302
        %v1304 = vmul.f32 %v1291, 1.442695
        %v1305 = vpow.pop %v1304
        %v1306 = vmul.f32 %v1292, 1.442695
        %v1307 = vpow.pop %v1306
        %v1308 = vmul.f32 %v1293, 1.442695
        %v1309 = vpow.pop %v1308
        %v1310 = vsel %vm1261, %v1295, 0.0
        %1311 = vadd.xlane.f32.xlu0 %v1310
        %v1312 = vpop.xlane.xlu0 %1311
        %v1313 = vsel %vm1261, %v1297, 0.0
        %1314 = vadd.xlane.f32.xlu0 %v1313
        %v1315 = vpop.xlane.xlu0 %1314
        %v1316 = vsel %vm1261, %v1299, 0.0
        %1317 = vadd.xlane.f32.xlu0 %v1316
        %v1318 = vpop.xlane.xlu0 %1317
        %v1319 = vsel %vm1261, %v1301, 0.0
        %1320 = vadd.xlane.f32.xlu0 %v1319
        %v1321 = vpop.xlane.xlu0 %1320
        %v1322 = vsel %vm1261, %v1303, 0.0
        %1323 = vadd.xlane.f32.xlu0 %v1322
        %v1324 = vpop.xlane.xlu0 %1323
        %v1325 = vsel %vm1261, %v1305, 0.0
        %1326 = vadd.xlane.f32.xlu0 %v1325
        %v1327 = vpop.xlane.xlu0 %1326
        %v1328 = vsel %vm1261, %v1307, 0.0
        %1329 = vadd.xlane.f32.xlu0 %v1328
        %v1330 = vpop.xlane.xlu0 %1329
        %v1331 = vsel %vm1261, %v1309, 0.0
        %1332 = vadd.xlane.f32.xlu0 %v1331
        %v1333 = vpop.xlane.xlu0 %1332
        %v1334 = vrcp.pop %v1312
        %v1335 = vmul.f32 %v1295, %v1334
        %v1336 = vrcp.pop %v1315
        %v1337 = vmul.f32 %v1297, %v1336
        %v1338 = vrcp.pop %v1318
        %v1339 = vmul.f32 %v1299, %v1338
        %v1340 = vrcp.pop %v1321
        %v1341 = vmul.f32 %v1301, %v1340
        %v1342 = vrcp.pop %v1324
        %v1343 = vmul.f32 %v1303, %v1342
        %v1344 = vrcp.pop %v1327
        %v1345 = vmul.f32 %v1305, %v1344
        %v1346 = vrcp.pop %v1330
        %v1347 = vmul.f32 %v1307, %v1346
        %v1348 = vrcp.pop %v1333
        %v1349 = vmul.f32 %v1309, %v1348
        %1350 = vxpose.xlu0.b32.start [1/16] %v705, 128
        %1351 = vxpose.xlu0.b32.cont [2/16] %v708, 128
        %1352 = vxpose.xlu0.b32.cont [3/16] 0.0, 128
        %1353 = vxpose.xlu0.b32.cont [4/16] 0.0, 128
        %1354 = vxpose.xlu0.b32.cont [5/16] 0.0, 128
        %1355 = vxpose.xlu0.b32.cont [6/16] 0.0, 128
        %1356 = vxpose.xlu0.b32.cont [7/16] 0.0, 128
        %1357 = vxpose.xlu0.b32.cont [8/16] 0.0, 128
        %1358 = vxpose.xlu0.b32.cont [9/16] 0.0, 128
        %1359 = vxpose.xlu0.b32.cont [10/16] 0.0, 128
        %1360 = vxpose.xlu0.b32.cont [11/16] 0.0, 128
        %1361 = vxpose.xlu0.b32.cont [12/16] 0.0, 128
        %1362 = vxpose.xlu0.b32.cont [13/16] 0.0, 128
        %1363 = vxpose.xlu0.b32.cont [14/16] 0.0, 128
        %1364 = vxpose.xlu0.b32.cont [15/16] 0.0, 128
        %1365 = vxpose.xlu0.b32.end [16/16] 0.0, 128
        %v1366 = vpop.trf.xlu0
        %v1367 = vpop.trf.xlu0
        %v1368 = vpop.trf.xlu0
        %v1369 = vpop.trf.xlu0
        %v1370 = vpop.trf.xlu0
        %v1371 = vpop.trf.xlu0
        %v1372 = vpop.trf.xlu0
        %v1373 = vpop.trf.xlu0
        %v1374 = vpop.trf.xlu0
        %v1375 = vpop.trf.xlu0
        %v1376 = vpop.trf.xlu0
        %v1377 = vpop.trf.xlu0
        %v1378 = vpop.trf.xlu0
        %v1379 = vpop.trf.xlu0
        %v1380 = vpop.trf.xlu0
        %v1381 = vpop.trf.xlu0
        %1382 = vxpose.xlu0.b32.start [1/16] %v748, 128
        %1383 = vxpose.xlu0.b32.cont [2/16] %v750, 128
        %1384 = vxpose.xlu0.b32.cont [3/16] 0.0, 128
        %1385 = vxpose.xlu0.b32.cont [4/16] 0.0, 128
        %1386 = vxpose.xlu0.b32.cont [5/16] 0.0, 128
        %1387 = vxpose.xlu0.b32.cont [6/16] 0.0, 128
        %1388 = vxpose.xlu0.b32.cont [7/16] 0.0, 128
        %1389 = vxpose.xlu0.b32.cont [8/16] 0.0, 128
        %1390 = vxpose.xlu0.b32.cont [9/16] 0.0, 128
        %1391 = vxpose.xlu0.b32.cont [10/16] 0.0, 128
        %1392 = vxpose.xlu0.b32.cont [11/16] 0.0, 128
        %1393 = vxpose.xlu0.b32.cont [12/16] 0.0, 128
        %1394 = vxpose.xlu0.b32.cont [13/16] 0.0, 128
        %1395 = vxpose.xlu0.b32.cont [14/16] 0.0, 128
        %1396 = vxpose.xlu0.b32.cont [15/16] 0.0, 128
        %1397 = vxpose.xlu0.b32.end [16/16] 0.0, 128
        %v1398 = vpop.trf.xlu0
        %v1399 = vpop.trf.xlu0
        %v1400 = vpop.trf.xlu0
        %v1401 = vpop.trf.xlu0
        %v1402 = vpop.trf.xlu0
        %v1403 = vpop.trf.xlu0
        %v1404 = vpop.trf.xlu0
        %v1405 = vpop.trf.xlu0
        %v1406 = vpop.trf.xlu0
        %v1407 = vpop.trf.xlu0
        %v1408 = vpop.trf.xlu0
        %v1409 = vpop.trf.xlu0
        %v1410 = vpop.trf.xlu0
        %v1411 = vpop.trf.xlu0
        %v1412 = vpop.trf.xlu0
        %v1413 = vpop.trf.xlu0
        %1414 = vxpose.xlu0.b32.start [1/16] %v754, 128
        %1415 = vxpose.xlu0.b32.cont [2/16] %v756, 128
        %1416 = vxpose.xlu0.b32.cont [3/16] 0.0, 128
        %1417 = vxpose.xlu0.b32.cont [4/16] 0.0, 128
        %1418 = vxpose.xlu0.b32.cont [5/16] 0.0, 128
        %1419 = vxpose.xlu0.b32.cont [6/16] 0.0, 128
        %1420 = vxpose.xlu0.b32.cont [7/16] 0.0, 128
        %1421 = vxpose.xlu0.b32.cont [8/16] 0.0, 128
        %1422 = vxpose.xlu0.b32.cont [9/16] 0.0, 128
        %1423 = vxpose.xlu0.b32.cont [10/16] 0.0, 128
        %1424 = vxpose.xlu0.b32.cont [11/16] 0.0, 128
        %1425 = vxpose.xlu0.b32.cont [12/16] 0.0, 128
        %1426 = vxpose.xlu0.b32.cont [13/16] 0.0, 128
        %1427 = vxpose.xlu0.b32.cont [14/16] 0.0, 128
        %1428 = vxpose.xlu0.b32.cont [15/16] 0.0, 128
        %1429 = vxpose.xlu0.b32.end [16/16] 0.0, 128
        %v1430 = vpop.trf.xlu0
        %v1431 = vpop.trf.xlu0
        %v1432 = vpop.trf.xlu0
        %v1433 = vpop.trf.xlu0
        %v1434 = vpop.trf.xlu0
        %v1435 = vpop.trf.xlu0
        %v1436 = vpop.trf.xlu0
        %v1437 = vpop.trf.xlu0
        %v1438 = vpop.trf.xlu0
        %v1439 = vpop.trf.xlu0
        %v1440 = vpop.trf.xlu0
        %v1441 = vpop.trf.xlu0
        %v1442 = vpop.trf.xlu0
        %v1443 = vpop.trf.xlu0
        %v1444 = vpop.trf.xlu0
        %v1445 = vpop.trf.xlu0
        %1446 = vxpose.xlu0.b32.start [1/16] %v760, 128
        %1447 = vxpose.xlu0.b32.cont [2/16] %v762, 128
        %1448 = vxpose.xlu0.b32.cont [3/16] 0.0, 128
        %1449 = vxpose.xlu0.b32.cont [4/16] 0.0, 128
        %1450 = vxpose.xlu0.b32.cont [5/16] 0.0, 128
        %1451 = vxpose.xlu0.b32.cont [6/16] 0.0, 128
        %1452 = vxpose.xlu0.b32.cont [7/16] 0.0, 128
        %1453 = vxpose.xlu0.b32.cont [8/16] 0.0, 128
        %1454 = vxpose.xlu0.b32.cont [9/16] 0.0, 128
        %1455 = vxpose.xlu0.b32.cont [10/16] 0.0, 128
        %1456 = vxpose.xlu0.b32.cont [11/16] 0.0, 128
        %1457 = vxpose.xlu0.b32.cont [12/16] 0.0, 128
        %1458 = vxpose.xlu0.b32.cont [13/16] 0.0, 128
        %1459 = vxpose.xlu0.b32.cont [14/16] 0.0, 128
        %1460 = vxpose.xlu0.b32.cont [15/16] 0.0, 128
        %1461 = vxpose.xlu0.b32.end [16/16] 0.0, 128
        %v1462 = vpop.trf.xlu0
        %v1463 = vpop.trf.xlu0
        %v1464 = vpop.trf.xlu0
        %v1465 = vpop.trf.xlu0
        %v1466 = vpop.trf.xlu0
        %v1467 = vpop.trf.xlu0
        %v1468 = vpop.trf.xlu0
        %v1469 = vpop.trf.xlu0
        %v1470 = vpop.trf.xlu0
        %v1471 = vpop.trf.xlu0
        %v1472 = vpop.trf.xlu0
        %v1473 = vpop.trf.xlu0
        %v1474 = vpop.trf.xlu0
        %v1475 = vpop.trf.xlu0
        %v1476 = vpop.trf.xlu0
        %v1477 = vpop.trf.xlu0
        %v1479 = vsel %vm1261, %v1366, 0
        %v1482 = vsel %vm1261, %v1335, 0
        %v1485 = vsel %vm1261, %v1337, 0
        %1487 = vmatprep.subr.mxu0 0.0
        %1488 = vmatpush1.xpose.msra.mxu0 %v1482
        %1489 = vmatprep.subr.mxu0 0.0
        %1490 = vmatpush1.xpose.msra.mxu0 %v1485
        %1491 = vmatprep.subr.mxu0 0.0
        %1492 = vmatpush1.xpose.msra.mxu0 0.0
        %1493 = vmatprep.subr.mxu0 0.0
        %1494 = vmatpush1.xpose.msra.mxu0 0.0
        %1495 = vmatprep.subr.mxu0 0.0
        %1496 = vmatpush1.xpose.msra.mxu0 0.0
        %1497 = vmatprep.subr.mxu0 0.0
        %1498 = vmatpush1.xpose.msra.mxu0 0.0
        %1499 = vmatprep.subr.mxu0 0.0
        %1500 = vmatpush1.xpose.msra.mxu0 0.0
        %1501 = vmatprep.subr.mxu0 0.0
        %1502 = vmatpush1.xpose.msra.mxu0 0.0
        %1503 = vmatprep.subr.mxu0 0.0
        %1504 = vmatpush1.xpose.msra.mxu0 0.0
        %1505 = vmatprep.subr.mxu0 0.0
        %1506 = vmatpush1.xpose.msra.mxu0 0.0
        %1507 = vmatprep.subr.mxu0 0.0
        %1508 = vmatpush1.xpose.msra.mxu0 0.0
        %1509 = vmatprep.subr.mxu0 0.0
        %1510 = vmatpush1.xpose.msra.mxu0 0.0
        %1511 = vmatprep.subr.mxu0 0.0
        %1512 = vmatpush1.xpose.msra.mxu0 0.0
        %1513 = vmatprep.subr.mxu0 0.0
        %1514 = vmatpush1.xpose.msra.mxu0 0.0
        %1515 = vmatprep.subr.mxu0 0.0
        %1516 = vmatpush1.xpose.msra.mxu0 0.0
        %1517 = vmatprep.subr.mxu0 0.0
        %1518 = vmatpush1.xpose.msra.mxu0 0.0
        %1519 = vmatprep.subr.mxu0 0.0
        %1520 = vmatpush1.xpose.msra.mxu0 0.0
        %1521 = vmatprep.subr.mxu0 0.0
        %1522 = vmatpush1.xpose.msra.mxu0 0.0
        %1523 = vmatprep.subr.mxu0 0.0
        %1524 = vmatpush1.xpose.msra.mxu0 0.0
        %1525 = vmatprep.subr.mxu0 0.0
        %1526 = vmatpush1.xpose.msra.mxu0 0.0
        %1527 = vmatprep.subr.mxu0 0.0
        %1528 = vmatpush1.xpose.msra.mxu0 0.0
        %1529 = vmatprep.subr.mxu0 0.0
        %1530 = vmatpush1.xpose.msra.mxu0 0.0
        %1531 = vmatprep.subr.mxu0 0.0
        %1532 = vmatpush1.xpose.msra.mxu0 0.0
        %1533 = vmatprep.subr.mxu0 0.0
        %1534 = vmatpush1.xpose.msra.mxu0 0.0
        %1535 = vmatprep.subr.mxu0 0.0
        %1536 = vmatpush1.xpose.msra.mxu0 0.0
        %1537 = vmatprep.subr.mxu0 0.0
        %1538 = vmatpush1.xpose.msra.mxu0 0.0
        %1539 = vmatprep.subr.mxu0 0.0
        %1540 = vmatpush1.xpose.msra.mxu0 0.0
        %1541 = vmatprep.subr.mxu0 0.0
        %1542 = vmatpush1.xpose.msra.mxu0 0.0
        %1543 = vmatprep.subr.mxu0 0.0
        %1544 = vmatpush1.xpose.msra.mxu0 0.0
        %1545 = vmatprep.subr.mxu0 0.0
        %1546 = vmatpush1.xpose.msra.mxu0 0.0
        %1547 = vmatprep.subr.mxu0 0.0
        %1548 = vmatpush1.xpose.msra.mxu0 0.0
        %1549 = vmatprep.subr.mxu0 0.0
        %1550 = vmatpush1.xpose.msra.mxu0 0.0
        %1551 = vmatprep.mubr.f32.mxu0 0.0
        %1552 = vmatmul.mubr.f32.gmra.mrb[0].mxu0 %v1479
        %v1553 = vpop.f32.mrb[0].mxu0
        %v1554 = vadd.f32 0.0, %v1553
        %v1555 = vpop.f32.mrb[0].mxu0
        %1556 = vdwg.mxu0
        %v1558 = vsel %vm1261, %v1398, 0
        %v1561 = vsel %vm1261, %v1339, 0
        %v1564 = vsel %vm1261, %v1341, 0
        %1566 = vmatprep.subr.mxu0 0.0
        %1567 = vmatpush1.xpose.msra.mxu0 %v1561
        %1568 = vmatprep.subr.mxu0 0.0
        %1569 = vmatpush1.xpose.msra.mxu0 %v1564
        %1570 = vmatprep.subr.mxu0 0.0
        %1571 = vmatpush1.xpose.msra.mxu0 0.0
        %1572 = vmatprep.subr.mxu0 0.0
        %1573 = vmatpush1.xpose.msra.mxu0 0.0
        %1574 = vmatprep.subr.mxu0 0.0
        %1575 = vmatpush1.xpose.msra.mxu0 0.0
        %1576 = vmatprep.subr.mxu0 0.0
        %1577 = vmatpush1.xpose.msra.mxu0 0.0
        %1578 = vmatprep.subr.mxu0 0.0
        %1579 = vmatpush1.xpose.msra.mxu0 0.0
        %1580 = vmatprep.subr.mxu0 0.0
        %1581 = vmatpush1.xpose.msra.mxu0 0.0
        %1582 = vmatprep.subr.mxu0 0.0
        %1583 = vmatpush1.xpose.msra.mxu0 0.0
        %1584 = vmatprep.subr.mxu0 0.0
        %1585 = vmatpush1.xpose.msra.mxu0 0.0
        %1586 = vmatprep.subr.mxu0 0.0
        %1587 = vmatpush1.xpose.msra.mxu0 0.0
        %1588 = vmatprep.subr.mxu0 0.0
        %1589 = vmatpush1.xpose.msra.mxu0 0.0
        %1590 = vmatprep.subr.mxu0 0.0
        %1591 = vmatpush1.xpose.msra.mxu0 0.0
        %1592 = vmatprep.subr.mxu0 0.0
        %1593 = vmatpush1.xpose.msra.mxu0 0.0
        %1594 = vmatprep.subr.mxu0 0.0
        %1595 = vmatpush1.xpose.msra.mxu0 0.0
        %1596 = vmatprep.subr.mxu0 0.0
        %1597 = vmatpush1.xpose.msra.mxu0 0.0
        %1598 = vmatprep.subr.mxu0 0.0
        %1599 = vmatpush1.xpose.msra.mxu0 0.0
        %1600 = vmatprep.subr.mxu0 0.0
        %1601 = vmatpush1.xpose.msra.mxu0 0.0
        %1602 = vmatprep.subr.mxu0 0.0
        %1603 = vmatpush1.xpose.msra.mxu0 0.0
        %1604 = vmatprep.subr.mxu0 0.0
        %1605 = vmatpush1.xpose.msra.mxu0 0.0
        %1606 = vmatprep.subr.mxu0 0.0
        %1607 = vmatpush1.xpose.msra.mxu0 0.0
        %1608 = vmatprep.subr.mxu0 0.0
        %1609 = vmatpush1.xpose.msra.mxu0 0.0
        %1610 = vmatprep.subr.mxu0 0.0
        %1611 = vmatpush1.xpose.msra.mxu0 0.0
        %1612 = vmatprep.subr.mxu0 0.0
        %1613 = vmatpush1.xpose.msra.mxu0 0.0
        %1614 = vmatprep.subr.mxu0 0.0
        %1615 = vmatpush1.xpose.msra.mxu0 0.0
        %1616 = vmatprep.subr.mxu0 0.0
        %1617 = vmatpush1.xpose.msra.mxu0 0.0
        %1618 = vmatprep.subr.mxu0 0.0
        %1619 = vmatpush1.xpose.msra.mxu0 0.0
        %1620 = vmatprep.subr.mxu0 0.0
        %1621 = vmatpush1.xpose.msra.mxu0 0.0
        %1622 = vmatprep.subr.mxu0 0.0
        %1623 = vmatpush1.xpose.msra.mxu0 0.0
        %1624 = vmatprep.subr.mxu0 0.0
        %1625 = vmatpush1.xpose.msra.mxu0 0.0
        %1626 = vmatprep.subr.mxu0 0.0
        %1627 = vmatpush1.xpose.msra.mxu0 0.0
        %1628 = vmatprep.subr.mxu0 0.0
        %1629 = vmatpush1.xpose.msra.mxu0 0.0
        %1630 = vmatprep.mubr.f32.mxu0 0.0
        %1631 = vmatmul.mubr.f32.gmra.mrb[0].mxu0 %v1558
        %v1632 = vpop.f32.mrb[0].mxu0
        %v1633 = vadd.f32 0.0, %v1632
        %v1634 = vpop.f32.mrb[0].mxu0
        %1635 = vdwg.mxu0
        %v1637 = vsel %vm1261, %v1430, 0
        %v1640 = vsel %vm1261, %v1343, 0
        %v1643 = vsel %vm1261, %v1345, 0
        %1645 = vmatprep.subr.mxu0 0.0
        %1646 = vmatpush1.xpose.msra.mxu0 %v1640
        %1647 = vmatprep.subr.mxu0 0.0
        %1648 = vmatpush1.xpose.msra.mxu0 %v1643
        %1649 = vmatprep.subr.mxu0 0.0
        %1650 = vmatpush1.xpose.msra.mxu0 0.0
        %1651 = vmatprep.subr.mxu0 0.0
        %1652 = vmatpush1.xpose.msra.mxu0 0.0
        %1653 = vmatprep.subr.mxu0 0.0
        %1654 = vmatpush1.xpose.msra.mxu0 0.0
        %1655 = vmatprep.subr.mxu0 0.0
        %1656 = vmatpush1.xpose.msra.mxu0 0.0
        %1657 = vmatprep.subr.mxu0 0.0
        %1658 = vmatpush1.xpose.msra.mxu0 0.0
        %1659 = vmatprep.subr.mxu0 0.0
        %1660 = vmatpush1.xpose.msra.mxu0 0.0
        %1661 = vmatprep.subr.mxu0 0.0
        %1662 = vmatpush1.xpose.msra.mxu0 0.0
        %1663 = vmatprep.subr.mxu0 0.0
        %1664 = vmatpush1.xpose.msra.mxu0 0.0
        %1665 = vmatprep.subr.mxu0 0.0
        %1666 = vmatpush1.xpose.msra.mxu0 0.0
        %1667 = vmatprep.subr.mxu0 0.0
        %1668 = vmatpush1.xpose.msra.mxu0 0.0
        %1669 = vmatprep.subr.mxu0 0.0
        %1670 = vmatpush1.xpose.msra.mxu0 0.0
        %1671 = vmatprep.subr.mxu0 0.0
        %1672 = vmatpush1.xpose.msra.mxu0 0.0
        %1673 = vmatprep.subr.mxu0 0.0
        %1674 = vmatpush1.xpose.msra.mxu0 0.0
        %1675 = vmatprep.subr.mxu0 0.0
        %1676 = vmatpush1.xpose.msra.mxu0 0.0
        %1677 = vmatprep.subr.mxu0 0.0
        %1678 = vmatpush1.xpose.msra.mxu0 0.0
        %1679 = vmatprep.subr.mxu0 0.0
        %1680 = vmatpush1.xpose.msra.mxu0 0.0
        %1681 = vmatprep.subr.mxu0 0.0
        %1682 = vmatpush1.xpose.msra.mxu0 0.0
        %1683 = vmatprep.subr.mxu0 0.0
        %1684 = vmatpush1.xpose.msra.mxu0 0.0
        %1685 = vmatprep.subr.mxu0 0.0
        %1686 = vmatpush1.xpose.msra.mxu0 0.0
        %1687 = vmatprep.subr.mxu0 0.0
        %1688 = vmatpush1.xpose.msra.mxu0 0.0
        %1689 = vmatprep.subr.mxu0 0.0
        %1690 = vmatpush1.xpose.msra.mxu0 0.0
        %1691 = vmatprep.subr.mxu0 0.0
        %1692 = vmatpush1.xpose.msra.mxu0 0.0
        %1693 = vmatprep.subr.mxu0 0.0
        %1694 = vmatpush1.xpose.msra.mxu0 0.0
        %1695 = vmatprep.subr.mxu0 0.0
        %1696 = vmatpush1.xpose.msra.mxu0 0.0
        %1697 = vmatprep.subr.mxu0 0.0
        %1698 = vmatpush1.xpose.msra.mxu0 0.0
        %1699 = vmatprep.subr.mxu0 0.0
        %1700 = vmatpush1.xpose.msra.mxu0 0.0
        %1701 = vmatprep.subr.mxu0 0.0
        %1702 = vmatpush1.xpose.msra.mxu0 0.0
        %1703 = vmatprep.subr.mxu0 0.0
        %1704 = vmatpush1.xpose.msra.mxu0 0.0
        %1705 = vmatprep.subr.mxu0 0.0
        %1706 = vmatpush1.xpose.msra.mxu0 0.0
        %1707 = vmatprep.subr.mxu0 0.0
        %1708 = vmatpush1.xpose.msra.mxu0 0.0
        %1709 = vmatprep.mubr.f32.mxu0 0.0
        %1710 = vmatmul.mubr.f32.gmra.mrb[0].mxu0 %v1637
        %v1711 = vpop.f32.mrb[0].mxu0
        %v1712 = vadd.f32 0.0, %v1711
        %v1713 = vpop.f32.mrb[0].mxu0
        %1714 = vdwg.mxu0
        %v1716 = vsel %vm1261, %v1462, 0
        %v1719 = vsel %vm1261, %v1347, 0
        %v1722 = vsel %vm1261, %v1349, 0
        %1724 = vmatprep.subr.mxu0 0.0
        %1725 = vmatpush1.xpose.msra.mxu0 %v1719
        %1726 = vmatprep.subr.mxu0 0.0
        %1727 = vmatpush1.xpose.msra.mxu0 %v1722
        %1728 = vmatprep.subr.mxu0 0.0
        %1729 = vmatpush1.xpose.msra.mxu0 0.0
        %1730 = vmatprep.subr.mxu0 0.0
        %1731 = vmatpush1.xpose.msra.mxu0 0.0
        %1732 = vmatprep.subr.mxu0 0.0
        %1733 = vmatpush1.xpose.msra.mxu0 0.0
        %1734 = vmatprep.subr.mxu0 0.0
        %1735 = vmatpush1.xpose.msra.mxu0 0.0
        %1736 = vmatprep.subr.mxu0 0.0
        %1737 = vmatpush1.xpose.msra.mxu0 0.0
        %1738 = vmatprep.subr.mxu0 0.0
        %1739 = vmatpush1.xpose.msra.mxu0 0.0
        %1740 = vmatprep.subr.mxu0 0.0
        %1741 = vmatpush1.xpose.msra.mxu0 0.0
        %1742 = vmatprep.subr.mxu0 0.0
        %1743 = vmatpush1.xpose.msra.mxu0 0.0
        %1744 = vmatprep.subr.mxu0 0.0
        %1745 = vmatpush1.xpose.msra.mxu0 0.0
        %1746 = vmatprep.subr.mxu0 0.0
        %1747 = vmatpush1.xpose.msra.mxu0 0.0
        %1748 = vmatprep.subr.mxu0 0.0
        %1749 = vmatpush1.xpose.msra.mxu0 0.0
        %1750 = vmatprep.subr.mxu0 0.0
        %1751 = vmatpush1.xpose.msra.mxu0 0.0
        %1752 = vmatprep.subr.mxu0 0.0
        %1753 = vmatpush1.xpose.msra.mxu0 0.0
        %1754 = vmatprep.subr.mxu0 0.0
        %1755 = vmatpush1.xpose.msra.mxu0 0.0
        %1756 = vmatprep.subr.mxu0 0.0
        %1757 = vmatpush1.xpose.msra.mxu0 0.0
        %1758 = vmatprep.subr.mxu0 0.0
        %1759 = vmatpush1.xpose.msra.mxu0 0.0
        %1760 = vmatprep.subr.mxu0 0.0
        %1761 = vmatpush1.xpose.msra.mxu0 0.0
        %1762 = vmatprep.subr.mxu0 0.0
        %1763 = vmatpush1.xpose.msra.mxu0 0.0
        %1764 = vmatprep.subr.mxu0 0.0
        %1765 = vmatpush1.xpose.msra.mxu0 0.0
        %1766 = vmatprep.subr.mxu0 0.0
        %1767 = vmatpush1.xpose.msra.mxu0 0.0
        %1768 = vmatprep.subr.mxu0 0.0
        %1769 = vmatpush1.xpose.msra.mxu0 0.0
        %1770 = vmatprep.subr.mxu0 0.0
        %1771 = vmatpush1.xpose.msra.mxu0 0.0
        %1772 = vmatprep.subr.mxu0 0.0
        %1773 = vmatpush1.xpose.msra.mxu0 0.0
        %1774 = vmatprep.subr.mxu0 0.0
        %1775 = vmatpush1.xpose.msra.mxu0 0.0
        %1776 = vmatprep.subr.mxu0 0.0
        %1777 = vmatpush1.xpose.msra.mxu0 0.0
        %1778 = vmatprep.subr.mxu0 0.0
        %1779 = vmatpush1.xpose.msra.mxu0 0.0
        %1780 = vmatprep.subr.mxu0 0.0
        %1781 = vmatpush1.xpose.msra.mxu0 0.0
        %1782 = vmatprep.subr.mxu0 0.0
        %1783 = vmatpush1.xpose.msra.mxu0 0.0
        %1784 = vmatprep.subr.mxu0 0.0
        %1785 = vmatpush1.xpose.msra.mxu0 0.0
        %1786 = vmatprep.subr.mxu0 0.0
        %1787 = vmatpush1.xpose.msra.mxu0 0.0
        %1788 = vmatprep.mubr.f32.mxu0 0.0
        %1789 = vmatmul.mubr.f32.gmra.mrb[0].mxu0 %v1716
        %v1790 = vpop.f32.mrb[0].mxu0
        %v1791 = vadd.f32 0.0, %v1790
        %v1792 = vpop.f32.mrb[0].mxu0
        %1793 = vdwg.mxu0
        %1794 = vxpose.xlu0.b32.start [1/16] %v1554, 128
        %1795 = vxpose.xlu0.b32.cont [2/16] 0.0, 128
        %1796 = vxpose.xlu0.b32.cont [3/16] 0.0, 128
        %1797 = vxpose.xlu0.b32.cont [4/16] 0.0, 128
        %1798 = vxpose.xlu0.b32.cont [5/16] 0.0, 128
        %1799 = vxpose.xlu0.b32.cont [6/16] 0.0, 128
        %1800 = vxpose.xlu0.b32.cont [7/16] 0.0, 128
        %1801 = vxpose.xlu0.b32.cont [8/16] 0.0, 128
        %1802 = vxpose.xlu0.b32.cont [9/16] 0.0, 128
        %1803 = vxpose.xlu0.b32.cont [10/16] 0.0, 128
        %1804 = vxpose.xlu0.b32.cont [11/16] 0.0, 128
        %1805 = vxpose.xlu0.b32.cont [12/16] 0.0, 128
        %1806 = vxpose.xlu0.b32.cont [13/16] 0.0, 128
        %1807 = vxpose.xlu0.b32.cont [14/16] 0.0, 128
        %1808 = vxpose.xlu0.b32.cont [15/16] 0.0, 128
        %1809 = vxpose.xlu0.b32.end [16/16] 0.0, 128
        %v1810 = vpop.trf.xlu0
        %v1811 = vpop.trf.xlu0
        %v1812 = vpop.trf.xlu0
        %v1813 = vpop.trf.xlu0
        %v1814 = vpop.trf.xlu0
        %v1815 = vpop.trf.xlu0
        %v1816 = vpop.trf.xlu0
        %v1817 = vpop.trf.xlu0
        %v1818 = vpop.trf.xlu0
        %v1819 = vpop.trf.xlu0
        %v1820 = vpop.trf.xlu0
        %v1821 = vpop.trf.xlu0
        %v1822 = vpop.trf.xlu0
        %v1823 = vpop.trf.xlu0
        %v1824 = vpop.trf.xlu0
        %v1825 = vpop.trf.xlu0
        %1826 = vxpose.xlu0.b32.start [1/16] %v1633, 128
        %1827 = vxpose.xlu0.b32.cont [2/16] 0.0, 128
        %1828 = vxpose.xlu0.b32.cont [3/16] 0.0, 128
        %1829 = vxpose.xlu0.b32.cont [4/16] 0.0, 128
        %1830 = vxpose.xlu0.b32.cont [5/16] 0.0, 128
        %1831 = vxpose.xlu0.b32.cont [6/16] 0.0, 128
        %1832 = vxpose.xlu0.b32.cont [7/16] 0.0, 128
        %1833 = vxpose.xlu0.b32.cont [8/16] 0.0, 128
        %1834 = vxpose.xlu0.b32.cont [9/16] 0.0, 128
        %1835 = vxpose.xlu0.b32.cont [10/16] 0.0, 128
        %1836 = vxpose.xlu0.b32.cont [11/16] 0.0, 128
        %1837 = vxpose.xlu0.b32.cont [12/16] 0.0, 128
        %1838 = vxpose.xlu0.b32.cont [13/16] 0.0, 128
        %1839 = vxpose.xlu0.b32.cont [14/16] 0.0, 128
        %1840 = vxpose.xlu0.b32.cont [15/16] 0.0, 128
        %1841 = vxpose.xlu0.b32.end [16/16] 0.0, 128
        %v1842 = vpop.trf.xlu0
        %v1843 = vpop.trf.xlu0
        %v1844 = vpop.trf.xlu0
        %v1845 = vpop.trf.xlu0
        %v1846 = vpop.trf.xlu0
        %v1847 = vpop.trf.xlu0
        %v1848 = vpop.trf.xlu0
        %v1849 = vpop.trf.xlu0
        %v1850 = vpop.trf.xlu0
        %v1851 = vpop.trf.xlu0
        %v1852 = vpop.trf.xlu0
        %v1853 = vpop.trf.xlu0
        %v1854 = vpop.trf.xlu0
        %v1855 = vpop.trf.xlu0
        %v1856 = vpop.trf.xlu0
        %v1857 = vpop.trf.xlu0
        %1858 = vxpose.xlu0.b32.start [1/16] %v1712, 128
        %1859 = vxpose.xlu0.b32.cont [2/16] 0.0, 128
        %1860 = vxpose.xlu0.b32.cont [3/16] 0.0, 128
        %1861 = vxpose.xlu0.b32.cont [4/16] 0.0, 128
        %1862 = vxpose.xlu0.b32.cont [5/16] 0.0, 128
        %1863 = vxpose.xlu0.b32.cont [6/16] 0.0, 128
        %1864 = vxpose.xlu0.b32.cont [7/16] 0.0, 128
        %1865 = vxpose.xlu0.b32.cont [8/16] 0.0, 128
        %1866 = vxpose.xlu0.b32.cont [9/16] 0.0, 128
        %1867 = vxpose.xlu0.b32.cont [10/16] 0.0, 128
        %1868 = vxpose.xlu0.b32.cont [11/16] 0.0, 128
        %1869 = vxpose.xlu0.b32.cont [12/16] 0.0, 128
        %1870 = vxpose.xlu0.b32.cont [13/16] 0.0, 128
        %1871 = vxpose.xlu0.b32.cont [14/16] 0.0, 128
        %1872 = vxpose.xlu0.b32.cont [15/16] 0.0, 128
        %1873 = vxpose.xlu0.b32.end [16/16] 0.0, 128
        %v1874 = vpop.trf.xlu0
        %v1875 = vpop.trf.xlu0
        %v1876 = vpop.trf.xlu0
        %v1877 = vpop.trf.xlu0
        %v1878 = vpop.trf.xlu0
        %v1879 = vpop.trf.xlu0
        %v1880 = vpop.trf.xlu0
        %v1881 = vpop.trf.xlu0
        %v1882 = vpop.trf.xlu0
        %v1883 = vpop.trf.xlu0
        %v1884 = vpop.trf.xlu0
        %v1885 = vpop.trf.xlu0
        %v1886 = vpop.trf.xlu0
        %v1887 = vpop.trf.xlu0
        %v1888 = vpop.trf.xlu0
        %v1889 = vpop.trf.xlu0
        %1890 = vxpose.xlu0.b32.start [1/16] %v1791, 128
        %1891 = vxpose.xlu0.b32.cont [2/16] 0.0, 128
        %1892 = vxpose.xlu0.b32.cont [3/16] 0.0, 128
        %1893 = vxpose.xlu0.b32.cont [4/16] 0.0, 128
        %1894 = vxpose.xlu0.b32.cont [5/16] 0.0, 128
        %1895 = vxpose.xlu0.b32.cont [6/16] 0.0, 128
        %1896 = vxpose.xlu0.b32.cont [7/16] 0.0, 128
        %1897 = vxpose.xlu0.b32.cont [8/16] 0.0, 128
        %1898 = vxpose.xlu0.b32.cont [9/16] 0.0, 128
        %1899 = vxpose.xlu0.b32.cont [10/16] 0.0, 128
        %1900 = vxpose.xlu0.b32.cont [11/16] 0.0, 128
        %1901 = vxpose.xlu0.b32.cont [12/16] 0.0, 128
        %1902 = vxpose.xlu0.b32.cont [13/16] 0.0, 128
        %1903 = vxpose.xlu0.b32.cont [14/16] 0.0, 128
        %1904 = vxpose.xlu0.b32.cont [15/16] 0.0, 128
        %1905 = vxpose.xlu0.b32.end [16/16] 0.0, 128
        %v1906 = vpop.trf.xlu0
        %v1907 = vpop.trf.xlu0
        %v1908 = vpop.trf.xlu0
        %v1909 = vpop.trf.xlu0
        %v1910 = vpop.trf.xlu0
        %v1911 = vpop.trf.xlu0
        %v1912 = vpop.trf.xlu0
        %v1913 = vpop.trf.xlu0
        %v1914 = vpop.trf.xlu0
        %v1915 = vpop.trf.xlu0
        %v1916 = vpop.trf.xlu0
        %v1917 = vpop.trf.xlu0
        %v1918 = vpop.trf.xlu0
        %v1919 = vpop.trf.xlu0
        %v1920 = vpop.trf.xlu0
        %v1921 = vpop.trf.xlu0
        %v1922 = vcombine.low %v1810, %v1874
        %v1923 = vcombine.high %v1810, %v1874
        %v1925 = vunpack.c.l.s4 1983009808
        %v1926 = vunpack.c.0.s8 %v1925
        %v1927 = vlaneseq
        %v1928 = vshrl.u32 %v1927, 7
        %v1929 = vsub.s32 %v1926, %v1928
        %v1930 = vrot.slane %v1922, %v1929
        %v1932 = vunpack.c.l.s4 1983009808
        %v1933 = vunpack.c.0.s8 %v1932
        %v1934 = vlaneseq
        %v1935 = vshrl.u32 %v1934, 7
        %v1936 = vsub.s32 %v1933, %v1935
        %v1937 = vrot.slane %v1923, %v1936
        %v1938 = vcombine.low %v1842, %v1906
        %v1939 = vcombine.high %v1842, %v1906
        %v1941 = vunpack.c.l.s4 1983009808
        %v1942 = vunpack.c.0.s8 %v1941
        %v1943 = vlaneseq
        %v1944 = vshrl.u32 %v1943, 7
        %v1945 = vsub.s32 %v1942, %v1944
        %v1946 = vrot.slane %v1938, %v1945
        %v1948 = vunpack.c.l.s4 1983009808
        %v1949 = vunpack.c.0.s8 %v1948
        %v1950 = vlaneseq
        %v1951 = vshrl.u32 %v1950, 7
        %v1952 = vsub.s32 %v1949, %v1951
        %v1953 = vrot.slane %v1939, %v1952
        %v1954 = vcombine.low %v1930, %v1946
        %v1955 = vcombine.high %v1930, %v1946
        %v1957 = vunpack.c.l.s4 1934713408
        %v1958 = vunpack.c.0.s8 %v1957
        %v1959 = vlaneseq
        %v1960 = vshrl.u32 %v1959, 7
        %v1961 = vsub.s32 %v1958, %v1960
        %v1962 = vrot.slane %v1954, %v1961
        %v1964 = vunpack.c.l.s4 1934713408
        %v1965 = vunpack.c.0.s8 %v1964
        %v1966 = vlaneseq
        %v1967 = vshrl.u32 %v1966, 7
        %v1968 = vsub.s32 %v1965, %v1967
        %v1969 = vrot.slane %v1955, %v1968
        %v1970 = vcombine.low %v1937, %v1953
        %v1971 = vcombine.high %v1937, %v1953
        %v1973 = vunpack.c.l.s4 1934713408
        %v1974 = vunpack.c.0.s8 %v1973
        %v1975 = vlaneseq
        %v1976 = vshrl.u32 %v1975, 7
        %v1977 = vsub.s32 %v1974, %v1976
        %v1978 = vrot.slane %v1970, %v1977
        %v1980 = vunpack.c.l.s4 1934713408
        %v1981 = vunpack.c.0.s8 %v1980
        %v1982 = vlaneseq
        %v1983 = vshrl.u32 %v1982, 7
        %v1984 = vsub.s32 %v1981, %v1983
        %v1985 = vrot.slane %v1971, %v1984
        %v1986 = vcombine.high %v1962, 0.0
        %v1987 = vcombine.high %v1969, 0.0
        %v1988 = vcombine.high %v1978, 0.0
        %v1989 = vcombine.high %v1985, 0.0
        %v1990 = vcombine.low %v1811, %v1875
        %v1991 = vcombine.high %v1811, %v1875
        %v1993 = vunpack.c.l.s4 1983009808
        %v1994 = vunpack.c.0.s8 %v1993
        %v1995 = vlaneseq
        %v1996 = vshrl.u32 %v1995, 7
        %v1997 = vsub.s32 %v1994, %v1996
        %v1998 = vrot.slane %v1990, %v1997
        %v2000 = vunpack.c.l.s4 1983009808
        %v2001 = vunpack.c.0.s8 %v2000
        %v2002 = vlaneseq
        %v2003 = vshrl.u32 %v2002, 7
        %v2004 = vsub.s32 %v2001, %v2003
        %v2005 = vrot.slane %v1991, %v2004
        %v2006 = vcombine.low %v1843, %v1907
        %v2007 = vcombine.high %v1843, %v1907
        %v2009 = vunpack.c.l.s4 1983009808
        %v2010 = vunpack.c.0.s8 %v2009
        %v2011 = vlaneseq
        %v2012 = vshrl.u32 %v2011, 7
        %v2013 = vsub.s32 %v2010, %v2012
        %v2014 = vrot.slane %v2006, %v2013
        %v2016 = vunpack.c.l.s4 1983009808
        %v2017 = vunpack.c.0.s8 %v2016
        %v2018 = vlaneseq
        %v2019 = vshrl.u32 %v2018, 7
        %v2020 = vsub.s32 %v2017, %v2019
        %v2021 = vrot.slane %v2007, %v2020
        %v2022 = vcombine.low %v1998, %v2014
        %v2023 = vcombine.high %v1998, %v2014
        %v2025 = vunpack.c.l.s4 1934713408
        %v2026 = vunpack.c.0.s8 %v2025
        %v2027 = vlaneseq
        %v2028 = vshrl.u32 %v2027, 7
        %v2029 = vsub.s32 %v2026, %v2028
        %v2030 = vrot.slane %v2022, %v2029
        %v2032 = vunpack.c.l.s4 1934713408
        %v2033 = vunpack.c.0.s8 %v2032
        %v2034 = vlaneseq
        %v2035 = vshrl.u32 %v2034, 7
        %v2036 = vsub.s32 %v2033, %v2035
        %v2037 = vrot.slane %v2023, %v2036
        %v2038 = vcombine.low %v2005, %v2021
        %v2039 = vcombine.high %v2005, %v2021
        %v2041 = vunpack.c.l.s4 1934713408
        %v2042 = vunpack.c.0.s8 %v2041
        %v2043 = vlaneseq
        %v2044 = vshrl.u32 %v2043, 7
        %v2045 = vsub.s32 %v2042, %v2044
        %v2046 = vrot.slane %v2038, %v2045
        %v2048 = vunpack.c.l.s4 1934713408
        %v2049 = vunpack.c.0.s8 %v2048
        %v2050 = vlaneseq
        %v2051 = vshrl.u32 %v2050, 7
        %v2052 = vsub.s32 %v2049, %v2051
        %v2053 = vrot.slane %v2039, %v2052
        %v2054 = vcombine.high %v2030, 0.0
        %v2055 = vcombine.high %v2037, 0.0
        %v2056 = vcombine.high %v2046, 0.0
        %v2057 = vcombine.high %v2053, 0.0
        %v2058 = vcombine.low %v1962, %v1969
        %v2060 = vunpack.c.l.s4 1983009808
        %v2061 = vunpack.c.0.s8 %v2060
        %v2062 = vlaneseq
        %v2063 = vshrl.u32 %v2062, 7
        %v2064 = vsub.s32 %v2061, %v2063
        %v2065 = vrot.slane %v2058, %v2064
        %v2066 = vcombine.low %v1986, %v1987
        %v2068 = vunpack.c.l.s4 1983009808
        %v2069 = vunpack.c.0.s8 %v2068
        %v2070 = vlaneseq
        %v2071 = vshrl.u32 %v2070, 7
        %v2072 = vsub.s32 %v2069, %v2071
        %v2073 = vrot.slane %v2066, %v2072
        %v2074 = vcombine.low %v1978, %v1985
        %v2076 = vunpack.c.l.s4 1983009808
        %v2077 = vunpack.c.0.s8 %v2076
        %v2078 = vlaneseq
        %v2079 = vshrl.u32 %v2078, 7
        %v2080 = vsub.s32 %v2077, %v2079
        %v2081 = vrot.slane %v2074, %v2080
        %v2082 = vcombine.low %v1988, %v1989
        %v2084 = vunpack.c.l.s4 1983009808
        %v2085 = vunpack.c.0.s8 %v2084
        %v2086 = vlaneseq
        %v2087 = vshrl.u32 %v2086, 7
        %v2088 = vsub.s32 %v2085, %v2087
        %v2089 = vrot.slane %v2082, %v2088
        %v2090 = vcombine.low %v2065, %v2073
        %v2091 = vcombine.high %v2065, %v2073
        %v2093 = vunpack.c.l.s4 1934713408
        %v2094 = vunpack.c.0.s8 %v2093
        %v2095 = vlaneseq
        %v2096 = vshrl.u32 %v2095, 7
        %v2097 = vsub.s32 %v2094, %v2096
        %v2098 = vrot.slane %v2090, %v2097
        %v2100 = vunpack.c.l.s4 1934713408
        %v2101 = vunpack.c.0.s8 %v2100
        %v2102 = vlaneseq
        %v2103 = vshrl.u32 %v2102, 7
        %v2104 = vsub.s32 %v2101, %v2103
        %v2105 = vrot.slane %v2091, %v2104
        %v2106 = vcombine.low %v2081, %v2089
        %v2107 = vcombine.high %v2081, %v2089
        %v2109 = vunpack.c.l.s4 1934713408
        %v2110 = vunpack.c.0.s8 %v2109
        %v2111 = vlaneseq
        %v2112 = vshrl.u32 %v2111, 7
        %v2113 = vsub.s32 %v2110, %v2112
        %v2114 = vrot.slane %v2106, %v2113
        %v2116 = vunpack.c.l.s4 1934713408
        %v2117 = vunpack.c.0.s8 %v2116
        %v2118 = vlaneseq
        %v2119 = vshrl.u32 %v2118, 7
        %v2120 = vsub.s32 %v2117, %v2119
        %v2121 = vrot.slane %v2107, %v2120
        %v2122 = vcombine.low %v2098, %v2114
        %v2123 = vcombine.high %v2098, %v2114
        %v2124 = vcombine.low %v2105, %v2121
        %v2125 = vcombine.high %v2105, %v2121
        %v2126 = vcombine.low %v2030, %v2037
        %v2128 = vunpack.c.l.s4 1983009808
        %v2129 = vunpack.c.0.s8 %v2128
        %v2130 = vlaneseq
        %v2131 = vshrl.u32 %v2130, 7
        %v2132 = vsub.s32 %v2129, %v2131
        %v2133 = vrot.slane %v2126, %v2132
        %v2134 = vcombine.low %v2054, %v2055
        %v2136 = vunpack.c.l.s4 1983009808
        %v2137 = vunpack.c.0.s8 %v2136
        %v2138 = vlaneseq
        %v2139 = vshrl.u32 %v2138, 7
        %v2140 = vsub.s32 %v2137, %v2139
        %v2141 = vrot.slane %v2134, %v2140
        %v2142 = vcombine.low %v2046, %v2053
        %v2144 = vunpack.c.l.s4 1983009808
        %v2145 = vunpack.c.0.s8 %v2144
        %v2146 = vlaneseq
        %v2147 = vshrl.u32 %v2146, 7
        %v2148 = vsub.s32 %v2145, %v2147
        %v2149 = vrot.slane %v2142, %v2148
        %v2150 = vcombine.low %v2056, %v2057
        %v2152 = vunpack.c.l.s4 1983009808
        %v2153 = vunpack.c.0.s8 %v2152
        %v2154 = vlaneseq
        %v2155 = vshrl.u32 %v2154, 7
        %v2156 = vsub.s32 %v2153, %v2155
        %v2157 = vrot.slane %v2150, %v2156
        %v2158 = vcombine.low %v2133, %v2141
        %v2159 = vcombine.high %v2133, %v2141
        %v2161 = vunpack.c.l.s4 1934713408
        %v2162 = vunpack.c.0.s8 %v2161
        %v2163 = vlaneseq
        %v2164 = vshrl.u32 %v2163, 7
        %v2165 = vsub.s32 %v2162, %v2164
        %v2166 = vrot.slane %v2158, %v2165
        %v2168 = vunpack.c.l.s4 1934713408
        %v2169 = vunpack.c.0.s8 %v2168
        %v2170 = vlaneseq
        %v2171 = vshrl.u32 %v2170, 7
        %v2172 = vsub.s32 %v2169, %v2171
        %v2173 = vrot.slane %v2159, %v2172
        %v2174 = vcombine.low %v2149, %v2157
        %v2175 = vcombine.high %v2149, %v2157
        %v2177 = vunpack.c.l.s4 1934713408
        %v2178 = vunpack.c.0.s8 %v2177
        %v2179 = vlaneseq
        %v2180 = vshrl.u32 %v2179, 7
        %v2181 = vsub.s32 %v2178, %v2180
        %v2182 = vrot.slane %v2174, %v2181
        %v2184 = vunpack.c.l.s4 1934713408
        %v2185 = vunpack.c.0.s8 %v2184
        %v2186 = vlaneseq
        %v2187 = vshrl.u32 %v2186, 7
        %v2188 = vsub.s32 %v2185, %v2187
        %v2189 = vrot.slane %v2175, %v2188
        %v2190 = vcombine.low %v2166, %v2182
        %v2191 = vcombine.high %v2166, %v2182
        %v2192 = vcombine.low %v2173, %v2189
        %v2193 = vcombine.high %v2173, %v2189
        %2196 = vrot.lane.b32.xlu0 %v2123, 8
        %v2197 = vpop.permute.xlu0 %2196
        %2198 = vrot.lane.b32.xlu0 %v2191, 8
        %v2199 = vpop.permute.xlu0 %2198
        %2204 = vrot.lane.b32.xlu0 %v2124, 16
        %v2205 = vpop.permute.xlu0 %2204
        %2206 = vrot.lane.b32.xlu0 %v2192, 16
        %v2207 = vpop.permute.xlu0 %2206
        %2212 = vrot.lane.b32.xlu0 %v2125, 24
        %v2213 = vpop.permute.xlu0 %2212
        %2214 = vrot.lane.b32.xlu0 %v2193, 24
        %v2215 = vpop.permute.xlu0 %2214
        %v2218 = vsel %vm893, %v2122, %v2197
        %v2219 = vsel %vm893, %v2190, %v2199
        %v2220 = vsel %vm1261, %v2218, %v2205
        %v2221 = vsel %vm1261, %v2219, %v2207
        %vm2222 = vcmask 195584
        %v2223 = vsel %vm2222, %v2220, %v2213
        %v2224 = vsel %vm2222, %v2221, %v2215
        %v2225 = vpack.c.bf16 %v2224, %v2223
        %v2226 = vld [vmem:[%s413] sm:$0xf]
        %v2227 = vld [vmem:[%s413 + $0x4] sm:$0xf]
        %v2228 = vld [vmem:[%s413 + $0x8] sm:$0xf]
        %v2229 = vld [vmem:[%s413 + $0xc] sm:$0xf]
        %v2231 = vlaneseq
        %v2232 = vshrl.u32 %v2231, 7
        %v2233 = vsub.s32 0, %v2232
        %v2234 = vrot.slane %v433, %v2233
        %v2240 = vunpack.c.l.b16 %v2226
        %v2241 = vunpack.c.l.b16 %v2227
        %v2242 = vunpack.c.l.b16 %v2228
        %v2243 = vunpack.c.l.b16 %v2229
        %v2244 = vpack.c.b16 %v2241, %v2240
        %v2245 = vpack.c.b16 %v2243, %v2242
        %vm2248 = vcmask 261120
        %v2250 = vsel %vm2248, %v2225, 0
        %2252 = vmatprep.subr.bf16.mxu0 0
        %2253 = vmatpush1.bf16.msra.mxu0 %v2244
        %2254 = vmatprep.subr.bf16.mxu0 0
        %2255 = vmatpush1.bf16.msra.mxu0 %v2245
        %2256 = vmatprep.subr.bf16.mxu0 0
        %2257 = vmatpush1.bf16.msra.mxu0 0
        %2258 = vmatprep.subr.bf16.mxu0 0
        %2259 = vmatpush1.bf16.msra.mxu0 0
        %2260 = vmatprep.subr.bf16.mxu0 0
        %2261 = vmatpush1.bf16.msra.mxu0 0
        %2262 = vmatprep.subr.bf16.mxu0 0
        %2263 = vmatpush1.bf16.msra.mxu0 0
        %2264 = vmatprep.subr.bf16.mxu0 0
        %2265 = vmatpush1.bf16.msra.mxu0 0
        %2266 = vmatprep.subr.bf16.mxu0 0
        %2267 = vmatpush1.bf16.msra.mxu0 0
        %2268 = vmatprep.subr.bf16.mxu0 0
        %2269 = vmatpush1.bf16.msra.mxu0 0
        %2270 = vmatprep.subr.bf16.mxu0 0
        %2271 = vmatpush1.bf16.msra.mxu0 0
        %2272 = vmatprep.subr.bf16.mxu0 0
        %2273 = vmatpush1.bf16.msra.mxu0 0
        %2274 = vmatprep.subr.bf16.mxu0 0
        %2275 = vmatpush1.bf16.msra.mxu0 0
        %2276 = vmatprep.subr.bf16.mxu0 0
        %2277 = vmatpush1.bf16.msra.mxu0 0
        %2278 = vmatprep.subr.bf16.mxu0 0
        %2279 = vmatpush1.bf16.msra.mxu0 0
        %2280 = vmatprep.subr.bf16.mxu0 0
        %2281 = vmatpush1.bf16.msra.mxu0 0
        %2282 = vmatprep.subr.bf16.mxu0 0
        %2283 = vmatpush1.bf16.msra.mxu0 0
        %2284 = vmatprep.mubr.bf16.mxu0 0
        %2285 = vmatmul.mubr.bf16.gmra.mrb[0].mxu0 %v2250
        %v2286 = vpop.f32.mrb[0].mxu0
        %v2287 = vadd.f32 %v2234, %v2286
        %v2288 = vpop.f32.mrb[0].mxu0
        %v2289 = vpop.f32.mrb[0].mxu0
        %v2290 = vadd.f32 %v2234, %v2289
        %v2291 = vpop.f32.mrb[0].mxu0
        %2292 = vdwg.mxu0
        %v2293 = vadd.f32 %v448, %v2287
        %v2294 = vadd.f32 %v449, %v2290
        %2295 = vadd.xlane.f32.xlu0 %v2293
        %v2296 = vpop.xlane.xlu0 %2295
        %2297 = vadd.xlane.f32.xlu0 %v2294
        %v2298 = vpop.xlane.xlu0 %2297
        %v2299 = vmul.f32 %v2296, 0.03125
        %v2300 = vmul.f32 %v2298, 0.03125
        %v2301 = vsub.f32 %v2293, %v2299
        %v2302 = vsub.f32 %v2294, %v2300
        %v2303 = vsel %vm431, 1, 0
        %vm2304 = vcmp.eq.s32.totalorder %v2303, 1
        %v2305 = vsel %vm2304, %v2301, 0.0
        %v2306 = vsel %vm2304, %v2302, 0.0
        %v2307 = vmul.f32 %v2305, %v2305
        %v2308 = vmul.f32 %v2306, %v2306
        %2309 = vadd.xlane.f32.xlu0 %v2307
        %v2310 = vpop.xlane.xlu0 %2309
        %2311 = vadd.xlane.f32.xlu0 %v2308
        %v2312 = vpop.xlane.xlu0 %2311
        %v2313 = vmul.f32 %v2310, 0.03125
        %v2314 = vmul.f32 %v2312, 0.03125
        %v2315 = vadd.f32 %v2313, 1e-05
        %v2316 = vadd.f32 %v2314, 1e-05
        %v2317 = vrsqrt.pop %v2315
        %v2318 = vrsqrt.pop %v2316
        %v2319 = vmul.f32 %v2305, %v2317
        %v2320 = vmul.f32 %v2306, %v2318
        %v2322 = vlaneseq
        %v2323 = vshrl.u32 %v2322, 7
        %v2324 = vsub.s32 0, %v2323
        %v2325 = vrot.slane %v434, %v2324
        %v2327 = vmul.f32 %v2319, %v2325
        %v2328 = vmul.f32 %v2320, %v2325
        %v2330 = vlaneseq
        %v2331 = vshrl.u32 %v2330, 7
        %v2332 = vsub.s32 0, %v2331
        %v2333 = vrot.slane %v435, %v2332
        %v2335 = vadd.f32 %v2327, %v2333
        %v2336 = vadd.f32 %v2328, %v2333
        %v2337 = vpack.c.bf16 %v2336, %v2335
        %v2338 = vld [vmem:[%s418] sm:$0xf]
        %v2339 = vld [vmem:[%s418 + $0x4] sm:$0xf]
        %v2340 = vld [vmem:[%s418 + $0x8] sm:$0xf]
        %v2341 = vld [vmem:[%s418 + $0xc] sm:$0xf]
        %v2342 = vld [vmem:[%s418 + $0x10] sm:$0xf]
        %v2343 = vld [vmem:[%s418 + $0x14] sm:$0xf]
        %v2344 = vld [vmem:[%s418 + $0x18] sm:$0xf]
        %v2345 = vld [vmem:[%s418 + $0x1c] sm:$0xf]
        %v2346 = vld [vmem:[%s418 + $0x20] sm:$0xf]
        %v2347 = vld [vmem:[%s418 + $0x24] sm:$0xf]
        %v2348 = vld [vmem:[%s418 + $0x28] sm:$0xf]
        %v2349 = vld [vmem:[%s418 + $0x2c] sm:$0xf]
        %v2350 = vld [vmem:[%s418 + $0x30] sm:$0xf]
        %v2351 = vld [vmem:[%s418 + $0x34] sm:$0xf]
        %v2352 = vld [vmem:[%s418 + $0x38] sm:$0xf]
        %v2353 = vld [vmem:[%s418 + $0x3c] sm:$0xf]
        %v2355 = vlaneseq
        %v2356 = vshrl.u32 %v2355, 7
        %v2357 = vsub.s32 0, %v2356
        %v2358 = vrot.slane %v436, %v2357
        %v2376 = vunpack.c.l.b16 %v2338
        %v2377 = vunpack.c.l.b16 %v2339
        %v2378 = vunpack.c.l.b16 %v2340
        %v2379 = vunpack.c.l.b16 %v2341
        %v2380 = vunpack.c.l.b16 %v2342
        %v2381 = vunpack.c.l.b16 %v2343
        %v2382 = vunpack.c.l.b16 %v2344
        %v2383 = vunpack.c.l.b16 %v2345
        %v2384 = vunpack.c.l.b16 %v2346
        %v2385 = vunpack.c.l.b16 %v2347
        %v2386 = vunpack.c.l.b16 %v2348
        %v2387 = vunpack.c.l.b16 %v2349
        %v2388 = vunpack.c.l.b16 %v2350
        %v2389 = vunpack.c.l.b16 %v2351
        %v2390 = vunpack.c.l.b16 %v2352
        %v2391 = vunpack.c.l.b16 %v2353
        %v2392 = vpack.c.b16 %v2377, %v2376
        %v2393 = vpack.c.b16 %v2379, %v2378
        %v2394 = vpack.c.b16 %v2381, %v2380
        %v2395 = vpack.c.b16 %v2383, %v2382
        %v2396 = vpack.c.b16 %v2385, %v2384
        %v2397 = vpack.c.b16 %v2387, %v2386
        %v2398 = vpack.c.b16 %v2389, %v2388
        %v2399 = vpack.c.b16 %v2391, %v2390
        %2408 = vmatprep.subr.bf16.mxu0 0
        %2409 = vmatpush1.bf16.msra.mxu0 %v2392
        %2410 = vmatprep.subr.bf16.mxu0 0
        %2411 = vmatpush1.bf16.msra.mxu0 %v2393
        %2412 = vmatprep.subr.bf16.mxu0 0
        %2413 = vmatpush1.bf16.msra.mxu0 %v2394
        %2414 = vmatprep.subr.bf16.mxu0 0
        %2415 = vmatpush1.bf16.msra.mxu0 %v2395
        %2416 = vmatprep.subr.bf16.mxu0 0
        %2417 = vmatpush1.bf16.msra.mxu0 %v2396
        %2418 = vmatprep.subr.bf16.mxu0 0
        %2419 = vmatpush1.bf16.msra.mxu0 %v2397
        %2420 = vmatprep.subr.bf16.mxu0 0
        %2421 = vmatpush1.bf16.msra.mxu0 %v2398
        %2422 = vmatprep.subr.bf16.mxu0 0
        %2423 = vmatpush1.bf16.msra.mxu0 %v2399
        %2424 = vmatprep.subr.bf16.mxu0 0
        %2425 = vmatpush1.bf16.msra.mxu0 0
        %2426 = vmatprep.subr.bf16.mxu0 0
        %2427 = vmatpush1.bf16.msra.mxu0 0
        %2428 = vmatprep.subr.bf16.mxu0 0
        %2429 = vmatpush1.bf16.msra.mxu0 0
        %2430 = vmatprep.subr.bf16.mxu0 0
        %2431 = vmatpush1.bf16.msra.mxu0 0
        %2432 = vmatprep.subr.bf16.mxu0 0
        %2433 = vmatpush1.bf16.msra.mxu0 0
        %2434 = vmatprep.subr.bf16.mxu0 0
        %2435 = vmatpush1.bf16.msra.mxu0 0
        %2436 = vmatprep.subr.bf16.mxu0 0
        %2437 = vmatpush1.bf16.msra.mxu0 0
        %2438 = vmatprep.subr.bf16.mxu0 0
        %2439 = vmatpush1.bf16.msra.mxu0 0
        %2440 = vmatprep.mubr.bf16.mxu0 0
        %2441 = vmatmul.mubr.bf16.gmra.mrb[0].mxu0 %v2337
        %v2442 = vpop.f32.mrb[0].mxu0
        %v2443 = vadd.f32 %v2358, %v2442
        %v2444 = vpop.f32.mrb[0].mxu0
        %v2445 = vpop.f32.mrb[0].mxu0
        %v2446 = vadd.f32 %v2358, %v2445
        %v2447 = vpop.f32.mrb[0].mxu0
        %2448 = vdwg.mxu0
        %v2449 = vmax.f32 %v2443, 0.0
        %v2450 = vmax.f32 %v2446, 0.0
        %v2451 = vpack.c.bf16 %v2450, %v2449
        %v2452 = vld [vmem:[%s349] sm:$0xf]
        %v2453 = vld [vmem:[%s349 + $0x4] sm:$0xf]
        %v2454 = vld [vmem:[%s349 + $0x8] sm:$0xf]
        %v2455 = vld [vmem:[%s349 + $0xc] sm:$0xf]
        %v2456 = vld [vmem:[%s349 + $0x10] sm:$0xf]
        %v2457 = vld [vmem:[%s349 + $0x14] sm:$0xf]
        %v2458 = vld [vmem:[%s349 + $0x18] sm:$0xf]
        %v2459 = vld [vmem:[%s349 + $0x1c] sm:$0xf]
        %v2460 = vld [vmem:[%s349 + $0x20] sm:$0xf]
        %v2461 = vld [vmem:[%s349 + $0x24] sm:$0xf]
        %v2462 = vld [vmem:[%s349 + $0x28] sm:$0xf]
        %v2463 = vld [vmem:[%s349 + $0x2c] sm:$0xf]
        %v2464 = vld [vmem:[%s349 + $0x30] sm:$0xf]
        %v2465 = vld [vmem:[%s349 + $0x34] sm:$0xf]
        %v2466 = vld [vmem:[%s349 + $0x38] sm:$0xf]
        %v2467 = vld [vmem:[%s349 + $0x3c] sm:$0xf]
        %v2469 = vlaneseq
        %v2470 = vshrl.u32 %v2469, 7
        %v2471 = vsub.s32 0, %v2470
        %v2472 = vrot.slane %v437, %v2471
        %v2490 = vunpack.c.l.b16 %v2452
        %v2491 = vunpack.c.l.b16 %v2453
        %v2492 = vunpack.c.l.b16 %v2454
        %v2493 = vunpack.c.l.b16 %v2455
        %v2494 = vunpack.c.l.b16 %v2456
        %v2495 = vunpack.c.l.b16 %v2457
        %v2496 = vunpack.c.l.b16 %v2458
        %v2497 = vunpack.c.l.b16 %v2459
        %v2498 = vunpack.c.l.b16 %v2460
        %v2499 = vunpack.c.l.b16 %v2461
        %v2500 = vunpack.c.l.b16 %v2462
        %v2501 = vunpack.c.l.b16 %v2463
        %v2502 = vunpack.c.l.b16 %v2464
        %v2503 = vunpack.c.l.b16 %v2465
        %v2504 = vunpack.c.l.b16 %v2466
        %v2505 = vunpack.c.l.b16 %v2467
        %v2506 = vpack.c.b16 %v2491, %v2490
        %v2507 = vpack.c.b16 %v2493, %v2492
        %v2508 = vpack.c.b16 %v2495, %v2494
        %v2509 = vpack.c.b16 %v2497, %v2496
        %v2510 = vpack.c.b16 %v2499, %v2498
        %v2511 = vpack.c.b16 %v2501, %v2500
        %v2512 = vpack.c.b16 %v2503, %v2502
        %v2513 = vpack.c.b16 %v2505, %v2504
        %2522 = vmatprep.subr.bf16.mxu0 0
        %2523 = vmatpush1.bf16.msra.mxu0 %v2506
        %2524 = vmatprep.subr.bf16.mxu0 0
        %2525 = vmatpush1.bf16.msra.mxu0 %v2507
        %2526 = vmatprep.subr.bf16.mxu0 0
        %2527 = vmatpush1.bf16.msra.mxu0 %v2508
        %2528 = vmatprep.subr.bf16.mxu0 0
        %2529 = vmatpush1.bf16.msra.mxu0 %v2509
        %2530 = vmatprep.subr.bf16.mxu0 0
        %2531 = vmatpush1.bf16.msra.mxu0 %v2510
        %2532 = vmatprep.subr.bf16.mxu0 0
        %2533 = vmatpush1.bf16.msra.mxu0 %v2511
        %2534 = vmatprep.subr.bf16.mxu0 0
        %2535 = vmatpush1.bf16.msra.mxu0 %v2512
        %2536 = vmatprep.subr.bf16.mxu0 0
        %2537 = vmatpush1.bf16.msra.mxu0 %v2513
        %2538 = vmatprep.subr.bf16.mxu0 0
        %2539 = vmatpush1.bf16.msra.mxu0 0
        %2540 = vmatprep.subr.bf16.mxu0 0
        %2541 = vmatpush1.bf16.msra.mxu0 0
        %2542 = vmatprep.subr.bf16.mxu0 0
        %2543 = vmatpush1.bf16.msra.mxu0 0
        %2544 = vmatprep.subr.bf16.mxu0 0
        %2545 = vmatpush1.bf16.msra.mxu0 0
        %2546 = vmatprep.subr.bf16.mxu0 0
        %2547 = vmatpush1.bf16.msra.mxu0 0
        %2548 = vmatprep.subr.bf16.mxu0 0
        %2549 = vmatpush1.bf16.msra.mxu0 0
        %2550 = vmatprep.subr.bf16.mxu0 0
        %2551 = vmatpush1.bf16.msra.mxu0 0
        %2552 = vmatprep.subr.bf16.mxu0 0
        %2553 = vmatpush1.bf16.msra.mxu0 0
        %2554 = vmatprep.mubr.bf16.mxu0 0
        %2555 = vmatmul.mubr.bf16.gmra.mrb[0].mxu0 %v2451
        %v2556 = vpop.f32.mrb[0].mxu0
        %v2557 = vadd.f32 %v2472, %v2556
        %v2558 = vpop.f32.mrb[0].mxu0
        %v2559 = vpop.f32.mrb[0].mxu0
        %v2560 = vadd.f32 %v2472, %v2559
        %v2561 = vpop.f32.mrb[0].mxu0
        %2562 = vdwg.mxu0
        %v2563 = vadd.f32 %v2335, %v2557
        %v2564 = vadd.f32 %v2336, %v2560
        %2565 = vadd.xlane.f32.xlu0 %v2563
        %v2566 = vpop.xlane.xlu0 %2565
        %2567 = vadd.xlane.f32.xlu0 %v2564
        %v2568 = vpop.xlane.xlu0 %2567
        %v2569 = vmul.f32 %v2566, 0.03125
        %v2570 = vmul.f32 %v2568, 0.03125
        %v2571 = vsub.f32 %v2563, %v2569
        %v2572 = vsub.f32 %v2564, %v2570
        %v2573 = vsel %vm2304, %v2571, 0.0
        %v2574 = vsel %vm2304, %v2572, 0.0
        %v2575 = vmul.f32 %v2573, %v2573
        %v2576 = vmul.f32 %v2574, %v2574
        %2577 = vadd.xlane.f32.xlu0 %v2575
        %v2578 = vpop.xlane.xlu0 %2577
        %2579 = vadd.xlane.f32.xlu0 %v2576
        %v2580 = vpop.xlane.xlu0 %2579
        %v2581 = vmul.f32 %v2578, 0.03125
        %v2582 = vmul.f32 %v2580, 0.03125
        %v2583 = vadd.f32 %v2581, 1e-05
        %v2584 = vadd.f32 %v2582, 1e-05
        %v2585 = vrsqrt.pop %v2583
        %v2586 = vrsqrt.pop %v2584
        %v2587 = vmul.f32 %v2573, %v2585
        %v2588 = vmul.f32 %v2574, %v2586
        %v2590 = vlaneseq
        %v2591 = vshrl.u32 %v2590, 7
        %v2592 = vsub.s32 0, %v2591
        %v2593 = vrot.slane %v438, %v2592
        %v2595 = vmul.f32 %v2587, %v2593
        %v2596 = vmul.f32 %v2588, %v2593
        %v2598 = vlaneseq
        %v2599 = vshrl.u32 %v2598, 7
        %v2600 = vsub.s32 0, %v2599
        %v2601 = vrot.slane %v439, %v2600
        %v2603 = vadd.f32 %v2595, %v2601
        %v2604 = vadd.f32 %v2596, %v2601
        %2605 = vst [vmem:[#allocation2] sm:$0xff] %v2603
        %2606 = vst [vmem:[#allocation2 + $0x8] sm:$0xff] %v2604
        %p2607 = scmp.eq.s32.totalorder %s29, 1
        // Predicated region
        $region61: #{cybersecurity_transformer_forward.2} parent=47 // pred_check
          %p2608 = pneg %p2607
        $region62: #{cybersecurity_transformer_forward.2} parent=47 // pred_check_branch
          %2610 = sbr.rel (%p2608) target = $region64
        $region63: #{cybersecurity_transformer_forward.2} parent=47 // pred_region
          %v2611 = vld [vmem:[%s6] sm:$0x1]
          %v2612 = vld [vmem:[%s6 + $0x1] sm:$0x1]
          %2613 = vadd.xlane.f32.xlu0 %v2603
          %v2614 = vpop.xlane.xlu0 %2613
          %2615 = vadd.xlane.f32.xlu0 %v2604
          %v2616 = vpop.xlane.xlu0 %2615
          %v2617 = vmul.f32 %v2614, 0.03125
          %v2618 = vmul.f32 %v2616, 0.03125
          %v2619 = vsub.f32 %v2603, %v2617
          %v2620 = vsub.f32 %v2604, %v2618
          %v2621 = vsel %vm2304, %v2619, 0.0
          %v2622 = vsel %vm2304, %v2620, 0.0
          %v2623 = vmul.f32 %v2621, %v2621
          %v2624 = vmul.f32 %v2622, %v2622
          %2625 = vadd.xlane.f32.xlu0 %v2623
          %v2626 = vpop.xlane.xlu0 %2625
          %2627 = vadd.xlane.f32.xlu0 %v2624
          %v2628 = vpop.xlane.xlu0 %2627
          %v2629 = vmul.f32 %v2626, 0.03125
          %v2630 = vmul.f32 %v2628, 0.03125
          %v2631 = vadd.f32 %v2629, 1e-05
          %v2632 = vadd.f32 %v2630, 1e-05
          %v2633 = vrsqrt.pop %v2631
          %v2634 = vrsqrt.pop %v2632
          %v2635 = vmul.f32 %v2621, %v2633
          %v2636 = vmul.f32 %v2622, %v2634
          %v2638 = vlaneseq
          %v2639 = vshrl.u32 %v2638, 7
          %v2640 = vsub.s32 0, %v2639
          %v2641 = vrot.slane %v2611, %v2640
          %v2643 = vmul.f32 %v2635, %v2641
          %v2644 = vmul.f32 %v2636, %v2641
          %v2646 = vlaneseq
          %v2647 = vshrl.u32 %v2646, 7
          %v2648 = vsub.s32 0, %v2647
          %v2649 = vrot.slane %v2612, %v2648
          %v2651 = vadd.f32 %v2643, %v2649
          %v2652 = vadd.f32 %v2644, %v2649
          %2653 = vst [vmem:[%s427] sm:$0xff] %v2651
          %2654 = vst [vmem:[%s427 + $0x8] sm:$0xff] %v2652
        $region64: #{cybersecurity_transformer_forward.2} parent=47 // pred_fallthru
          _
        %p2655 = scmp.lt.s32.totalorder %s28, 0
        %s2656 = scalar_select %p2655, %s28, 0
        %s2657 = smul.addr %s2656, 2
        %s2658 = smul.addr %s2657, 8
        %s2659 = scalar_lea.vmem %s7, %s2658
        // Predicated region
        $region65: #{cybersecurity_transformer_forward.2} parent=47 // pred_check
          %p2660 = pneg %p231
        $region66: #{cybersecurity_transformer_forward.2} parent=47 // pred_check_branch
          %2662 = sbr.rel (%p2660) target = $region68
        $region67: #{cybersecurity_transformer_forward.2} parent=47 // pred_region
          _
        $region68: #{cybersecurity_transformer_forward.2} parent=47 // pred_fallthru
          _
        // Predicated region
        $region69: #{cybersecurity_transformer_forward.2} parent=47 // pred_check
          %p2663 = pneg %p231
        $region70: #{cybersecurity_transformer_forward.2} parent=47 // pred_check_branch
          %2665 = sbr.rel (%p2663) target = $region72
        $region71: #{cybersecurity_transformer_forward.2} parent=47 // pred_region
          %p2666 = scmp.lt.s32.totalorder %s28, 0
          %s2667 = scalar_select %p2666, %s28, 0
          %s2668 = smul.addr %s2667, 2
          %s2669 = smul.addr %s2668, 8
          %s2670 = scalar_lea.vmem %s7, %s2669
        $region72: #{cybersecurity_transformer_forward.2} parent=47 // pred_fallthru
          _
      $region48: #{cybersecurity_transformer_forward.2} parent=5 // pred_fallthru
        _
      %p2671 = scmp.le.s32.totalorder 2, %s19
      // Predicated region
      $region73: #{cybersecurity_transformer_forward.2} parent=5 // pred_check
        %p2672 = pneg %p2671
      $region74: #{cybersecurity_transformer_forward.2} parent=5 // pred_check_branch
        %2674 = sbr.rel (%p2672) target = $region76
      $region75: #{cybersecurity_transformer_forward.2} parent=5 // pred_region
        %s2675 = ssub.s32 %s19, 2
      $region76: #{cybersecurity_transformer_forward.2} parent=5 // pred_fallthru
        _
    $region6: #{cybersecurity_transformer_forward.2} parent=1 // loop_footer
      %s23 = sadd.s32 1, %s19
    $region7: #{cybersecurity_transformer_forward.2} parent=1 // loop_footer_branch
      %18 = sbr.rel target = $region3
    $region8: #{cybersecurity_transformer_forward.2} parent=1 // loop_exit
      _
    %2676 = vsyncpa [#allocation4], 1
    %s2677 = scalar_lea.sflag [#allocation4], 1
    %2678 = vsyncpa %s2677, 1
    %2679 = vsyncpa [#allocation6], 1
    %s2680 = scalar_lea.sflag [#allocation6], 1
    %2681 = vsyncpa %s2680, 1

</llo_original>
